<compile_context>
chip_gen: v5e
topology: v5e:2x2
jax: 0.10.0
libtpu: 0.0.40
codegen_flags: <defaults>
</compile_context>

<pallas_src>
import functools

import jax
import jax.numpy as jnp
from jax import lax
from jax.experimental import pallas as pl
from jax.experimental.pallas import tpu as pltpu

EPS = 1e-5
_F32 = jnp.float32
_BF16 = jnp.bfloat16


# ---------------------------------------------------------------------------
# Kernels
# ---------------------------------------------------------------------------
def _finalize_scale_shift(sum_ref, sq_ref, g_ref, beta_ref, a_ref, b_ref,
                          inv_rows):
    """Fold batch stats into a single affine:  y_norm = y * a + b."""
    mean = sum_ref[...] * inv_rows
    var = jnp.maximum(sq_ref[...] * inv_rows - mean * mean, 0.0)
    scale = g_ref[...] * lax.rsqrt(var + EPS)
    a_ref[...] = scale
    b_ref[...] = beta_ref[...] - mean * scale


def _stage1_kernel(x_ref, w_ref, g_ref, beta_ref,
                   y_ref, a_ref, b_ref,
                   sum_ref, sq_ref, *, inv_rows):
    """conv1 (1x1): y1 = x @ w1 (bf16 x bf16 -> f32) + BN1 batch stats.

    Stats accumulated from the f32 accumulator; y1 stored as bf16."""
    m = pl.program_id(1)
    y = jnp.dot(x_ref[...], w_ref[...], preferred_element_type=jnp.float32)
    y_ref[...] = y.astype(y_ref.dtype)

    @pl.when(m == 0)
    def _():
        sum_ref[...] = jnp.zeros_like(sum_ref)
        sq_ref[...] = jnp.zeros_like(sq_ref)

    sum_ref[...] += jnp.sum(y, axis=0, keepdims=True)
    sq_ref[...] += jnp.sum(y * y, axis=0, keepdims=True)

    @pl.when(m == pl.num_programs(1) - 1)
    def _():
        _finalize_scale_shift(sum_ref, sq_ref, g_ref, beta_ref,
                              a_ref, b_ref, inv_rows)


def _stage2_kernel(y1_ref, a1_ref, b1_ref, w2_ref, g2_ref, beta2_ref,
                   y2_ref, a2_ref, b2_ref,
                   pad_ref, sum_ref, sq_ref, *, inv_rows):
    """Apply BN1+ReLU, 3x3 conv as 9 accumulating matmuls, BN2 batch stats.

    The padded halo buffer lives in VMEM; its border is zeroed only once per
    branch (it is never overwritten).  No 9x im2col slab is materialized."""
    n = pl.program_id(1)
    H, W, P = y1_ref.shape

    @pl.when(n == 0)
    def _():
        pad_ref[...] = jnp.zeros_like(pad_ref)     # border stays zero forever
        sum_ref[...] = jnp.zeros_like(sum_ref)
        sq_ref[...] = jnp.zeros_like(sq_ref)

    # BN1 (folded scale/shift) + ReLU in f32, write bf16 interior of the pad.
    z = jnp.maximum(y1_ref[...].astype(jnp.float32) * a1_ref[...]
                    + b1_ref[...], 0.0)
    pad_ref[1:H + 1, 1:W + 1, :] = z.astype(pad_ref.dtype)

    # 3x3 conv: 9 shifted (H*W, P) x (P, P) matmuls accumulated in f32.
    acc = jnp.zeros((H * W, P), jnp.float32)
    for t in range(9):
        dy, dx = t // 3, t % 3
        patch = pad_ref[dy:dy + H, dx:dx + W, :].reshape(H * W, P)
        acc += jnp.dot(patch, w2_ref[t], preferred_element_type=jnp.float32)

    y2_ref[...] = acc.reshape(H, W, P).astype(y2_ref.dtype)

    sum_ref[...] += jnp.sum(acc, axis=0, keepdims=True)
    sq_ref[...] += jnp.sum(acc * acc, axis=0, keepdims=True)

    @pl.when(n == pl.num_programs(1) - 1)
    def _():
        _finalize_scale_shift(sum_ref, sq_ref, g2_ref, beta2_ref,
                              a2_ref, b2_ref, inv_rows)


def _stage3_kernel(y2_ref, a2_ref, b2_ref, w3_ref, g3_ref, beta3_ref,
                   a3_ref, b3_ref,
                   sum_ref, sq_ref, *, inv_rows):
    """Apply BN2+ReLU, conv3 (1x1) -- stats-only pass for BN3 (no big output)."""
    m = pl.program_id(1)
    z = jnp.maximum(y2_ref[...].astype(jnp.float32) * a2_ref[...]
                    + b2_ref[...], 0.0)
    t = jnp.dot(z.astype(w3_ref.dtype), w3_ref[...],
                preferred_element_type=jnp.float32)

    @pl.when(m == 0)
    def _():
        sum_ref[...] = jnp.zeros_like(sum_ref)
        sq_ref[...] = jnp.zeros_like(sq_ref)

    sum_ref[...] += jnp.sum(t, axis=0, keepdims=True)
    sq_ref[...] += jnp.sum(t * t, axis=0, keepdims=True)

    @pl.when(m == pl.num_programs(1) - 1)
    def _():
        _finalize_scale_shift(sum_ref, sq_ref, g3_ref, beta3_ref,
                              a3_ref, b3_ref, inv_rows)


def _stage4_kernel(y2_ref, a2_ref, b2_ref, w3_ref, a3_ref, b3_ref,
                   res_ref, o_ref):
    """Recompute conv3 fused with BN3 + identity residual (bf16->f32) + ReLU."""
    z = jnp.maximum(y2_ref[...].astype(jnp.float32) * a2_ref[...]
                    + b2_ref[...], 0.0)
    t = jnp.dot(z.astype(w3_ref.dtype), w3_ref[...],
                preferred_element_type=jnp.float32)
    o_ref[...] = jnp.maximum(
        t * a3_ref[...] + b3_ref[...] + res_ref[...].astype(jnp.float32), 0.0)


# ---------------------------------------------------------------------------
# Wrapper
# ---------------------------------------------------------------------------
def _pick_tile(m, target):
    """Largest divisor of m that is <= target and a multiple of 8 (else m)."""
    if m <= target:
        return m
    t = (target // 8) * 8
    while t >= 8:
        if m % t == 0:
            return t
        t -= 8
    return m


def _vmem_budget():
    """(vmem_limit_bytes, row_tile_target) chosen per TPU generation."""
    try:
        cap = pltpu.get_tpu_info().vmem_capacity_bytes
    except Exception:
        cap = 64 * 1024 * 1024
    if cap >= 128 * 1024 * 1024:          # v5e / v6e
        return 96 * 1024 * 1024, 1024
    return 32 * 1024 * 1024, 512          # v7x (64 MiB physical)


def bottleneck_forward(x1_nchw, x2_nchw, params_a, params_b):
    """Mirrors Bottleneck.forward((x1, x2)) -> (out1, out2); NCHW in/out."""
    N, Cin, H, W = x1_nchw.shape
    planes = params_a["w1"].shape[1]
    Cout = 4 * planes
    assert Cin == Cout, "identity residual requires inplanes == 4*planes"
    M = N * H * W
    vmem_limit, tile_target = _vmem_budget()
    tm = _pick_tile(M, tile_target)
    nm = M // tm
    inv_rows = 1.0 / M

    # channels-last, branches stacked on a leading axis; single bf16 copy that
    # is both the conv1 operand and the pass-4 residual.
    x_bf = jnp.stack([jnp.transpose(x1_nchw, (0, 2, 3, 1)),
                      jnp.transpose(x2_nchw, (0, 2, 3, 1))]
                     ).astype(_BF16).reshape(2, M, Cin)

    def stk(key, dtype=None):
        a = jnp.stack([params_a[key], params_b[key]])
        return a if dtype is None else a.astype(dtype)

    W1 = stk("w1", _BF16)                                  # (2, Cin, P)
    W2 = stk("w2", _BF16)                                  # (2, 9, P, P)
    W3 = stk("w3", _BF16)                                  # (2, P, 4P)
    G1, B1 = stk("g1", _F32), stk("b1", _F32)              # (2, 1, P)
    G2, B2 = stk("g2", _F32), stk("b2", _F32)
    G3, B3 = stk("g3", _F32), stk("b3", _F32)

    # Block specs.  All grids are (branch, tile): branch axis "parallel",
    # row/image axis "arbitrary" when BN stats accumulate across it.
    def rows(c):
        return pl.BlockSpec((None, tm, c), lambda b, i: (b, i, 0))

    def const(shape):  # resident across tiles (weights, scale/shift vectors)
        return pl.BlockSpec((None,) + shape,
                            lambda b, i: (b,) + (0,) * len(shape))

    vec_p = const((1, planes))
    vec_c = const((1, Cout))
    img_p = pl.BlockSpec((None, None, H, W, planes),
                         lambda b, i: (b, i, 0, 0, 0))

    cp_red = pltpu.CompilerParams(
        dimension_semantics=("parallel", "arbitrary"),
        vmem_limit_bytes=vmem_limit)
    cp_par = pltpu.CompilerParams(
        dimension_semantics=("parallel", "parallel"),
        vmem_limit_bytes=vmem_limit)

    def cost(flops, nbytes):
        return pl.CostEstimate(flops=int(flops), transcendentals=0,
                               bytes_accessed=int(nbytes))

    # ---- pass 1: conv1 (1x1) + BN1 batch stats -> folded scale/shift ------
    y1, a1, b1 = pl.pallas_call(
        functools.partial(_stage1_kernel, inv_rows=inv_rows),
        out_shape=(jax.ShapeDtypeStruct((2, M, planes), _BF16),
                   jax.ShapeDtypeStruct((2, 1, planes), _F32),
                   jax.ShapeDtypeStruct((2, 1, planes), _F32)),
        grid=(2, nm),
        in_specs=[rows(Cin), const((Cin, planes)), vec_p, vec_p],
        out_specs=(rows(planes), vec_p, vec_p),
        scratch_shapes=[pltpu.VMEM((1, planes), _F32),
                        pltpu.VMEM((1, planes), _F32)],
        compiler_params=cp_red,
        cost_estimate=cost(4 * M * Cin * planes, 4 * M * (Cin + planes)),
    )(x_bf, W1, G1, B1)

    # ---- pass 2: apply BN1+ReLU, 3x3 conv (9 shifted matmuls) + BN2 stats --
    y2, a2, b2 = pl.pallas_call(
        functools.partial(_stage2_kernel, inv_rows=inv_rows),
        out_shape=(jax.ShapeDtypeStruct((2, N, H, W, planes), _BF16),
                   jax.ShapeDtypeStruct((2, 1, planes), _F32),
                   jax.ShapeDtypeStruct((2, 1, planes), _F32)),
        grid=(2, N),
        in_specs=[img_p, vec_p, vec_p,
                  const((9, planes, planes)), vec_p, vec_p],
        out_specs=(img_p, vec_p, vec_p),
        scratch_shapes=[pltpu.VMEM((H + 2, W + 2, planes), _BF16),
                        pltpu.VMEM((1, planes), _F32),
                        pltpu.VMEM((1, planes), _F32)],
        compiler_params=cp_red,
        cost_estimate=cost(36 * M * planes * planes, 8 * M * planes),
    )(y1.reshape(2, N, H, W, planes), a1, b1, W2, G2, B2)

    y2_flat = y2.reshape(2, M, planes)

    # ---- pass 3: apply BN2+ReLU, conv3 (1x1) -> BN3 stats only ------------
    a3, b3 = pl.pallas_call(
        functools.partial(_stage3_kernel, inv_rows=inv_rows),
        out_shape=(jax.ShapeDtypeStruct((2, 1, Cout), _F32),
                   jax.ShapeDtypeStruct((2, 1, Cout), _F32)),
        grid=(2, nm),
        in_specs=[rows(planes), vec_p, vec_p,
                  const((planes, Cout)), vec_c, vec_c],
        out_specs=(vec_c, vec_c),
        scratch_shapes=[pltpu.VMEM((1, Cout), _F32),
                        pltpu.VMEM((1, Cout), _F32)],
        compiler_params=cp_red,
        cost_estimate=cost(4 * M * planes * Cout, 4 * M * planes),
    )(y2_flat, a2, b2, W3, G3, B3)

    # ---- pass 4: conv3 recomputed + BN3 + identity residual + ReLU --------
    out = pl.pallas_call(
        _stage4_kernel,
        out_shape=jax.ShapeDtypeStruct((2, M, Cout), _F32),
        grid=(2, nm),
        in_specs=[rows(planes), vec_p, vec_p,
                  const((planes, Cout)), vec_c, vec_c, rows(Cout)],
        out_specs=rows(Cout),
        compiler_params=cp_par,
        cost_estimate=cost(4 * M * planes * Cout,
                           4 * M * planes + 2 * M * Cout + 8 * M * Cout),
    )(y2_flat, a2, b2, W3, a3, b3, x_bf)

    out = out.reshape(2, N, H, W, Cout)
    return (jnp.transpose(out[0], (0, 3, 1, 2)),
            jnp.transpose(out[1], (0, 3, 1, 2)))


# ---------------------------------------------------------------------------
# Pure-JAX reference (mirrors kernel math: bf16 operands / bf16 intermediate
# storage, f32 accumulation, stats from f32 conv accumulators)
# ---------------------------------------------------------------------------
def _ref_branch(x_nhwc, p):
    N, H, W, _ = x_nhwc.shape
    P = p["w1"].shape[1]

    def bf(v):  # bf16 rounding, keep f32 accumulation
        return v.astype(_BF16).astype(_F32)

    def bn_fold(y, g, b):
        mean = jnp.mean(y, axis=(0, 1, 2), keepdims=True)
        var = jnp.maximum(jnp.mean(y * y, axis=(0, 1, 2), keepdims=True)
                          - mean * mean, 0.0)
        scale = g.reshape(1, 1, 1, -1) * lax.rsqrt(var + EPS)
        shift = b.reshape(1, 1, 1, -1) - mean * scale
        return scale, shift

    y1 = jnp.einsum("nhwc,co->nhwo", bf(x_nhwc), bf(p["w1"]))
    a1, s1 = bn_fold(y1, p["g1"], p["b1"])
    z1 = jax.nn.relu(bf(y1) * a1 + s1)

    zp = jnp.pad(bf(z1), ((0, 0), (1, 1), (1, 1), (0, 0)))
    y2 = jnp.zeros((N, H, W, P), _F32)
    for t in range(9):
        dy, dx = t // 3, t % 3
        y2 = y2 + jnp.einsum("nhwc,co->nhwo",
                             bf(zp[:, dy:dy + H, dx:dx + W, :]),
                             bf(p["w2"][t]))
    a2, s2 = bn_fold(y2, p["g2"], p["b2"])
    z2 = jax.nn.relu(bf(y2) * a2 + s2)

    y3 = jnp.einsum("nhwc,co->nhwo", bf(z2), bf(p["w3"]))
    a3, s3 = bn_fold(y3, p["g3"], p["b3"])
    return jax.nn.relu(y3 * a3 + s3 + bf(x_nhwc))


# ---------------------------------------------------------------------------
# Parameter construction (deterministic, synthetic)
# ---------------------------------------------------------------------------
def make_branch_params(key, inplanes, planes):
    ks = jax.random.split(key, 9)

    def nrm(k, shape, scale=0.1):
        return (scale * jax.random.normal(k, shape)).astype(jnp.float32)

    return {
        "w1": nrm(ks[0], (inplanes, planes)),
        "g1": 1.0 + nrm(ks[1], (1, planes)), "b1": nrm(ks[2], (1, planes)),
        "w2": nrm(ks[3], (9, planes, planes)),   # tap index = ky*3 + kx (HWIO)
        "g2": 1.0 + nrm(ks[4], (1, planes)), "b2": nrm(ks[5], (1, planes)),
        "w3": nrm(ks[6], (planes, 4 * planes)),
        "g3": 1.0 + nrm(ks[7], (1, 4 * planes)),
        "b3": nrm(ks[8], (1, 4 * planes)),
    }


if __name__ == "__main__":
    key = jax.random.PRNGKey(0)
    k_x1, k_x2, k_a, k_b = jax.random.split(key, 4)

    N, planes, H, W = 2, 8, 8, 8
    inplanes = 4 * planes  # identity residual requires inplanes == planes*4

    x1 = jax.random.normal(k_x1, (N, inplanes, H, W), jnp.float32)  # NCHW
    x2 = jax.random.normal(k_x2, (N, inplanes, H, W), jnp.float32)  # NCHW

    params_a = make_branch_params(k_a, inplanes, planes)
    params_b = make_branch_params(k_b, inplanes, planes)

    out1, out2 = jax.jit(bottleneck_forward)(x1, x2, params_a, params_b)
    out1 = jax.block_until_ready(out1)
    out2 = jax.block_until_ready(out2)

    # reference check (tolerance dominated by bf16 rounding / summation order)
    ref1 = jnp.transpose(_ref_branch(jnp.transpose(x1, (0, 2, 3, 1)), params_a),
                         (0, 3, 1, 2))
    ref2 = jnp.transpose(_ref_branch(jnp.transpose(x2, (0, 2, 3, 1)), params_b),
                         (0, 3, 1, 2))
    assert out1.shape == (N, inplanes, H, W)
    assert out2.shape == (N, inplanes, H, W)
    assert jnp.allclose(out1, ref1, atol=1e-2, rtol=1e-2), \
        float(jnp.max(jnp.abs(out1 - ref1)))
    assert jnp.allclose(out2, ref2, atol=1e-2, rtol=1e-2), \
        float(jnp.max(jnp.abs(out2 - ref2)))

    print("KERNEL_OK")
</pallas_src>

<mosaic_0001>
module attributes {stable_mosaic.version = 11 : i64} {
  func.func @_stage2_kernel(%arg0: i32, %arg1: i32, %arg2: memref<1x1x8x8x8xbf16, #tpu.memory_space<vmem>>, %arg3: memref<1x1x8xf32, #tpu.memory_space<vmem>>, %arg4: memref<1x1x8xf32, #tpu.memory_space<vmem>>, %arg5: memref<1x9x8x8xbf16, #tpu.memory_space<vmem>>, %arg6: memref<1x1x8xf32, #tpu.memory_space<vmem>>, %arg7: memref<1x1x8xf32, #tpu.memory_space<vmem>>, %arg8: memref<1x1x8x8x8xbf16, #tpu.memory_space<vmem>>, %arg9: memref<1x1x8xf32, #tpu.memory_space<vmem>>, %arg10: memref<1x1x8xf32, #tpu.memory_space<vmem>>, %arg11: memref<10x10x8xbf16, #tpu.memory_space<vmem>>, %arg12: memref<1x8xf32, #tpu.memory_space<vmem>>, %arg13: memref<1x8xf32, #tpu.memory_space<vmem>>) attributes {dimension_semantics = [#tpu.dimension_semantics<parallel>, #tpu.dimension_semantics<arbitrary>], iteration_bounds = array<i64: 2, 2>, scalar_prefetch = 0 : i64, scratch_operands = 3 : i64, tpu.core_type = #tpu.core_type<tc>, window_params = [{transform_indices = @transform_0, window_bounds = array<i64: 1, 1, 8, 8, 8>}, {transform_indices = @transform_1, window_bounds = array<i64: 1, 1, 8>}, {transform_indices = @transform_2, window_bounds = array<i64: 1, 1, 8>}, {transform_indices = @transform_3, window_bounds = array<i64: 1, 9, 8, 8>}, {transform_indices = @transform_4, window_bounds = array<i64: 1, 1, 8>}, {transform_indices = @transform_5, window_bounds = array<i64: 1, 1, 8>}, {transform_indices = @transform_6, window_bounds = array<i64: 1, 1, 8, 8, 8>}, {transform_indices = @transform_7, window_bounds = array<i64: 1, 1, 8>}, {transform_indices = @transform_8, window_bounds = array<i64: 1, 1, 8>}]} {
    %c0_i32 = arith.constant 0 : i32
    %0 = arith.cmpi eq, %arg1, %c0_i32 : i32
    %1 = arith.extui %0 : i1 to i32
    %c0_i32_0 = arith.constant 0 : i32
    %2 = arith.cmpi ne, %1, %c0_i32_0 : i32
    scf.if %2 {
      %cst_95 = arith.constant 0.000000e+00 : bf16
      %94 = vector.broadcast %cst_95 : bf16 to vector<10x10x8xbf16>
      %c0_96 = arith.constant 0 : index
      %c0_97 = arith.constant 0 : index
      %c0_98 = arith.constant 0 : index
      %95 = vector.load %arg11[%c0_96, %c0_97, %c0_98] : memref<10x10x8xbf16, #tpu.memory_space<vmem>>, vector<10x10x8xbf16>
      tpu.vector_store %arg11[%c0_96, %c0_97, %c0_98], %94 {strides = array<i32>} : memref<10x10x8xbf16, #tpu.memory_space<vmem>>, vector<10x10x8xbf16>,
      %cst_99 = arith.constant 0.000000e+00 : f32
      %96 = vector.broadcast %cst_99 : f32 to vector<1x8xf32>
      %c0_100 = arith.constant 0 : index
      %c0_101 = arith.constant 0 : index
      %97 = vector.load %arg12[%c0_100, %c0_101] : memref<1x8xf32, #tpu.memory_space<vmem>>, vector<1x8xf32>
      tpu.vector_store %arg12[%c0_100, %c0_101], %96 {strides = array<i32>} : memref<1x8xf32, #tpu.memory_space<vmem>>, vector<1x8xf32>,
      %cst_102 = arith.constant 0.000000e+00 : f32
      %98 = vector.broadcast %cst_102 : f32 to vector<1x8xf32>
      %c0_103 = arith.constant 0 : index
      %c0_104 = arith.constant 0 : index
      %99 = vector.load %arg13[%c0_103, %c0_104] : memref<1x8xf32, #tpu.memory_space<vmem>>, vector<1x8xf32>
      tpu.vector_store %arg13[%c0_103, %c0_104], %98 {strides = array<i32>} : memref<1x8xf32, #tpu.memory_space<vmem>>, vector<1x8xf32>,
    } else {
    }
    %c0 = arith.constant 0 : index
    %c0_1 = arith.constant 0 : index
    %c0_2 = arith.constant 0 : index
    %c0_3 = arith.constant 0 : index
    %c0_4 = arith.constant 0 : index
    %3 = vector.load %arg2[%c0, %c0_1, %c0_2, %c0_3, %c0_4] : memref<1x1x8x8x8xbf16, #tpu.memory_space<vmem>>, vector<1x1x8x8x8xbf16>
    %4 = vector.shape_cast %3 : vector<1x1x8x8x8xbf16> to vector<8x8x8xbf16>
    %5 = arith.extf %4 : vector<8x8x8xbf16> to vector<8x8x8xf32>
    %c0_5 = arith.constant 0 : index
    %c0_6 = arith.constant 0 : index
    %c0_7 = arith.constant 0 : index
    %6 = vector.load %arg3[%c0_5, %c0_6, %c0_7] : memref<1x1x8xf32, #tpu.memory_space<vmem>>, vector<1x1x8xf32>
    %7 = vector.shape_cast %6 : vector<1x1x8xf32> to vector<1x8xf32>
    %8 = vector.shape_cast %7 : vector<1x8xf32> to vector<1x1x8xf32>
    %9 = vector.broadcast %8 : vector<1x1x8xf32> to vector<8x8x8xf32>
    %10 = arith.mulf %5, %9 : vector<8x8x8xf32>
    %c0_8 = arith.constant 0 : index
    %c0_9 = arith.constant 0 : index
    %c0_10 = arith.constant 0 : index
    %11 = vector.load %arg4[%c0_8, %c0_9, %c0_10] : memref<1x1x8xf32, #tpu.memory_space<vmem>>, vector<1x1x8xf32>
    %12 = vector.shape_cast %11 : vector<1x1x8xf32> to vector<1x8xf32>
    %13 = vector.shape_cast %12 : vector<1x8xf32> to vector<1x1x8xf32>
    %14 = vector.broadcast %13 : vector<1x1x8xf32> to vector<8x8x8xf32>
    %15 = arith.addf %10, %14 : vector<8x8x8xf32>
    %cst = arith.constant 0.000000e+00 : f32
    %16 = vector.broadcast %cst : f32 to vector<8x8x8xf32>
    %17 = arith.maximumf %15, %16 : vector<8x8x8xf32>
    %18 = arith.truncf %17 : vector<8x8x8xf32> to vector<8x8x8xbf16>
    %c1 = arith.constant 1 : index
    %c1_11 = arith.constant 1 : index
    %c0_12 = arith.constant 0 : index
    %19 = vector.load %arg11[%c1, %c1_11, %c0_12] : memref<10x10x8xbf16, #tpu.memory_space<vmem>>, vector<8x8x8xbf16>
    tpu.vector_store %arg11[%c1, %c1_11, %c0_12], %18 {strides = array<i32>} : memref<10x10x8xbf16, #tpu.memory_space<vmem>>, vector<8x8x8xbf16>,
    %cst_13 = arith.constant 0.000000e+00 : f32
    %20 = vector.broadcast %cst_13 : f32 to vector<64x8xf32>
    %c0_14 = arith.constant 0 : index
    %c0_15 = arith.constant 0 : index
    %c0_16 = arith.constant 0 : index
    %21 = vector.load %arg11[%c0_14, %c0_15, %c0_16] : memref<10x10x8xbf16, #tpu.memory_space<vmem>>, vector<8x8x8xbf16>
    %22 = vector.shape_cast %21 : vector<8x8x8xbf16> to vector<64x8xbf16>
    %c0_17 = arith.constant 0 : index
    %c0_18 = arith.constant 0 : index
    %c0_19 = arith.constant 0 : index
    %c0_20 = arith.constant 0 : index
    %23 = vector.load %arg5[%c0_17, %c0_18, %c0_19, %c0_20] : memref<1x9x8x8xbf16, #tpu.memory_space<vmem>>, vector<1x1x8x8xbf16>
    %24 = vector.shape_cast %23 : vector<1x1x8x8xbf16> to vector<8x8xbf16>
    %cst_21 = arith.constant dense<0.000000e+00> : vector<64x8xf32>
    %25 = tpu.matmul %22, %24, %cst_21 {dimension_numbers = #tpu.dot_dimension_numbers<[1], [0], [0], [1], [0, 0, 1, 1], [], []>} : vector<64x8xbf16>, vector<8x8xbf16>, vector<64x8xf32> -> vector<64x8xf32>
    %26 = arith.addf %20, %25 : vector<64x8xf32>
    %c0_22 = arith.constant 0 : index
    %c1_23 = arith.constant 1 : index
    %c0_24 = arith.constant 0 : index
    %27 = vector.load %arg11[%c0_22, %c1_23, %c0_24] : memref<10x10x8xbf16, #tpu.memory_space<vmem>>, vector<8x8x8xbf16>
    %28 = vector.shape_cast %27 : vector<8x8x8xbf16> to vector<64x8xbf16>
    %c0_25 = arith.constant 0 : index
    %c1_26 = arith.constant 1 : index
    %c0_27 = arith.constant 0 : index
    %c0_28 = arith.constant 0 : index
    %29 = vector.load %arg5[%c0_25, %c1_26, %c0_27, %c0_28] : memref<1x9x8x8xbf16, #tpu.memory_space<vmem>>, vector<1x1x8x8xbf16>
    %30 = vector.shape_cast %29 : vector<1x1x8x8xbf16> to vector<8x8xbf16>
    %cst_29 = arith.constant dense<0.000000e+00> : vector<64x8xf32>
    %31 = tpu.matmul %28, %30, %cst_29 {dimension_numbers = #tpu.dot_dimension_numbers<[1], [0], [0], [1], [0, 0, 1, 1], [], []>} : vector<64x8xbf16>, vector<8x8xbf16>, vector<64x8xf32> -> vector<64x8xf32>
    %32 = arith.addf %26, %31 : vector<64x8xf32>
    %c0_30 = arith.constant 0 : index
    %c2 = arith.constant 2 : index
    %c0_31 = arith.constant 0 : index
    %33 = vector.load %arg11[%c0_30, %c2, %c0_31] : memref<10x10x8xbf16, #tpu.memory_space<vmem>>, vector<8x8x8xbf16>
    %34 = vector.shape_cast %33 : vector<8x8x8xbf16> to vector<64x8xbf16>
    %c0_32 = arith.constant 0 : index
    %c2_33 = arith.constant 2 : index
    %c0_34 = arith.constant 0 : index
    %c0_35 = arith.constant 0 : index
    %35 = vector.load %arg5[%c0_32, %c2_33, %c0_34, %c0_35] : memref<1x9x8x8xbf16, #tpu.memory_space<vmem>>, vector<1x1x8x8xbf16>
    %36 = vector.shape_cast %35 : vector<1x1x8x8xbf16> to vector<8x8xbf16>
    %cst_36 = arith.constant dense<0.000000e+00> : vector<64x8xf32>
    %37 = tpu.matmul %34, %36, %cst_36 {dimension_numbers = #tpu.dot_dimension_numbers<[1], [0], [0], [1], [0, 0, 1, 1], [], []>} : vector<64x8xbf16>, vector<8x8xbf16>, vector<64x8xf32> -> vector<64x8xf32>
    %38 = arith.addf %32, %37 : vector<64x8xf32>
    %c1_37 = arith.constant 1 : index
    %c0_38 = arith.constant 0 : index
    %c0_39 = arith.constant 0 : index
    %39 = vector.load %arg11[%c1_37, %c0_38, %c0_39] : memref<10x10x8xbf16, #tpu.memory_space<vmem>>, vector<8x8x8xbf16>
    %40 = vector.shape_cast %39 : vector<8x8x8xbf16> to vector<64x8xbf16>
    %c0_40 = arith.constant 0 : index
    %c3 = arith.constant 3 : index
    %c0_41 = arith.constant 0 : index
    %c0_42 = arith.constant 0 : index
    %41 = vector.load %arg5[%c0_40, %c3, %c0_41, %c0_42] : memref<1x9x8x8xbf16, #tpu.memory_space<vmem>>, vector<1x1x8x8xbf16>
    %42 = vector.shape_cast %41 : vector<1x1x8x8xbf16> to vector<8x8xbf16>
    %cst_43 = arith.constant dense<0.000000e+00> : vector<64x8xf32>
    %43 = tpu.matmul %40, %42, %cst_43 {dimension_numbers = #tpu.dot_dimension_numbers<[1], [0], [0], [1], [0, 0, 1, 1], [], []>} : vector<64x8xbf16>, vector<8x8xbf16>, vector<64x8xf32> -> vector<64x8xf32>
    %44 = arith.addf %38, %43 : vector<64x8xf32>
    %c1_44 = arith.constant 1 : index
    %c1_45 = arith.constant 1 : index
    %c0_46 = arith.constant 0 : index
    %45 = vector.load %arg11[%c1_44, %c1_45, %c0_46] : memref<10x10x8xbf16, #tpu.memory_space<vmem>>, vector<8x8x8xbf16>
    %46 = vector.shape_cast %45 : vector<8x8x8xbf16> to vector<64x8xbf16>
    %c0_47 = arith.constant 0 : index
    %c4 = arith.constant 4 : index
    %c0_48 = arith.constant 0 : index
    %c0_49 = arith.constant 0 : index
    %47 = vector.load %arg5[%c0_47, %c4, %c0_48, %c0_49] : memref<1x9x8x8xbf16, #tpu.memory_space<vmem>>, vector<1x1x8x8xbf16>
    %48 = vector.shape_cast %47 : vector<1x1x8x8xbf16> to vector<8x8xbf16>
    %cst_50 = arith.constant dense<0.000000e+00> : vector<64x8xf32>
    %49 = tpu.matmul %46, %48, %cst_50 {dimension_numbers = #tpu.dot_dimension_numbers<[1], [0], [0], [1], [0, 0, 1, 1], [], []>} : vector<64x8xbf16>, vector<8x8xbf16>, vector<64x8xf32> -> vector<64x8xf32>
    %50 = arith.addf %44, %49 : vector<64x8xf32>
    %c1_51 = arith.constant 1 : index
    %c2_52 = arith.constant 2 : index
    %c0_53 = arith.constant 0 : index
    %51 = vector.load %arg11[%c1_51, %c2_52, %c0_53] : memref<10x10x8xbf16, #tpu.memory_space<vmem>>, vector<8x8x8xbf16>
    %52 = vector.shape_cast %51 : vector<8x8x8xbf16> to vector<64x8xbf16>
    %c0_54 = arith.constant 0 : index
    %c5 = arith.constant 5 : index
    %c0_55 = arith.constant 0 : index
    %c0_56 = arith.constant 0 : index
    %53 = vector.load %arg5[%c0_54, %c5, %c0_55, %c0_56] : memref<1x9x8x8xbf16, #tpu.memory_space<vmem>>, vector<1x1x8x8xbf16>
    %54 = vector.shape_cast %53 : vector<1x1x8x8xbf16> to vector<8x8xbf16>
    %cst_57 = arith.constant dense<0.000000e+00> : vector<64x8xf32>
    %55 = tpu.matmul %52, %54, %cst_57 {dimension_numbers = #tpu.dot_dimension_numbers<[1], [0], [0], [1], [0, 0, 1, 1], [], []>} : vector<64x8xbf16>, vector<8x8xbf16>, vector<64x8xf32> -> vector<64x8xf32>
    %56 = arith.addf %50, %55 : vector<64x8xf32>
    %c2_58 = arith.constant 2 : index
    %c0_59 = arith.constant 0 : index
    %c0_60 = arith.constant 0 : index
    %57 = vector.load %arg11[%c2_58, %c0_59, %c0_60] : memref<10x10x8xbf16, #tpu.memory_space<vmem>>, vector<8x8x8xbf16>
    %58 = vector.shape_cast %57 : vector<8x8x8xbf16> to vector<64x8xbf16>
    %c0_61 = arith.constant 0 : index
    %c6 = arith.constant 6 : index
    %c0_62 = arith.constant 0 : index
    %c0_63 = arith.constant 0 : index
    %59 = vector.load %arg5[%c0_61, %c6, %c0_62, %c0_63] : memref<1x9x8x8xbf16, #tpu.memory_space<vmem>>, vector<1x1x8x8xbf16>
    %60 = vector.shape_cast %59 : vector<1x1x8x8xbf16> to vector<8x8xbf16>
    %cst_64 = arith.constant dense<0.000000e+00> : vector<64x8xf32>
    %61 = tpu.matmul %58, %60, %cst_64 {dimension_numbers = #tpu.dot_dimension_numbers<[1], [0], [0], [1], [0, 0, 1, 1], [], []>} : vector<64x8xbf16>, vector<8x8xbf16>, vector<64x8xf32> -> vector<64x8xf32>
    %62 = arith.addf %56, %61 : vector<64x8xf32>
    %c2_65 = arith.constant 2 : index
    %c1_66 = arith.constant 1 : index
    %c0_67 = arith.constant 0 : index
    %63 = vector.load %arg11[%c2_65, %c1_66, %c0_67] : memref<10x10x8xbf16, #tpu.memory_space<vmem>>, vector<8x8x8xbf16>
    %64 = vector.shape_cast %63 : vector<8x8x8xbf16> to vector<64x8xbf16>
    %c0_68 = arith.constant 0 : index
    %c7 = arith.constant 7 : index
    %c0_69 = arith.constant 0 : index
    %c0_70 = arith.constant 0 : index
    %65 = vector.load %arg5[%c0_68, %c7, %c0_69, %c0_70] : memref<1x9x8x8xbf16, #tpu.memory_space<vmem>>, vector<1x1x8x8xbf16>
    %66 = vector.shape_cast %65 : vector<1x1x8x8xbf16> to vector<8x8xbf16>
    %cst_71 = arith.constant dense<0.000000e+00> : vector<64x8xf32>
    %67 = tpu.matmul %64, %66, %cst_71 {dimension_numbers = #tpu.dot_dimension_numbers<[1], [0], [0], [1], [0, 0, 1, 1], [], []>} : vector<64x8xbf16>, vector<8x8xbf16>, vector<64x8xf32> -> vector<64x8xf32>
    %68 = arith.addf %62, %67 : vector<64x8xf32>
    %c2_72 = arith.constant 2 : index
    %c2_73 = arith.constant 2 : index
    %c0_74 = arith.constant 0 : index
    %69 = vector.load %arg11[%c2_72, %c2_73, %c0_74] : memref<10x10x8xbf16, #tpu.memory_space<vmem>>, vector<8x8x8xbf16>
    %70 = vector.shape_cast %69 : vector<8x8x8xbf16> to vector<64x8xbf16>
    %c0_75 = arith.constant 0 : index
    %c8 = arith.constant 8 : index
    %c0_76 = arith.constant 0 : index
    %c0_77 = arith.constant 0 : index
    %71 = vector.load %arg5[%c0_75, %c8, %c0_76, %c0_77] : memref<1x9x8x8xbf16, #tpu.memory_space<vmem>>, vector<1x1x8x8xbf16>
    %72 = vector.shape_cast %71 : vector<1x1x8x8xbf16> to vector<8x8xbf16>
    %cst_78 = arith.constant dense<0.000000e+00> : vector<64x8xf32>
    %73 = tpu.matmul %70, %72, %cst_78 {dimension_numbers = #tpu.dot_dimension_numbers<[1], [0], [0], [1], [0, 0, 1, 1], [], []>} : vector<64x8xbf16>, vector<8x8xbf16>, vector<64x8xf32> -> vector<64x8xf32>
    %74 = arith.addf %68, %73 : vector<64x8xf32>
    %75 = vector.shape_cast %74 : vector<64x8xf32> to vector<8x8x8xf32>
    %76 = arith.truncf %75 : vector<8x8x8xf32> to vector<8x8x8xbf16>
    %c0_79 = arith.constant 0 : index
    %c0_80 = arith.constant 0 : index
    %c0_81 = arith.constant 0 : index
    %c0_82 = arith.constant 0 : index
    %c0_83 = arith.constant 0 : index
    %77 = vector.load %arg8[%c0_79, %c0_80, %c0_81, %c0_82, %c0_83] : memref<1x1x8x8x8xbf16, #tpu.memory_space<vmem>>, vector<1x1x8x8x8xbf16>
    %78 = vector.shape_cast %77 : vector<1x1x8x8x8xbf16> to vector<8x8x8xbf16>
    %79 = vector.shape_cast %76 : vector<8x8x8xbf16> to vector<1x1x8x8x8xbf16>
    tpu.vector_store %arg8[%c0_79, %c0_80, %c0_81, %c0_82, %c0_83], %79 {strides = array<i32>} : memref<1x1x8x8x8xbf16, #tpu.memory_space<vmem>>, vector<1x1x8x8x8xbf16>,
    %c0_84 = arith.constant 0 : index
    %c0_85 = arith.constant 0 : index
    %80 = vector.load %arg12[%c0_84, %c0_85] : memref<1x8xf32, #tpu.memory_space<vmem>>, vector<1x8xf32>
    %cst_86 = arith.constant dense<0.000000e+00> : vector<8xf32>
    %81 = vector.multi_reduction <add>, %74, %cst_86 [0] : vector<64x8xf32> to vector<8xf32>
    %82 = vector.shape_cast %81 : vector<8xf32> to vector<1x8xf32>
    %83 = arith.addf %80, %82 : vector<1x8xf32>
    %c0_87 = arith.constant 0 : index
    %c0_88 = arith.constant 0 : index
    %84 = vector.load %arg12[%c0_87, %c0_88] : memref<1x8xf32, #tpu.memory_space<vmem>>, vector<1x8xf32>
    tpu.vector_store %arg12[%c0_87, %c0_88], %83 {strides = array<i32>} : memref<1x8xf32, #tpu.memory_space<vmem>>, vector<1x8xf32>,
    %c0_89 = arith.constant 0 : index
    %c0_90 = arith.constant 0 : index
    %85 = vector.load %arg13[%c0_89, %c0_90] : memref<1x8xf32, #tpu.memory_space<vmem>>, vector<1x8xf32>
    %86 = arith.mulf %74, %74 : vector<64x8xf32>
    %cst_91 = arith.constant dense<0.000000e+00> : vector<8xf32>
    %87 = vector.multi_reduction <add>, %86, %cst_91 [0] : vector<64x8xf32> to vector<8xf32>
    %88 = vector.shape_cast %87 : vector<8xf32> to vector<1x8xf32>
    %89 = arith.addf %85, %88 : vector<1x8xf32>
    %c0_92 = arith.constant 0 : index
    %c0_93 = arith.constant 0 : index
    %90 = vector.load %arg13[%c0_92, %c0_93] : memref<1x8xf32, #tpu.memory_space<vmem>>, vector<1x8xf32>
    tpu.vector_store %arg13[%c0_92, %c0_93], %89 {strides = array<i32>} : memref<1x8xf32, #tpu.memory_space<vmem>>, vector<1x8xf32>,
    %c1_i32 = arith.constant 1 : i32
    %91 = arith.cmpi eq, %arg1, %c1_i32 : i32
    %92 = arith.extui %91 : i1 to i32
    %c0_i32_94 = arith.constant 0 : i32
    %93 = arith.cmpi ne, %92, %c0_i32_94 : i32
    scf.if %93 {
      %c0_95 = arith.constant 0 : index
      %c0_96 = arith.constant 0 : index
      %94 = vector.load %arg12[%c0_95, %c0_96] : memref<1x8xf32, #tpu.memory_space<vmem>>, vector<1x8xf32>
      %cst_97 = arith.constant 7.812500e-03 : f32
      %95 = vector.broadcast %cst_97 : f32 to vector<1x8xf32>
      %96 = arith.mulf %94, %95 : vector<1x8xf32>
      %c0_98 = arith.constant 0 : index
      %c0_99 = arith.constant 0 : index
      %97 = vector.load %arg13[%c0_98, %c0_99] : memref<1x8xf32, #tpu.memory_space<vmem>>, vector<1x8xf32>
      %cst_100 = arith.constant 7.812500e-03 : f32
      %98 = vector.broadcast %cst_100 : f32 to vector<1x8xf32>
      %99 = arith.mulf %97, %98 : vector<1x8xf32>
      %100 = arith.mulf %96, %96 : vector<1x8xf32>
      %101 = arith.subf %99, %100 : vector<1x8xf32>
      %cst_101 = arith.constant 0.000000e+00 : f32
      %102 = vector.broadcast %cst_101 : f32 to vector<1x8xf32>
      %103 = arith.maximumf %101, %102 : vector<1x8xf32>
      %c0_102 = arith.constant 0 : index
      %c0_103 = arith.constant 0 : index
      %c0_104 = arith.constant 0 : index
      %104 = vector.load %arg6[%c0_102, %c0_103, %c0_104] : memref<1x1x8xf32, #tpu.memory_space<vmem>>, vector<1x1x8xf32>
      %105 = vector.shape_cast %104 : vector<1x1x8xf32> to vector<1x8xf32>
      %cst_105 = arith.constant 9.99999974E-6 : f32
      %106 = vector.broadcast %cst_105 : f32 to vector<1x8xf32>
      %107 = arith.addf %103, %106 : vector<1x8xf32>
      %108 = math.rsqrt %107 : vector<1x8xf32>
      %109 = arith.mulf %105, %108 : vector<1x8xf32>
      %c0_106 = arith.constant 0 : index
      %c0_107 = arith.constant 0 : index
      %c0_108 = arith.constant 0 : index
      %110 = vector.load %arg9[%c0_106, %c0_107, %c0_108] : memref<1x1x8xf32, #tpu.memory_space<vmem>>, vector<1x1x8xf32>
      %111 = vector.shape_cast %110 : vector<1x1x8xf32> to vector<1x8xf32>
      %112 = vector.shape_cast %109 : vector<1x8xf32> to vector<1x1x8xf32>
      tpu.vector_store %arg9[%c0_106, %c0_107, %c0_108], %112 {strides = array<i32>} : memref<1x1x8xf32, #tpu.memory_space<vmem>>, vector<1x1x8xf32>,
      %c0_109 = arith.constant 0 : index
      %c0_110 = arith.constant 0 : index
      %c0_111 = arith.constant 0 : index
      %113 = vector.load %arg7[%c0_109, %c0_110, %c0_111] : memref<1x1x8xf32, #tpu.memory_space<vmem>>, vector<1x1x8xf32>
      %114 = vector.shape_cast %113 : vector<1x1x8xf32> to vector<1x8xf32>
      %115 = arith.mulf %96, %109 : vector<1x8xf32>
      %116 = arith.subf %114, %115 : vector<1x8xf32>
      %c0_112 = arith.constant 0 : index
      %c0_113 = arith.constant 0 : index
      %c0_114 = arith.constant 0 : index
      %117 = vector.load %arg10[%c0_112, %c0_113, %c0_114] : memref<1x1x8xf32, #tpu.memory_space<vmem>>, vector<1x1x8xf32>
      %118 = vector.shape_cast %117 : vector<1x1x8xf32> to vector<1x8xf32>
      %119 = vector.shape_cast %116 : vector<1x8xf32> to vector<1x1x8xf32>
      tpu.vector_store %arg10[%c0_112, %c0_113, %c0_114], %119 {strides = array<i32>} : memref<1x1x8xf32, #tpu.memory_space<vmem>>, vector<1x1x8xf32>,
    } else {
    }
    return
  }
  func.func @transform_0(%arg0: i32, %arg1: i32) -> (i32, i32, i32, i32, i32) {
    %c0_i32 = arith.constant 0 : i32
    %c0_i32_0 = arith.constant 0 : i32
    %c0_i32_1 = arith.constant 0 : i32
    %c0_i32_2 = arith.constant 0 : i32
    return %arg0, %arg1, %c0_i32, %c0_i32_0, %c0_i32_1 : i32, i32, i32, i32, i32
  }
  func.func @transform_1(%arg0: i32, %arg1: i32) -> (i32, i32, i32) {
    %c0_i32 = arith.constant 0 : i32
    %c0_i32_0 = arith.constant 0 : i32
    %c0_i32_1 = arith.constant 0 : i32
    return %arg0, %c0_i32, %c0_i32_0 : i32, i32, i32
  }
  func.func @transform_2(%arg0: i32, %arg1: i32) -> (i32, i32, i32) {
    %c0_i32 = arith.constant 0 : i32
    %c0_i32_0 = arith.constant 0 : i32
    %c0_i32_1 = arith.constant 0 : i32
    return %arg0, %c0_i32, %c0_i32_0 : i32, i32, i32
  }
  func.func @transform_3(%arg0: i32, %arg1: i32) -> (i32, i32, i32, i32) {
    %c0_i32 = arith.constant 0 : i32
    %c0_i32_0 = arith.constant 0 : i32
    %c0_i32_1 = arith.constant 0 : i32
    %c0_i32_2 = arith.constant 0 : i32
    return %arg0, %c0_i32, %c0_i32_0, %c0_i32_1 : i32, i32, i32, i32
  }
  func.func @transform_4(%arg0: i32, %arg1: i32) -> (i32, i32, i32) {
    %c0_i32 = arith.constant 0 : i32
    %c0_i32_0 = arith.constant 0 : i32
    %c0_i32_1 = arith.constant 0 : i32
    return %arg0, %c0_i32, %c0_i32_0 : i32, i32, i32
  }
  func.func @transform_5(%arg0: i32, %arg1: i32) -> (i32, i32, i32) {
    %c0_i32 = arith.constant 0 : i32
    %c0_i32_0 = arith.constant 0 : i32
    %c0_i32_1 = arith.constant 0 : i32
    return %arg0, %c0_i32, %c0_i32_0 : i32, i32, i32
  }
  func.func @transform_6(%arg0: i32, %arg1: i32) -> (i32, i32, i32, i32, i32) {
    %c0_i32 = arith.constant 0 : i32
    %c0_i32_0 = arith.constant 0 : i32
    %c0_i32_1 = arith.constant 0 : i32
    %c0_i32_2 = arith.constant 0 : i32
    return %arg0, %arg1, %c0_i32, %c0_i32_0, %c0_i32_1 : i32, i32, i32, i32, i32
  }
  func.func @transform_7(%arg0: i32, %arg1: i32) -> (i32, i32, i32) {
    %c0_i32 = arith.constant 0 : i32
    %c0_i32_0 = arith.constant 0 : i32
    %c0_i32_1 = arith.constant 0 : i32
    return %arg0, %c0_i32, %c0_i32_0 : i32, i32, i32
  }
  func.func @transform_8(%arg0: i32, %arg1: i32) -> (i32, i32, i32) {
    %c0_i32 = arith.constant 0 : i32
    %c0_i32_0 = arith.constant 0 : i32
    %c0_i32_1 = arith.constant 0 : i32
    return %arg0, %c0_i32, %c0_i32_0 : i32, i32, i32
  }
}

module attributes {stable_mosaic.version = 11 : i64} {
  func.func @_stage3_kernel(%arg0: i32, %arg1: i32, %arg2: memref<1x128x8xbf16, #tpu.memory_space<vmem>>, %arg3: memref<1x1x8xf32, #tpu.memory_space<vmem>>, %arg4: memref<1x1x8xf32, #tpu.memory_space<vmem>>, %arg5: memref<1x8x32xbf16, #tpu.memory_space<vmem>>, %arg6: memref<1x1x32xf32, #tpu.memory_space<vmem>>, %arg7: memref<1x1x32xf32, #tpu.memory_space<vmem>>, %arg8: memref<1x1x32xf32, #tpu.memory_space<vmem>>, %arg9: memref<1x1x32xf32, #tpu.memory_space<vmem>>, %arg10: memref<1x32xf32, #tpu.memory_space<vmem>>, %arg11: memref<1x32xf32, #tpu.memory_space<vmem>>) attributes {dimension_semantics = [#tpu.dimension_semantics<parallel>, #tpu.dimension_semantics<arbitrary>], iteration_bounds = array<i64: 2, 1>, scalar_prefetch = 0 : i64, scratch_operands = 2 : i64, tpu.core_type = #tpu.core_type<tc>, window_params = [{transform_indices = @transform_0, window_bounds = array<i64: 1, 128, 8>}, {transform_indices = @transform_1, window_bounds = array<i64: 1, 1, 8>}, {transform_indices = @transform_2, window_bounds = array<i64: 1, 1, 8>}, {transform_indices = @transform_3, window_bounds = array<i64: 1, 8, 32>}, {transform_indices = @transform_4, window_bounds = array<i64: 1, 1, 32>}, {transform_indices = @transform_5, window_bounds = array<i64: 1, 1, 32>}, {transform_indices = @transform_6, window_bounds = array<i64: 1, 1, 32>}, {transform_indices = @transform_7, window_bounds = array<i64: 1, 1, 32>}]} {
    %c0 = arith.constant 0 : index
    %c0_0 = arith.constant 0 : index
    %c0_1 = arith.constant 0 : index
    %0 = vector.load %arg2[%c0, %c0_0, %c0_1] : memref<1x128x8xbf16, #tpu.memory_space<vmem>>, vector<1x128x8xbf16>
    %1 = vector.shape_cast %0 : vector<1x128x8xbf16> to vector<128x8xbf16>
    %2 = arith.extf %1 : vector<128x8xbf16> to vector<128x8xf32>
    %c0_2 = arith.constant 0 : index
    %c0_3 = arith.constant 0 : index
    %c0_4 = arith.constant 0 : index
    %3 = vector.load %arg3[%c0_2, %c0_3, %c0_4] : memref<1x1x8xf32, #tpu.memory_space<vmem>>, vector<1x1x8xf32>
    %4 = vector.shape_cast %3 : vector<1x1x8xf32> to vector<1x8xf32>
    %5 = vector.broadcast %4 : vector<1x8xf32> to vector<128x8xf32>
    %6 = arith.mulf %2, %5 : vector<128x8xf32>
    %c0_5 = arith.constant 0 : index
    %c0_6 = arith.constant 0 : index
    %c0_7 = arith.constant 0 : index
    %7 = vector.load %arg4[%c0_5, %c0_6, %c0_7] : memref<1x1x8xf32, #tpu.memory_space<vmem>>, vector<1x1x8xf32>
    %8 = vector.shape_cast %7 : vector<1x1x8xf32> to vector<1x8xf32>
    %9 = vector.broadcast %8 : vector<1x8xf32> to vector<128x8xf32>
    %10 = arith.addf %6, %9 : vector<128x8xf32>
    %cst = arith.constant 0.000000e+00 : f32
    %11 = vector.broadcast %cst : f32 to vector<128x8xf32>
    %12 = arith.maximumf %10, %11 : vector<128x8xf32>
    %13 = arith.truncf %12 : vector<128x8xf32> to vector<128x8xbf16>
    %c0_8 = arith.constant 0 : index
    %c0_9 = arith.constant 0 : index
    %c0_10 = arith.constant 0 : index
    %14 = vector.load %arg5[%c0_8, %c0_9, %c0_10] : memref<1x8x32xbf16, #tpu.memory_space<vmem>>, vector<1x8x32xbf16>
    %15 = vector.shape_cast %14 : vector<1x8x32xbf16> to vector<8x32xbf16>
    %cst_11 = arith.constant dense<0.000000e+00> : vector<128x32xf32>
    %16 = tpu.matmul %13, %15, %cst_11 {dimension_numbers = #tpu.dot_dimension_numbers<[1], [0], [0], [1], [0, 0, 1, 1], [], []>} : vector<128x8xbf16>, vector<8x32xbf16>, vector<128x32xf32> -> vector<128x32xf32>
    %c0_i32 = arith.constant 0 : i32
    %17 = arith.cmpi eq, %arg1, %c0_i32 : i32
    %18 = arith.extui %17 : i1 to i32
    %c0_i32_12 = arith.constant 0 : i32
    %19 = arith.cmpi ne, %18, %c0_i32_12 : i32
    scf.if %19 {
      %cst_25 = arith.constant 0.000000e+00 : f32
      %34 = vector.broadcast %cst_25 : f32 to vector<1x32xf32>
      %c0_26 = arith.constant 0 : index
      %c0_27 = arith.constant 0 : index
      %35 = vector.load %arg10[%c0_26, %c0_27] : memref<1x32xf32, #tpu.memory_space<vmem>>, vector<1x32xf32>
      tpu.vector_store %arg10[%c0_26, %c0_27], %34 {strides = array<i32>} : memref<1x32xf32, #tpu.memory_space<vmem>>, vector<1x32xf32>,
      %cst_28 = arith.constant 0.000000e+00 : f32
      %36 = vector.broadcast %cst_28 : f32 to vector<1x32xf32>
      %c0_29 = arith.constant 0 : index
      %c0_30 = arith.constant 0 : index
      %37 = vector.load %arg11[%c0_29, %c0_30] : memref<1x32xf32, #tpu.memory_space<vmem>>, vector<1x32xf32>
      tpu.vector_store %arg11[%c0_29, %c0_30], %36 {strides = array<i32>} : memref<1x32xf32, #tpu.memory_space<vmem>>, vector<1x32xf32>,
    } else {
    }
    %c0_13 = arith.constant 0 : index
    %c0_14 = arith.constant 0 : index
    %20 = vector.load %arg10[%c0_13, %c0_14] : memref<1x32xf32, #tpu.memory_space<vmem>>, vector<1x32xf32>
    %cst_15 = arith.constant dense<0.000000e+00> : vector<32xf32>
    %21 = vector.multi_reduction <add>, %16, %cst_15 [0] : vector<128x32xf32> to vector<32xf32>
    %22 = vector.shape_cast %21 : vector<32xf32> to vector<1x32xf32>
    %23 = arith.addf %20, %22 : vector<1x32xf32>
    %c0_16 = arith.constant 0 : index
    %c0_17 = arith.constant 0 : index
    %24 = vector.load %arg10[%c0_16, %c0_17] : memref<1x32xf32, #tpu.memory_space<vmem>>, vector<1x32xf32>
    tpu.vector_store %arg10[%c0_16, %c0_17], %23 {strides = array<i32>} : memref<1x32xf32, #tpu.memory_space<vmem>>, vector<1x32xf32>,
    %c0_18 = arith.constant 0 : index
    %c0_19 = arith.constant 0 : index
    %25 = vector.load %arg11[%c0_18, %c0_19] : memref<1x32xf32, #tpu.memory_space<vmem>>, vector<1x32xf32>
    %26 = arith.mulf %16, %16 : vector<128x32xf32>
    %cst_20 = arith.constant dense<0.000000e+00> : vector<32xf32>
    %27 = vector.multi_reduction <add>, %26, %cst_20 [0] : vector<128x32xf32> to vector<32xf32>
    %28 = vector.shape_cast %27 : vector<32xf32> to vector<1x32xf32>
    %29 = arith.addf %25, %28 : vector<1x32xf32>
    %c0_21 = arith.constant 0 : index
    %c0_22 = arith.constant 0 : index
    %30 = vector.load %arg11[%c0_21, %c0_22] : memref<1x32xf32, #tpu.memory_space<vmem>>, vector<1x32xf32>
    tpu.vector_store %arg11[%c0_21, %c0_22], %29 {strides = array<i32>} : memref<1x32xf32, #tpu.memory_space<vmem>>, vector<1x32xf32>,
    %c0_i32_23 = arith.constant 0 : i32
    %31 = arith.cmpi eq, %arg1, %c0_i32_23 : i32
    %32 = arith.extui %31 : i1 to i32
    %c0_i32_24 = arith.constant 0 : i32
    %33 = arith.cmpi ne, %32, %c0_i32_24 : i32
    scf.if %33 {
      %c0_25 = arith.constant 0 : index
      %c0_26 = arith.constant 0 : index
      %34 = vector.load %arg10[%c0_25, %c0_26] : memref<1x32xf32, #tpu.memory_space<vmem>>, vector<1x32xf32>
      %cst_27 = arith.constant 7.812500e-03 : f32
      %35 = vector.broadcast %cst_27 : f32 to vector<1x32xf32>
      %36 = arith.mulf %34, %35 : vector<1x32xf32>
      %c0_28 = arith.constant 0 : index
      %c0_29 = arith.constant 0 : index
      %37 = vector.load %arg11[%c0_28, %c0_29] : memref<1x32xf32, #tpu.memory_space<vmem>>, vector<1x32xf32>
      %cst_30 = arith.constant 7.812500e-03 : f32
      %38 = vector.broadcast %cst_30 : f32 to vector<1x32xf32>
      %39 = arith.mulf %37, %38 : vector<1x32xf32>
      %40 = arith.mulf %36, %36 : vector<1x32xf32>
      %41 = arith.subf %39, %40 : vector<1x32xf32>
      %cst_31 = arith.constant 0.000000e+00 : f32
      %42 = vector.broadcast %cst_31 : f32 to vector<1x32xf32>
      %43 = arith.maximumf %41, %42 : vector<1x32xf32>
      %c0_32 = arith.constant 0 : index
      %c0_33 = arith.constant 0 : index
      %c0_34 = arith.constant 0 : index
      %44 = vector.load %arg6[%c0_32, %c0_33, %c0_34] : memref<1x1x32xf32, #tpu.memory_space<vmem>>, vector<1x1x32xf32>
      %45 = vector.shape_cast %44 : vector<1x1x32xf32> to vector<1x32xf32>
      %cst_35 = arith.constant 9.99999974E-6 : f32
      %46 = vector.broadcast %cst_35 : f32 to vector<1x32xf32>
      %47 = arith.addf %43, %46 : vector<1x32xf32>
      %48 = math.rsqrt %47 : vector<1x32xf32>
      %49 = arith.mulf %45, %48 : vector<1x32xf32>
      %c0_36 = arith.constant 0 : index
      %c0_37 = arith.constant 0 : index
      %c0_38 = arith.constant 0 : index
      %50 = vector.load %arg8[%c0_36, %c0_37, %c0_38] : memref<1x1x32xf32, #tpu.memory_space<vmem>>, vector<1x1x32xf32>
      %51 = vector.shape_cast %50 : vector<1x1x32xf32> to vector<1x32xf32>
      %52 = vector.shape_cast %49 : vector<1x32xf32> to vector<1x1x32xf32>
      tpu.vector_store %arg8[%c0_36, %c0_37, %c0_38], %52 {strides = array<i32>} : memref<1x1x32xf32, #tpu.memory_space<vmem>>, vector<1x1x32xf32>,
      %c0_39 = arith.constant 0 : index
      %c0_40 = arith.constant 0 : index
      %c0_41 = arith.constant 0 : index
      %53 = vector.load %arg7[%c0_39, %c0_40, %c0_41] : memref<1x1x32xf32, #tpu.memory_space<vmem>>, vector<1x1x32xf32>
      %54 = vector.shape_cast %53 : vector<1x1x32xf32> to vector<1x32xf32>
      %55 = arith.mulf %36, %49 : vector<1x32xf32>
      %56 = arith.subf %54, %55 : vector<1x32xf32>
      %c0_42 = arith.constant 0 : index
      %c0_43 = arith.constant 0 : index
      %c0_44 = arith.constant 0 : index
      %57 = vector.load %arg9[%c0_42, %c0_43, %c0_44] : memref<1x1x32xf32, #tpu.memory_space<vmem>>, vector<1x1x32xf32>
      %58 = vector.shape_cast %57 : vector<1x1x32xf32> to vector<1x32xf32>
      %59 = vector.shape_cast %56 : vector<1x32xf32> to vector<1x1x32xf32>
      tpu.vector_store %arg9[%c0_42, %c0_43, %c0_44], %59 {strides = array<i32>} : memref<1x1x32xf32, #tpu.memory_space<vmem>>, vector<1x1x32xf32>,
    } else {
    }
    return
  }
  func.func @transform_0(%arg0: i32, %arg1: i32) -> (i32, i32, i32) {
    %c0_i32 = arith.constant 0 : i32
    %c0_i32_0 = arith.constant 0 : i32
    return %arg0, %arg1, %c0_i32 : i32, i32, i32
  }
  func.func @transform_1(%arg0: i32, %arg1: i32) -> (i32, i32, i32) {
    %c0_i32 = arith.constant 0 : i32
    %c0_i32_0 = arith.constant 0 : i32
    %c0_i32_1 = arith.constant 0 : i32
    return %arg0, %c0_i32, %c0_i32_0 : i32, i32, i32
  }
  func.func @transform_2(%arg0: i32, %arg1: i32) -> (i32, i32, i32) {
    %c0_i32 = arith.constant 0 : i32
    %c0_i32_0 = arith.constant 0 : i32
    %c0_i32_1 = arith.constant 0 : i32
    return %arg0, %c0_i32, %c0_i32_0 : i32, i32, i32
  }
  func.func @transform_3(%arg0: i32, %arg1: i32) -> (i32, i32, i32) {
    %c0_i32 = arith.constant 0 : i32
    %c0_i32_0 = arith.constant 0 : i32
    %c0_i32_1 = arith.constant 0 : i32
    return %arg0, %c0_i32, %c0_i32_0 : i32, i32, i32
  }
  func.func @transform_4(%arg0: i32, %arg1: i32) -> (i32, i32, i32) {
    %c0_i32 = arith.constant 0 : i32
    %c0_i32_0 = arith.constant 0 : i32
    %c0_i32_1 = arith.constant 0 : i32
    return %arg0, %c0_i32, %c0_i32_0 : i32, i32, i32
  }
  func.func @transform_5(%arg0: i32, %arg1: i32) -> (i32, i32, i32) {
    %c0_i32 = arith.constant 0 : i32
    %c0_i32_0 = arith.constant 0 : i32
    %c0_i32_1 = arith.constant 0 : i32
    return %arg0, %c0_i32, %c0_i32_0 : i32, i32, i32
  }
  func.func @transform_6(%arg0: i32, %arg1: i32) -> (i32, i32, i32) {
    %c0_i32 = arith.constant 0 : i32
    %c0_i32_0 = arith.constant 0 : i32
    %c0_i32_1 = arith.constant 0 : i32
    return %arg0, %c0_i32, %c0_i32_0 : i32, i32, i32
  }
  func.func @transform_7(%arg0: i32, %arg1: i32) -> (i32, i32, i32) {
    %c0_i32 = arith.constant 0 : i32
    %c0_i32_0 = arith.constant 0 : i32
    %c0_i32_1 = arith.constant 0 : i32
    return %arg0, %c0_i32, %c0_i32_0 : i32, i32, i32
  }
}

module attributes {stable_mosaic.version = 11 : i64} {
  func.func @_stage4_kernel(%arg0: i32, %arg1: i32, %arg2: memref<1x128x8xbf16, #tpu.memory_space<vmem>>, %arg3: memref<1x1x8xf32, #tpu.memory_space<vmem>>, %arg4: memref<1x1x8xf32, #tpu.memory_space<vmem>>, %arg5: memref<1x8x32xbf16, #tpu.memory_space<vmem>>, %arg6: memref<1x1x32xf32, #tpu.memory_space<vmem>>, %arg7: memref<1x1x32xf32, #tpu.memory_space<vmem>>, %arg8: memref<1x128x32xbf16, #tpu.memory_space<vmem>>, %arg9: memref<1x128x32xf32, #tpu.memory_space<vmem>>) attributes {dimension_semantics = [#tpu.dimension_semantics<parallel>, #tpu.dimension_semantics<parallel>], iteration_bounds = array<i64: 2, 1>, scalar_prefetch = 0 : i64, scratch_operands = 0 : i64, tpu.core_type = #tpu.core_type<tc>, window_params = [{transform_indices = @transform_0, window_bounds = array<i64: 1, 128, 8>}, {transform_indices = @transform_1, window_bounds = array<i64: 1, 1, 8>}, {transform_indices = @transform_2, window_bounds = array<i64: 1, 1, 8>}, {transform_indices = @transform_3, window_bounds = array<i64: 1, 8, 32>}, {transform_indices = @transform_4, window_bounds = array<i64: 1, 1, 32>}, {transform_indices = @transform_5, window_bounds = array<i64: 1, 1, 32>}, {transform_indices = @transform_6, window_bounds = array<i64: 1, 128, 32>}, {transform_indices = @transform_7, window_bounds = array<i64: 1, 128, 32>}]} {
    %c0 = arith.constant 0 : index
    %c0_0 = arith.constant 0 : index
    %c0_1 = arith.constant 0 : index
    %0 = vector.load %arg2[%c0, %c0_0, %c0_1] : memref<1x128x8xbf16, #tpu.memory_space<vmem>>, vector<1x128x8xbf16>
    %1 = vector.shape_cast %0 : vector<1x128x8xbf16> to vector<128x8xbf16>
    %2 = arith.extf %1 : vector<128x8xbf16> to vector<128x8xf32>
    %c0_2 = arith.constant 0 : index
    %c0_3 = arith.constant 0 : index
    %c0_4 = arith.constant 0 : index
    %3 = vector.load %arg3[%c0_2, %c0_3, %c0_4] : memref<1x1x8xf32, #tpu.memory_space<vmem>>, vector<1x1x8xf32>
    %4 = vector.shape_cast %3 : vector<1x1x8xf32> to vector<1x8xf32>
    %5 = vector.broadcast %4 : vector<1x8xf32> to vector<128x8xf32>
    %6 = arith.mulf %2, %5 : vector<128x8xf32>
    %c0_5 = arith.constant 0 : index
    %c0_6 = arith.constant 0 : index
    %c0_7 = arith.constant 0 : index
    %7 = vector.load %arg4[%c0_5, %c0_6, %c0_7] : memref<1x1x8xf32, #tpu.memory_space<vmem>>, vector<1x1x8xf32>
    %8 = vector.shape_cast %7 : vector<1x1x8xf32> to vector<1x8xf32>
    %9 = vector.broadcast %8 : vector<1x8xf32> to vector<128x8xf32>
    %10 = arith.addf %6, %9 : vector<128x8xf32>
    %cst = arith.constant 0.000000e+00 : f32
    %11 = vector.broadcast %cst : f32 to vector<128x8xf32>
    %12 = arith.maximumf %10, %11 : vector<128x8xf32>
    %13 = arith.truncf %12 : vector<128x8xf32> to vector<128x8xbf16>
    %c0_8 = arith.constant 0 : index
    %c0_9 = arith.constant 0 : index
    %c0_10 = arith.constant 0 : index
    %14 = vector.load %arg5[%c0_8, %c0_9, %c0_10] : memref<1x8x32xbf16, #tpu.memory_space<vmem>>, vector<1x8x32xbf16>
    %15 = vector.shape_cast %14 : vector<1x8x32xbf16> to vector<8x32xbf16>
    %cst_11 = arith.constant dense<0.000000e+00> : vector<128x32xf32>
    %16 = tpu.matmul %13, %15, %cst_11 {dimension_numbers = #tpu.dot_dimension_numbers<[1], [0], [0], [1], [0, 0, 1, 1], [], []>} : vector<128x8xbf16>, vector<8x32xbf16>, vector<128x32xf32> -> vector<128x32xf32>
    %c0_12 = arith.constant 0 : index
    %c0_13 = arith.constant 0 : index
    %c0_14 = arith.constant 0 : index
    %17 = vector.load %arg6[%c0_12, %c0_13, %c0_14] : memref<1x1x32xf32, #tpu.memory_space<vmem>>, vector<1x1x32xf32>
    %18 = vector.shape_cast %17 : vector<1x1x32xf32> to vector<1x32xf32>
    %19 = vector.broadcast %18 : vector<1x32xf32> to vector<128x32xf32>
    %20 = arith.mulf %16, %19 : vector<128x32xf32>
    %c0_15 = arith.constant 0 : index
    %c0_16 = arith.constant 0 : index
    %c0_17 = arith.constant 0 : index
    %21 = vector.load %arg7[%c0_15, %c0_16, %c0_17] : memref<1x1x32xf32, #tpu.memory_space<vmem>>, vector<1x1x32xf32>
    %22 = vector.shape_cast %21 : vector<1x1x32xf32> to vector<1x32xf32>
    %23 = vector.broadcast %22 : vector<1x32xf32> to vector<128x32xf32>
    %24 = arith.addf %20, %23 : vector<128x32xf32>
    %c0_18 = arith.constant 0 : index
    %c0_19 = arith.constant 0 : index
    %c0_20 = arith.constant 0 : index
    %25 = vector.load %arg8[%c0_18, %c0_19, %c0_20] : memref<1x128x32xbf16, #tpu.memory_space<vmem>>, vector<1x128x32xbf16>
    %26 = vector.shape_cast %25 : vector<1x128x32xbf16> to vector<128x32xbf16>
    %27 = arith.extf %26 : vector<128x32xbf16> to vector<128x32xf32>
    %28 = arith.addf %24, %27 : vector<128x32xf32>
    %cst_21 = arith.constant 0.000000e+00 : f32
    %29 = vector.broadcast %cst_21 : f32 to vector<128x32xf32>
    %30 = arith.maximumf %28, %29 : vector<128x32xf32>
    %c0_22 = arith.constant 0 : index
    %c0_23 = arith.constant 0 : index
    %c0_24 = arith.constant 0 : index
    %31 = vector.load %arg9[%c0_22, %c0_23, %c0_24] : memref<1x128x32xf32, #tpu.memory_space<vmem>>, vector<1x128x32xf32>
    %32 = vector.shape_cast %31 : vector<1x128x32xf32> to vector<128x32xf32>
    %33 = vector.shape_cast %30 : vector<128x32xf32> to vector<1x128x32xf32>
    tpu.vector_store %arg9[%c0_22, %c0_23, %c0_24], %33 {strides = array<i32>} : memref<1x128x32xf32, #tpu.memory_space<vmem>>, vector<1x128x32xf32>,
    return
  }
  func.func @transform_0(%arg0: i32, %arg1: i32) -> (i32, i32, i32) {
    %c0_i32 = arith.constant 0 : i32
    %c0_i32_0 = arith.constant 0 : i32
    return %arg0, %arg1, %c0_i32 : i32, i32, i32
  }
  func.func @transform_1(%arg0: i32, %arg1: i32) -> (i32, i32, i32) {
    %c0_i32 = arith.constant 0 : i32
    %c0_i32_0 = arith.constant 0 : i32
    %c0_i32_1 = arith.constant 0 : i32
    return %arg0, %c0_i32, %c0_i32_0 : i32, i32, i32
  }
  func.func @transform_2(%arg0: i32, %arg1: i32) -> (i32, i32, i32) {
    %c0_i32 = arith.constant 0 : i32
    %c0_i32_0 = arith.constant 0 : i32
    %c0_i32_1 = arith.constant 0 : i32
    return %arg0, %c0_i32, %c0_i32_0 : i32, i32, i32
  }
  func.func @transform_3(%arg0: i32, %arg1: i32) -> (i32, i32, i32) {
    %c0_i32 = arith.constant 0 : i32
    %c0_i32_0 = arith.constant 0 : i32
    %c0_i32_1 = arith.constant 0 : i32
    return %arg0, %c0_i32, %c0_i32_0 : i32, i32, i32
  }
  func.func @transform_4(%arg0: i32, %arg1: i32) -> (i32, i32, i32) {
    %c0_i32 = arith.constant 0 : i32
    %c0_i32_0 = arith.constant 0 : i32
    %c0_i32_1 = arith.constant 0 : i32
    return %arg0, %c0_i32, %c0_i32_0 : i32, i32, i32
  }
  func.func @transform_5(%arg0: i32, %arg1: i32) -> (i32, i32, i32) {
    %c0_i32 = arith.constant 0 : i32
    %c0_i32_0 = arith.constant 0 : i32
    %c0_i32_1 = arith.constant 0 : i32
    return %arg0, %c0_i32, %c0_i32_0 : i32, i32, i32
  }
  func.func @transform_6(%arg0: i32, %arg1: i32) -> (i32, i32, i32) {
    %c0_i32 = arith.constant 0 : i32
    %c0_i32_0 = arith.constant 0 : i32
    return %arg0, %arg1, %c0_i32 : i32, i32, i32
  }
  func.func @transform_7(%arg0: i32, %arg1: i32) -> (i32, i32, i32) {
    %c0_i32 = arith.constant 0 : i32
    %c0_i32_0 = arith.constant 0 : i32
    return %arg0, %arg1, %c0_i32 : i32, i32, i32
  }
}

module attributes {stable_mosaic.version = 11 : i64} {
  func.func @_stage1_kernel(%arg0: i32, %arg1: i32, %arg2: memref<1x128x32xbf16, #tpu.memory_space<vmem>>, %arg3: memref<1x32x8xbf16, #tpu.memory_space<vmem>>, %arg4: memref<1x1x8xf32, #tpu.memory_space<vmem>>, %arg5: memref<1x1x8xf32, #tpu.memory_space<vmem>>, %arg6: memref<1x128x8xbf16, #tpu.memory_space<vmem>>, %arg7: memref<1x1x8xf32, #tpu.memory_space<vmem>>, %arg8: memref<1x1x8xf32, #tpu.memory_space<vmem>>, %arg9: memref<1x8xf32, #tpu.memory_space<vmem>>, %arg10: memref<1x8xf32, #tpu.memory_space<vmem>>) attributes {dimension_semantics = [#tpu.dimension_semantics<parallel>, #tpu.dimension_semantics<arbitrary>], iteration_bounds = array<i64: 2, 1>, scalar_prefetch = 0 : i64, scratch_operands = 2 : i64, tpu.core_type = #tpu.core_type<tc>, window_params = [{transform_indices = @transform_0, window_bounds = array<i64: 1, 128, 32>}, {transform_indices = @transform_1, window_bounds = array<i64: 1, 32, 8>}, {transform_indices = @transform_2, window_bounds = array<i64: 1, 1, 8>}, {transform_indices = @transform_3, window_bounds = array<i64: 1, 1, 8>}, {transform_indices = @transform_4, window_bounds = array<i64: 1, 128, 8>}, {transform_indices = @transform_5, window_bounds = array<i64: 1, 1, 8>}, {transform_indices = @transform_6, window_bounds = array<i64: 1, 1, 8>}]} {
    %c0 = arith.constant 0 : index
    %c0_0 = arith.constant 0 : index
    %c0_1 = arith.constant 0 : index
    %0 = vector.load %arg2[%c0, %c0_0, %c0_1] : memref<1x128x32xbf16, #tpu.memory_space<vmem>>, vector<1x128x32xbf16>
    %1 = vector.shape_cast %0 : vector<1x128x32xbf16> to vector<128x32xbf16>
    %c0_2 = arith.constant 0 : index
    %c0_3 = arith.constant 0 : index
    %c0_4 = arith.constant 0 : index
    %2 = vector.load %arg3[%c0_2, %c0_3, %c0_4] : memref<1x32x8xbf16, #tpu.memory_space<vmem>>, vector<1x32x8xbf16>
    %3 = vector.shape_cast %2 : vector<1x32x8xbf16> to vector<32x8xbf16>
    %cst = arith.constant dense<0.000000e+00> : vector<128x8xf32>
    %4 = tpu.matmul %1, %3, %cst {dimension_numbers = #tpu.dot_dimension_numbers<[1], [0], [0], [1], [0, 0, 1, 1], [], []>} : vector<128x32xbf16>, vector<32x8xbf16>, vector<128x8xf32> -> vector<128x8xf32>
    %5 = arith.truncf %4 : vector<128x8xf32> to vector<128x8xbf16>
    %c0_5 = arith.constant 0 : index
    %c0_6 = arith.constant 0 : index
    %c0_7 = arith.constant 0 : index
    %6 = vector.load %arg6[%c0_5, %c0_6, %c0_7] : memref<1x128x8xbf16, #tpu.memory_space<vmem>>, vector<1x128x8xbf16>
    %7 = vector.shape_cast %6 : vector<1x128x8xbf16> to vector<128x8xbf16>
    %8 = vector.shape_cast %5 : vector<128x8xbf16> to vector<1x128x8xbf16>
    tpu.vector_store %arg6[%c0_5, %c0_6, %c0_7], %8 {strides = array<i32>} : memref<1x128x8xbf16, #tpu.memory_space<vmem>>, vector<1x128x8xbf16>,
    %c0_i32 = arith.constant 0 : i32
    %9 = arith.cmpi eq, %arg1, %c0_i32 : i32
    %10 = arith.extui %9 : i1 to i32
    %c0_i32_8 = arith.constant 0 : i32
    %11 = arith.cmpi ne, %10, %c0_i32_8 : i32
    scf.if %11 {
      %cst_21 = arith.constant 0.000000e+00 : f32
      %26 = vector.broadcast %cst_21 : f32 to vector<1x8xf32>
      %c0_22 = arith.constant 0 : index
      %c0_23 = arith.constant 0 : index
      %27 = vector.load %arg9[%c0_22, %c0_23] : memref<1x8xf32, #tpu.memory_space<vmem>>, vector<1x8xf32>
      tpu.vector_store %arg9[%c0_22, %c0_23], %26 {strides = array<i32>} : memref<1x8xf32, #tpu.memory_space<vmem>>, vector<1x8xf32>,
      %cst_24 = arith.constant 0.000000e+00 : f32
      %28 = vector.broadcast %cst_24 : f32 to vector<1x8xf32>
      %c0_25 = arith.constant 0 : index
      %c0_26 = arith.constant 0 : index
      %29 = vector.load %arg10[%c0_25, %c0_26] : memref<1x8xf32, #tpu.memory_space<vmem>>, vector<1x8xf32>
      tpu.vector_store %arg10[%c0_25, %c0_26], %28 {strides = array<i32>} : memref<1x8xf32, #tpu.memory_space<vmem>>, vector<1x8xf32>,
    } else {
    }
    %c0_9 = arith.constant 0 : index
    %c0_10 = arith.constant 0 : index
    %12 = vector.load %arg9[%c0_9, %c0_10] : memref<1x8xf32, #tpu.memory_space<vmem>>, vector<1x8xf32>
    %cst_11 = arith.constant dense<0.000000e+00> : vector<8xf32>
    %13 = vector.multi_reduction <add>, %4, %cst_11 [0] : vector<128x8xf32> to vector<8xf32>
    %14 = vector.shape_cast %13 : vector<8xf32> to vector<1x8xf32>
    %15 = arith.addf %12, %14 : vector<1x8xf32>
    %c0_12 = arith.constant 0 : index
    %c0_13 = arith.constant 0 : index
    %16 = vector.load %arg9[%c0_12, %c0_13] : memref<1x8xf32, #tpu.memory_space<vmem>>, vector<1x8xf32>
    tpu.vector_store %arg9[%c0_12, %c0_13], %15 {strides = array<i32>} : memref<1x8xf32, #tpu.memory_space<vmem>>, vector<1x8xf32>,
    %c0_14 = arith.constant 0 : index
    %c0_15 = arith.constant 0 : index
    %17 = vector.load %arg10[%c0_14, %c0_15] : memref<1x8xf32, #tpu.memory_space<vmem>>, vector<1x8xf32>
    %18 = arith.mulf %4, %4 : vector<128x8xf32>
    %cst_16 = arith.constant dense<0.000000e+00> : vector<8xf32>
    %19 = vector.multi_reduction <add>, %18, %cst_16 [0] : vector<128x8xf32> to vector<8xf32>
    %20 = vector.shape_cast %19 : vector<8xf32> to vector<1x8xf32>
    %21 = arith.addf %17, %20 : vector<1x8xf32>
    %c0_17 = arith.constant 0 : index
    %c0_18 = arith.constant 0 : index
    %22 = vector.load %arg10[%c0_17, %c0_18] : memref<1x8xf32, #tpu.memory_space<vmem>>, vector<1x8xf32>
    tpu.vector_store %arg10[%c0_17, %c0_18], %21 {strides = array<i32>} : memref<1x8xf32, #tpu.memory_space<vmem>>, vector<1x8xf32>,
    %c0_i32_19 = arith.constant 0 : i32
    %23 = arith.cmpi eq, %arg1, %c0_i32_19 : i32
    %24 = arith.extui %23 : i1 to i32
    %c0_i32_20 = arith.constant 0 : i32
    %25 = arith.cmpi ne, %24, %c0_i32_20 : i32
    scf.if %25 {
      %c0_21 = arith.constant 0 : index
      %c0_22 = arith.constant 0 : index
      %26 = vector.load %arg9[%c0_21, %c0_22] : memref<1x8xf32, #tpu.memory_space<vmem>>, vector<1x8xf32>
      %cst_23 = arith.constant 7.812500e-03 : f32
      %27 = vector.broadcast %cst_23 : f32 to vector<1x8xf32>
      %28 = arith.mulf %26, %27 : vector<1x8xf32>
      %c0_24 = arith.constant 0 : index
      %c0_25 = arith.constant 0 : index
      %29 = vector.load %arg10[%c0_24, %c0_25] : memref<1x8xf32, #tpu.memory_space<vmem>>, vector<1x8xf32>
      %cst_26 = arith.constant 7.812500e-03 : f32
      %30 = vector.broadcast %cst_26 : f32 to vector<1x8xf32>
      %31 = arith.mulf %29, %30 : vector<1x8xf32>
      %32 = arith.mulf %28, %28 : vector<1x8xf32>
      %33 = arith.subf %31, %32 : vector<1x8xf32>
      %cst_27 = arith.constant 0.000000e+00 : f32
      %34 = vector.broadcast %cst_27 : f32 to vector<1x8xf32>
      %35 = arith.maximumf %33, %34 : vector<1x8xf32>
      %c0_28 = arith.constant 0 : index
      %c0_29 = arith.constant 0 : index
      %c0_30 = arith.constant 0 : index
      %36 = vector.load %arg4[%c0_28, %c0_29, %c0_30] : memref<1x1x8xf32, #tpu.memory_space<vmem>>, vector<1x1x8xf32>
      %37 = vector.shape_cast %36 : vector<1x1x8xf32> to vector<1x8xf32>
      %cst_31 = arith.constant 9.99999974E-6 : f32
      %38 = vector.broadcast %cst_31 : f32 to vector<1x8xf32>
      %39 = arith.addf %35, %38 : vector<1x8xf32>
      %40 = math.rsqrt %39 : vector<1x8xf32>
      %41 = arith.mulf %37, %40 : vector<1x8xf32>
      %c0_32 = arith.constant 0 : index
      %c0_33 = arith.constant 0 : index
      %c0_34 = arith.constant 0 : index
      %42 = vector.load %arg7[%c0_32, %c0_33, %c0_34] : memref<1x1x8xf32, #tpu.memory_space<vmem>>, vector<1x1x8xf32>
      %43 = vector.shape_cast %42 : vector<1x1x8xf32> to vector<1x8xf32>
      %44 = vector.shape_cast %41 : vector<1x8xf32> to vector<1x1x8xf32>
      tpu.vector_store %arg7[%c0_32, %c0_33, %c0_34], %44 {strides = array<i32>} : memref<1x1x8xf32, #tpu.memory_space<vmem>>, vector<1x1x8xf32>,
      %c0_35 = arith.constant 0 : index
      %c0_36 = arith.constant 0 : index
      %c0_37 = arith.constant 0 : index
      %45 = vector.load %arg5[%c0_35, %c0_36, %c0_37] : memref<1x1x8xf32, #tpu.memory_space<vmem>>, vector<1x1x8xf32>
      %46 = vector.shape_cast %45 : vector<1x1x8xf32> to vector<1x8xf32>
      %47 = arith.mulf %28, %41 : vector<1x8xf32>
      %48 = arith.subf %46, %47 : vector<1x8xf32>
      %c0_38 = arith.constant 0 : index
      %c0_39 = arith.constant 0 : index
      %c0_40 = arith.constant 0 : index
      %49 = vector.load %arg8[%c0_38, %c0_39, %c0_40] : memref<1x1x8xf32, #tpu.memory_space<vmem>>, vector<1x1x8xf32>
      %50 = vector.shape_cast %49 : vector<1x1x8xf32> to vector<1x8xf32>
      %51 = vector.shape_cast %48 : vector<1x8xf32> to vector<1x1x8xf32>
      tpu.vector_store %arg8[%c0_38, %c0_39, %c0_40], %51 {strides = array<i32>} : memref<1x1x8xf32, #tpu.memory_space<vmem>>, vector<1x1x8xf32>,
    } else {
    }
    return
  }
  func.func @transform_0(%arg0: i32, %arg1: i32) -> (i32, i32, i32) {
    %c0_i32 = arith.constant 0 : i32
    %c0_i32_0 = arith.constant 0 : i32
    return %arg0, %arg1, %c0_i32 : i32, i32, i32
  }
  func.func @transform_1(%arg0: i32, %arg1: i32) -> (i32, i32, i32) {
    %c0_i32 = arith.constant 0 : i32
    %c0_i32_0 = arith.constant 0 : i32
    %c0_i32_1 = arith.constant 0 : i32
    return %arg0, %c0_i32, %c0_i32_0 : i32, i32, i32
  }
  func.func @transform_2(%arg0: i32, %arg1: i32) -> (i32, i32, i32) {
    %c0_i32 = arith.constant 0 : i32
    %c0_i32_0 = arith.constant 0 : i32
    %c0_i32_1 = arith.constant 0 : i32
    return %arg0, %c0_i32, %c0_i32_0 : i32, i32, i32
  }
  func.func @transform_3(%arg0: i32, %arg1: i32) -> (i32, i32, i32) {
    %c0_i32 = arith.constant 0 : i32
    %c0_i32_0 = arith.constant 0 : i32
    %c0_i32_1 = arith.constant 0 : i32
    return %arg0, %c0_i32, %c0_i32_0 : i32, i32, i32
  }
  func.func @transform_4(%arg0: i32, %arg1: i32) -> (i32, i32, i32) {
    %c0_i32 = arith.constant 0 : i32
    %c0_i32_0 = arith.constant 0 : i32
    return %arg0, %arg1, %c0_i32 : i32, i32, i32
  }
  func.func @transform_5(%arg0: i32, %arg1: i32) -> (i32, i32, i32) {
    %c0_i32 = arith.constant 0 : i32
    %c0_i32_0 = arith.constant 0 : i32
    %c0_i32_1 = arith.constant 0 : i32
    return %arg0, %c0_i32, %c0_i32_0 : i32, i32, i32
  }
  func.func @transform_6(%arg0: i32, %arg1: i32) -> (i32, i32, i32) {
    %c0_i32 = arith.constant 0 : i32
    %c0_i32_0 = arith.constant 0 : i32
    %c0_i32_1 = arith.constant 0 : i32
    return %arg0, %c0_i32, %c0_i32_0 : i32, i32, i32
  }
}

</mosaic_0001>

<llo_original>
// kernel: bottleneck_forward.6
$region0: #{bottleneck_forward.6}
  #allocation0 [shape = 'u32[]', space=smem, size = 0x4, offset = 0x4, fixed_abs, tag = 'smem constant byte address 0x4 - core index']
  #allocation1 [shape = 'u32[72,128]{1,0:T(1,128)}', space=vmem, size = 0x9000, scoped, tag = 'internal scratch']
  #allocation2 [shape = 'f32[1,32]{1,0:T(1,128)}', space=vmem, size = 0x200, scoped, tag = 'scratch operand']
  #allocation3 [shape = 'f32[1,32]{1,0:T(1,128)}', space=vmem, size = 0x200, scoped, tag = 'scratch operand']
  %s0 = inlined_call_operand.vmem [shape: bf16[2,128,8], index: 0, kind: input, shape index: {}]
  %s1 = inlined_call_operand.vmem [shape: f32[2,1,8], index: 1, kind: input, shape index: {}]
  %s2 = inlined_call_operand.vmem [shape: f32[2,1,8], index: 2, kind: input, shape index: {}]
  %s3 = inlined_call_operand.vmem [shape: bf16[2,8,32], index: 3, kind: input, shape index: {}]
  %s4 = inlined_call_operand.vmem [shape: f32[2,1,32], index: 4, kind: input, shape index: {}]
  %s5 = inlined_call_operand.vmem [shape: f32[2,1,32], index: 5, kind: input, shape index: {}]
  %s6 = inlined_call_operand.vmem [shape: f32[2,1,32], index: 6, kind: output, shape index: {0}]
  %s7 = inlined_call_operand.vmem [shape: f32[2,1,32], index: 7, kind: output, shape index: {1}]
  %8 = xla_tuple %s6, %s7
  %s9 = sld [smem:[#allocation0]]
  $region73: #{bottleneck_forward.6} parent=0
    _
  %s11 = ssub.s32 1, %s9
  %s12 = scalar_select 0, %s11, %s9
  loop: start=0, step=1, limit=4
  $region2: #{bottleneck_forward.6} parent=0 // loop_pre_header
    _
  $region3: #{bottleneck_forward.6} parent=0 // loop_header
    %s14 = sphi 0, %s18
    %p15 = scmp.ge.s32.totalorder %s14, 4
    %s21 = sphi 0, %s33
    %s22 = sphi 0, %s29
    %s23 = sphi 0, %s21
    %s24 = sphi 0, %s22
    %s25 = sphi 0, %s23
    %s26 = sphi 0, %s24
    %s38 = sphi 0, %s40
    %s41 = sphi 0, %s38
    %s42 = sphi 0, %s41
    %s58 = sphi 0, %s42
    %s64 = sphi 0, %s66
    %s67 = sphi 0, %s64
    %s68 = sphi 0, %s67
    %s84 = sphi 0, %s68
    %s90 = sphi 0, %s92
    %s93 = sphi 0, %s90
    %s94 = sphi 0, %s93
    %s110 = sphi 0, %s94
    %s116 = sphi 0, %s118
    %s119 = sphi 0, %s116
    %s120 = sphi 0, %s119
    %s136 = sphi 0, %s120
    %s142 = sphi 0, %s144
    %s145 = sphi 0, %s142
    %s146 = sphi 0, %s145
    %s162 = sphi 0, %s146
    %s168 = sphi 0, %s170
    %s171 = sphi 0, %s168
    %s172 = sphi 0, %s171
    %s188 = sphi 0, %s172
    %s194 = sphi 0, %s196
    %s197 = sphi 0, %s194
    %s198 = sphi 0, %s197
    %s214 = sphi 0, %s198
    %s220 = sphi 0, %s222
    %s223 = sphi 0, %s220
    %s224 = sphi 0, %s223
    %s240 = sphi 0, %s224
  $region4: #{bottleneck_forward.6} parent=0 // loop_header_branch
    %17 = sbr.rel (%p15) target = $region8
  $region5: #{bottleneck_forward.6} parent=0 // loop_body
    %s19 = ssub.s32 %s14, 1
    %s20 = ssub.s32 %s14, 2
    %s27 = sadd.s32 1, %s22
    %p28 = scmp.ge.s32.totalorder %s27, 1
    %s29 = scalar_select %p28, 0, %s27
    %s30 = sadd.s32 1, %s21
    %s31 = scalar_select %p28, %s30, %s21
    %p32 = scmp.ge.s32.totalorder %s31, 2
    %s33 = scalar_select %p32, 0, %s31
    %s34 = ssub.s32 %s21, %s33
    %s35 = ssub.s32 %s22, %s29
    %s36 = sor.u32 %s34, %s35
    %p37 = scmp.eq.s32.totalorder %s36, 0
    %s39 = sadd.s32 %s38, 1
    %s40 = scalar_select %p37, %s38, %s39
    %p43 = pneg %p37
    %p44 = scmp.eq.s32.totalorder %s14, 1
    %p45 = por %p43, %p44
    %p46 = scmp.ne.s32.totalorder %s38, %s41
    %p47 = scmp.eq.s32.totalorder %s14, 0
    %p48 = por %p46, %p47
    %p49 = scmp.ne.s32.totalorder %s38, %s41
    %p50 = scmp.eq.s32.totalorder %s19, 1
    %p51 = por %p49, %p50
    %p52 = scmp.ne.s32.totalorder %s41, %s42
    %p53 = scmp.eq.s32.totalorder %s19, 0
    %p54 = por %p52, %p53
    %p55 = scmp.ne.s32.totalorder %s41, %s42
    %p56 = scmp.eq.s32.totalorder %s20, 1
    %p57 = por %p55, %p56
    %p59 = scmp.ne.s32.totalorder %s42, %s58
    %p60 = scmp.eq.s32.totalorder %s20, 0
    %p61 = por %p59, %p60
    %s62 = ssub.s32 %s21, %s33
    %p63 = scmp.eq.s32.totalorder %s62, 0
    %s65 = sadd.s32 %s64, 1
    %s66 = scalar_select %p63, %s64, %s65
    %p69 = pneg %p63
    %p70 = scmp.eq.s32.totalorder %s14, 1
    %p71 = por %p69, %p70
    %p72 = scmp.ne.s32.totalorder %s64, %s67
    %p73 = scmp.eq.s32.totalorder %s14, 0
    %p74 = por %p72, %p73
    %p75 = scmp.ne.s32.totalorder %s64, %s67
    %p76 = scmp.eq.s32.totalorder %s19, 1
    %p77 = por %p75, %p76
    %p78 = scmp.ne.s32.totalorder %s67, %s68
    %p79 = scmp.eq.s32.totalorder %s19, 0
    %p80 = por %p78, %p79
    %p81 = scmp.ne.s32.totalorder %s67, %s68
    %p82 = scmp.eq.s32.totalorder %s20, 1
    %p83 = por %p81, %p82
    %p85 = scmp.ne.s32.totalorder %s68, %s84
    %p86 = scmp.eq.s32.totalorder %s20, 0
    %p87 = por %p85, %p86
    %s88 = ssub.s32 %s21, %s33
    %p89 = scmp.eq.s32.totalorder %s88, 0
    %s91 = sadd.s32 %s90, 1
    %s92 = scalar_select %p89, %s90, %s91
    %p95 = pneg %p89
    %p96 = scmp.eq.s32.totalorder %s14, 1
    %p97 = por %p95, %p96
    %p98 = scmp.ne.s32.totalorder %s90, %s93
    %p99 = scmp.eq.s32.totalorder %s14, 0
    %p100 = por %p98, %p99
    %p101 = scmp.ne.s32.totalorder %s90, %s93
    %p102 = scmp.eq.s32.totalorder %s19, 1
    %p103 = por %p101, %p102
    %p104 = scmp.ne.s32.totalorder %s93, %s94
    %p105 = scmp.eq.s32.totalorder %s19, 0
    %p106 = por %p104, %p105
    %p107 = scmp.ne.s32.totalorder %s93, %s94
    %p108 = scmp.eq.s32.totalorder %s20, 1
    %p109 = por %p107, %p108
    %p111 = scmp.ne.s32.totalorder %s94, %s110
    %p112 = scmp.eq.s32.totalorder %s20, 0
    %p113 = por %p111, %p112
    %s114 = ssub.s32 %s21, %s33
    %p115 = scmp.eq.s32.totalorder %s114, 0
    %s117 = sadd.s32 %s116, 1
    %s118 = scalar_select %p115, %s116, %s117
    %p121 = pneg %p115
    %p122 = scmp.eq.s32.totalorder %s14, 1
    %p123 = por %p121, %p122
    %p124 = scmp.ne.s32.totalorder %s116, %s119
    %p125 = scmp.eq.s32.totalorder %s14, 0
    %p126 = por %p124, %p125
    %p127 = scmp.ne.s32.totalorder %s116, %s119
    %p128 = scmp.eq.s32.totalorder %s19, 1
    %p129 = por %p127, %p128
    %p130 = scmp.ne.s32.totalorder %s119, %s120
    %p131 = scmp.eq.s32.totalorder %s19, 0
    %p132 = por %p130, %p131
    %p133 = scmp.ne.s32.totalorder %s119, %s120
    %p134 = scmp.eq.s32.totalorder %s20, 1
    %p135 = por %p133, %p134
    %p137 = scmp.ne.s32.totalorder %s120, %s136
    %p138 = scmp.eq.s32.totalorder %s20, 0
    %p139 = por %p137, %p138
    %s140 = ssub.s32 %s21, %s33
    %p141 = scmp.eq.s32.totalorder %s140, 0
    %s143 = sadd.s32 %s142, 1
    %s144 = scalar_select %p141, %s142, %s143
    %p147 = pneg %p141
    %p148 = scmp.eq.s32.totalorder %s14, 1
    %p149 = por %p147, %p148
    %p150 = scmp.ne.s32.totalorder %s142, %s145
    %p151 = scmp.eq.s32.totalorder %s14, 0
    %p152 = por %p150, %p151
    %p153 = scmp.ne.s32.totalorder %s142, %s145
    %p154 = scmp.eq.s32.totalorder %s19, 1
    %p155 = por %p153, %p154
    %p156 = scmp.ne.s32.totalorder %s145, %s146
    %p157 = scmp.eq.s32.totalorder %s19, 0
    %p158 = por %p156, %p157
    %p159 = scmp.ne.s32.totalorder %s145, %s146
    %p160 = scmp.eq.s32.totalorder %s20, 1
    %p161 = por %p159, %p160
    %p163 = scmp.ne.s32.totalorder %s146, %s162
    %p164 = scmp.eq.s32.totalorder %s20, 0
    %p165 = por %p163, %p164
    %s166 = ssub.s32 %s21, %s33
    %p167 = scmp.eq.s32.totalorder %s166, 0
    %s169 = sadd.s32 %s168, 1
    %s170 = scalar_select %p167, %s168, %s169
    %p173 = pneg %p167
    %p174 = scmp.eq.s32.totalorder %s14, 1
    %p175 = por %p173, %p174
    %p176 = scmp.ne.s32.totalorder %s168, %s171
    %p177 = scmp.eq.s32.totalorder %s14, 0
    %p178 = por %p176, %p177
    %p179 = scmp.ne.s32.totalorder %s168, %s171
    %p180 = scmp.eq.s32.totalorder %s19, 1
    %p181 = por %p179, %p180
    %p182 = scmp.ne.s32.totalorder %s171, %s172
    %p183 = scmp.eq.s32.totalorder %s19, 0
    %p184 = por %p182, %p183
    %p185 = scmp.ne.s32.totalorder %s171, %s172
    %p186 = scmp.eq.s32.totalorder %s20, 1
    %p187 = por %p185, %p186
    %p189 = scmp.ne.s32.totalorder %s172, %s188
    %p190 = scmp.eq.s32.totalorder %s20, 0
    %p191 = por %p189, %p190
    %s192 = ssub.s32 %s21, %s33
    %p193 = scmp.eq.s32.totalorder %s192, 0
    %s195 = sadd.s32 %s194, 1
    %s196 = scalar_select %p193, %s194, %s195
    %p199 = pneg %p193
    %p200 = scmp.eq.s32.totalorder %s14, 1
    %p201 = por %p199, %p200
    %p202 = scmp.ne.s32.totalorder %s194, %s197
    %p203 = scmp.eq.s32.totalorder %s14, 0
    %p204 = por %p202, %p203
    %p205 = scmp.ne.s32.totalorder %s194, %s197
    %p206 = scmp.eq.s32.totalorder %s19, 1
    %p207 = por %p205, %p206
    %p208 = scmp.ne.s32.totalorder %s197, %s198
    %p209 = scmp.eq.s32.totalorder %s19, 0
    %p210 = por %p208, %p209
    %p211 = scmp.ne.s32.totalorder %s197, %s198
    %p212 = scmp.eq.s32.totalorder %s20, 1
    %p213 = por %p211, %p212
    %p215 = scmp.ne.s32.totalorder %s198, %s214
    %p216 = scmp.eq.s32.totalorder %s20, 0
    %p217 = por %p215, %p216
    %s218 = ssub.s32 %s21, %s33
    %p219 = scmp.eq.s32.totalorder %s218, 0
    %s221 = sadd.s32 %s220, 1
    %s222 = scalar_select %p219, %s220, %s221
    %p225 = pneg %p219
    %p226 = scmp.eq.s32.totalorder %s14, 1
    %p227 = por %p225, %p226
    %p228 = scmp.ne.s32.totalorder %s220, %s223
    %p229 = scmp.eq.s32.totalorder %s14, 0
    %p230 = por %p228, %p229
    %p231 = scmp.ne.s32.totalorder %s220, %s223
    %p232 = scmp.eq.s32.totalorder %s19, 1
    %p233 = por %p231, %p232
    %p234 = scmp.ne.s32.totalorder %s223, %s224
    %p235 = scmp.eq.s32.totalorder %s19, 0
    %p236 = por %p234, %p235
    %p237 = scmp.ne.s32.totalorder %s223, %s224
    %p238 = scmp.eq.s32.totalorder %s20, 1
    %p239 = por %p237, %p238
    %p241 = scmp.ne.s32.totalorder %s224, %s240
    %p242 = scmp.eq.s32.totalorder %s20, 0
    %p243 = por %p241, %p242
    %p244 = scmp.le.s32.totalorder 1, %s14
    %p245 = scmp.lt.s32.totalorder %s14, 3
    %p246 = pnand %p244, %p245
    %p247 = pneg %p246
    // Predicated region
    $region9: #{bottleneck_forward.6} parent=5 // pred_check
      _
    $region10: #{bottleneck_forward.6} parent=5 // pred_check_branch
      %249 = sbr.rel (%p246) target = $region12
    $region11: #{bottleneck_forward.6} parent=5 // pred_region
      %s250 = ssub.s32 %s14, 1
    $region12: #{bottleneck_forward.6} parent=5 // pred_fallthru
      _
    %p251 = scmp.lt.s32.totalorder %s14, 2
    // Predicated region
    $region13: #{bottleneck_forward.6} parent=5 // pred_check
      %p252 = pneg %p251
    $region14: #{bottleneck_forward.6} parent=5 // pred_check_branch
      %254 = sbr.rel (%p252) target = $region16
    $region15: #{bottleneck_forward.6} parent=5 // pred_region
      // Predicated region
      $region17: #{bottleneck_forward.6} parent=15 // pred_check
        %p255 = pneg %p48
      $region18: #{bottleneck_forward.6} parent=15 // pred_check_branch
        %257 = sbr.rel (%p255) target = $region20
      $region19: #{bottleneck_forward.6} parent=15 // pred_region
        %s258 = smul.u32 16, %s22
        %p259 = scmp.lt.s32.totalorder %s21, 1
        %s260 = scalar_select %p259, %s21, 1
        %p261 = scmp.lt.s32.totalorder %s258, 15
        %s262 = scalar_select %p261, %s258, 15
        %s263 = smul.addr %s260, 16
        %s264 = sadd.s32 %s262, %s263
        %s265 = smul.addr %s264, 4
        %s266 = scalar_lea.vmem %s0, %s265
        %s267 = smul.u32 16, %s22
      $region20: #{bottleneck_forward.6} parent=15 // pred_fallthru
        _
      // Predicated region
      $region21: #{bottleneck_forward.6} parent=15 // pred_check
        %p268 = pneg %p74
      $region22: #{bottleneck_forward.6} parent=15 // pred_check_branch
        %270 = sbr.rel (%p268) target = $region24
      $region23: #{bottleneck_forward.6} parent=15 // pred_region
        %p271 = scmp.lt.s32.totalorder %s21, 1
        %s272 = scalar_select %p271, %s21, 1
        %s273 = scalar_lea.vmem %s1, %s272
      $region24: #{bottleneck_forward.6} parent=15 // pred_fallthru
        _
      // Predicated region
      $region25: #{bottleneck_forward.6} parent=15 // pred_check
        %p274 = pneg %p100
      $region26: #{bottleneck_forward.6} parent=15 // pred_check_branch
        %276 = sbr.rel (%p274) target = $region28
      $region27: #{bottleneck_forward.6} parent=15 // pred_region
        %p277 = scmp.lt.s32.totalorder %s21, 1
        %s278 = scalar_select %p277, %s21, 1
        %s279 = scalar_lea.vmem %s2, %s278
      $region28: #{bottleneck_forward.6} parent=15 // pred_fallthru
        _
      // Predicated region
      $region29: #{bottleneck_forward.6} parent=15 // pred_check
        %p280 = pneg %p126
      $region30: #{bottleneck_forward.6} parent=15 // pred_check_branch
        %282 = sbr.rel (%p280) target = $region32
      $region31: #{bottleneck_forward.6} parent=15 // pred_region
        %p283 = scmp.lt.s32.totalorder %s21, 1
        %s284 = scalar_select %p283, %s21, 1
        %s285 = smul.addr %s284, 4
        %s286 = scalar_lea.vmem %s3, %s285
      $region32: #{bottleneck_forward.6} parent=15 // pred_fallthru
        _
      // Predicated region
      $region33: #{bottleneck_forward.6} parent=15 // pred_check
        %p287 = pneg %p152
      $region34: #{bottleneck_forward.6} parent=15 // pred_check_branch
        %289 = sbr.rel (%p287) target = $region36
      $region35: #{bottleneck_forward.6} parent=15 // pred_region
        %p290 = scmp.lt.s32.totalorder %s21, 1
        %s291 = scalar_select %p290, %s21, 1
        %s292 = scalar_lea.vmem %s4, %s291
      $region36: #{bottleneck_forward.6} parent=15 // pred_fallthru
        _
      // Predicated region
      $region37: #{bottleneck_forward.6} parent=15 // pred_check
        %p293 = pneg %p178
      $region38: #{bottleneck_forward.6} parent=15 // pred_check_branch
        %295 = sbr.rel (%p293) target = $region40
      $region39: #{bottleneck_forward.6} parent=15 // pred_region
        %p296 = scmp.lt.s32.totalorder %s21, 1
        %s297 = scalar_select %p296, %s21, 1
        %s298 = scalar_lea.vmem %s5, %s297
      $region40: #{bottleneck_forward.6} parent=15 // pred_fallthru
        _
    $region16: #{bottleneck_forward.6} parent=5 // pred_fallthru
      _
    %p299 = scmp.le.s32.totalorder 1, %s14
    %p300 = scmp.lt.s32.totalorder %s14, 3
    %p301 = pnand %p299, %p300
    %p302 = pneg %p301
    // Predicated region
    $region41: #{bottleneck_forward.6} parent=5 // pred_check
      _
    $region42: #{bottleneck_forward.6} parent=5 // pred_check_branch
      %304 = sbr.rel (%p301) target = $region44
    $region43: #{bottleneck_forward.6} parent=5 // pred_region
      %s305 = ssub.s32 %s14, 1
      %s306 = smul.u32 16, %s24
      %p307 = scmp.lt.s32.totalorder %s23, 1
      %s308 = scalar_select %p307, %s23, 1
      %p309 = scmp.lt.s32.totalorder %s306, 15
      %s310 = scalar_select %p309, %s306, 15
      %s311 = smul.addr %s308, 16
      %s312 = sadd.s32 %s310, %s311
      %s313 = smul.addr %s312, 4
      %s314 = scalar_lea.vmem %s0, %s313
      %p315 = pneg %p54
      %p316 = pneg %p51
      %p317 = scmp.lt.s32.totalorder %s23, 1
      %s318 = scalar_select %p317, %s23, 1
      %s319 = scalar_lea.vmem %s1, %s318
      %p320 = pneg %p80
      %p321 = pneg %p77
      %p322 = scmp.lt.s32.totalorder %s23, 1
      %s323 = scalar_select %p322, %s23, 1
      %s324 = scalar_lea.vmem %s2, %s323
      %p325 = pneg %p106
      %p326 = pneg %p103
      %p327 = scmp.lt.s32.totalorder %s23, 1
      %s328 = scalar_select %p327, %s23, 1
      %s329 = smul.addr %s328, 4
      %s330 = scalar_lea.vmem %s3, %s329
      %p331 = pneg %p132
      %p332 = pneg %p129
      %p333 = scmp.lt.s32.totalorder %s23, 1
      %s334 = scalar_select %p333, %s23, 1
      %s335 = scalar_lea.vmem %s4, %s334
      %p336 = pneg %p158
      %p337 = pneg %p155
      %p338 = scmp.lt.s32.totalorder %s23, 1
      %s339 = scalar_select %p338, %s23, 1
      %s340 = scalar_lea.vmem %s5, %s339
      %p341 = pneg %p184
      %p342 = pneg %p181
      %p343 = pneg %p210
      %p344 = pneg %p207
      %p345 = scmp.lt.s32.totalorder %s23, 1
      %s346 = scalar_select %p345, %s23, 1
      %s347 = scalar_lea.vmem %s6, %s346
      %p348 = pneg %p236
      %p349 = pneg %p233
      %p350 = scmp.lt.s32.totalorder %s23, 1
      %s351 = scalar_select %p350, %s23, 1
      %s352 = scalar_lea.vmem %s7, %s351
      %s353 = smul.u32 16, %s24
      %p354 = scmp.lt.s32.totalorder %s23, 1
      %s355 = scalar_select %p354, %s23, 1
      %p356 = scmp.lt.s32.totalorder %s353, 15
      %s357 = scalar_select %p356, %s353, 15
      %s358 = smul.addr %s355, 16
      %s359 = sadd.s32 %s357, %s358
      %s360 = smul.addr %s359, 4
      %s361 = scalar_lea.vmem %s0, %s360
      %s362 = smul.u32 16, %s24
      %p363 = scmp.lt.s32.totalorder %s23, 1
      %s364 = scalar_select %p363, %s23, 1
      %s365 = scalar_lea.vmem %s1, %s364
      %p366 = scmp.lt.s32.totalorder %s23, 1
      %s367 = scalar_select %p366, %s23, 1
      %s368 = scalar_lea.vmem %s2, %s367
      %p369 = scmp.lt.s32.totalorder %s23, 1
      %s370 = scalar_select %p369, %s23, 1
      %s371 = smul.addr %s370, 4
      %s372 = scalar_lea.vmem %s3, %s371
      %p373 = scmp.lt.s32.totalorder %s23, 1
      %s374 = scalar_select %p373, %s23, 1
      %s375 = scalar_lea.vmem %s4, %s374
      %p376 = scmp.lt.s32.totalorder %s23, 1
      %s377 = scalar_select %p376, %s23, 1
      %s378 = scalar_lea.vmem %s5, %s377
      %p379 = scmp.lt.s32.totalorder %s23, 1
      %s380 = scalar_select %p379, %s23, 1
      %s381 = scalar_lea.vmem %s6, %s380
      %p382 = scmp.lt.s32.totalorder %s23, 1
      %s383 = scalar_select %p382, %s23, 1
      %s384 = scalar_lea.vmem %s7, %s383
      %v386 = vld [vmem:[%s361] sm:$0xf]
      %v387 = vld [vmem:[%s361 + $0x4] sm:$0xf]
      %v388 = vld [vmem:[%s361 + $0x8] sm:$0xf]
      %v389 = vld [vmem:[%s361 + $0xc] sm:$0xf]
      %v390 = vld [vmem:[%s361 + $0x10] sm:$0xf]
      %v391 = vld [vmem:[%s361 + $0x14] sm:$0xf]
      %v392 = vld [vmem:[%s361 + $0x18] sm:$0xf]
      %v393 = vld [vmem:[%s361 + $0x1c] sm:$0xf]
      %v394 = vld [vmem:[%s361 + $0x20] sm:$0xf]
      %v395 = vld [vmem:[%s361 + $0x24] sm:$0xf]
      %v396 = vld [vmem:[%s361 + $0x28] sm:$0xf]
      %v397 = vld [vmem:[%s361 + $0x2c] sm:$0xf]
      %v398 = vld [vmem:[%s361 + $0x30] sm:$0xf]
      %v399 = vld [vmem:[%s361 + $0x34] sm:$0xf]
      %v400 = vld [vmem:[%s361 + $0x38] sm:$0xf]
      %v401 = vld [vmem:[%s361 + $0x3c] sm:$0xf]
      %v402 = vunpack.c.l.bf16 %v386
      %v403 = vunpack.c.l.bf16 %v387
      %v404 = vunpack.c.l.bf16 %v388
      %v405 = vunpack.c.l.bf16 %v389
      %v406 = vunpack.c.l.bf16 %v390
      %v407 = vunpack.c.l.bf16 %v391
      %v408 = vunpack.c.l.bf16 %v392
      %v409 = vunpack.c.l.bf16 %v393
      %v410 = vunpack.c.l.bf16 %v394
      %v411 = vunpack.c.l.bf16 %v395
      %v412 = vunpack.c.l.bf16 %v396
      %v413 = vunpack.c.l.bf16 %v397
      %v414 = vunpack.c.l.bf16 %v398
      %v415 = vunpack.c.l.bf16 %v399
      %v416 = vunpack.c.l.bf16 %v400
      %v417 = vunpack.c.l.bf16 %v401
      %v418 = vld [vmem:[%s365] sm:$0x1]
      %v420 = vperm.slane %v418, 0
      %v422 = vmul.f32 %v402, %v420
      %v423 = vmul.f32 %v403, %v420
      %v424 = vmul.f32 %v404, %v420
      %v425 = vmul.f32 %v405, %v420
      %v426 = vmul.f32 %v406, %v420
      %v427 = vmul.f32 %v407, %v420
      %v428 = vmul.f32 %v408, %v420
      %v429 = vmul.f32 %v409, %v420
      %v430 = vmul.f32 %v410, %v420
      %v431 = vmul.f32 %v411, %v420
      %v432 = vmul.f32 %v412, %v420
      %v433 = vmul.f32 %v413, %v420
      %v434 = vmul.f32 %v414, %v420
      %v435 = vmul.f32 %v415, %v420
      %v436 = vmul.f32 %v416, %v420
      %v437 = vmul.f32 %v417, %v420
      %v438 = vld [vmem:[%s368] sm:$0x1]
      %v440 = vperm.slane %v438, 0
      %v442 = vadd.f32 %v422, %v440
      %v443 = vadd.f32 %v423, %v440
      %v444 = vadd.f32 %v424, %v440
      %v445 = vadd.f32 %v425, %v440
      %v446 = vadd.f32 %v426, %v440
      %v447 = vadd.f32 %v427, %v440
      %v448 = vadd.f32 %v428, %v440
      %v449 = vadd.f32 %v429, %v440
      %v450 = vadd.f32 %v430, %v440
      %v451 = vadd.f32 %v431, %v440
      %v452 = vadd.f32 %v432, %v440
      %v453 = vadd.f32 %v433, %v440
      %v454 = vadd.f32 %v434, %v440
      %v455 = vadd.f32 %v435, %v440
      %v456 = vadd.f32 %v436, %v440
      %v457 = vadd.f32 %v437, %v440
      %v458 = vmax.f32 %v442, 0.0
      %v459 = vmax.f32 %v443, 0.0
      %v460 = vmax.f32 %v444, 0.0
      %v461 = vmax.f32 %v445, 0.0
      %v462 = vmax.f32 %v446, 0.0
      %v463 = vmax.f32 %v447, 0.0
      %v464 = vmax.f32 %v448, 0.0
      %v465 = vmax.f32 %v449, 0.0
      %v466 = vmax.f32 %v450, 0.0
      %v467 = vmax.f32 %v451, 0.0
      %v468 = vmax.f32 %v452, 0.0
      %v469 = vmax.f32 %v453, 0.0
      %v470 = vmax.f32 %v454, 0.0
      %v471 = vmax.f32 %v455, 0.0
      %v472 = vmax.f32 %v456, 0.0
      %v473 = vmax.f32 %v457, 0.0
      %v474 = vpack.c.bf16 %v459, %v458
      %v475 = vpack.c.bf16 %v461, %v460
      %v476 = vpack.c.bf16 %v463, %v462
      %v477 = vpack.c.bf16 %v465, %v464
      %v478 = vpack.c.bf16 %v467, %v466
      %v479 = vpack.c.bf16 %v469, %v468
      %v480 = vpack.c.bf16 %v471, %v470
      %v481 = vpack.c.bf16 %v473, %v472
      %v482 = vld [vmem:[%s372] sm:$0xf]
      %vm483 = vcmask 64512
      %v485 = vsel %vm483, %v474, 0
      %v488 = vsel %vm483, %v475, 0
      %v491 = vsel %vm483, %v476, 0
      %v494 = vsel %vm483, %v477, 0
      %v497 = vsel %vm483, %v478, 0
      %v500 = vsel %vm483, %v479, 0
      %v503 = vsel %vm483, %v480, 0
      %v506 = vsel %vm483, %v481, 0
      %vm508 = vcmask 1043456
      %v510 = vsel %vm508, %v482, 0
      %512 = vmatpush.bf16.msra.mxu0 0
      %513 = vmatpush.bf16.msra.mxu0 0
      %514 = vmatpush.bf16.msra.mxu0 0
      %515 = vmatpush.bf16.msra.mxu0 0
      %516 = vmatpush.bf16.msra.mxu0 0
      %517 = vmatpush.bf16.msra.mxu0 0
      %518 = vmatpush.bf16.msra.mxu0 0
      %519 = vmatpush.bf16.msra.mxu0 %v510
      %520 = vmatmul.bf16.gmra.mxu0 %v485
      %v521 = vpop.f32.mrf.mxu0
      %v522 = vadd.f32 0.0, %v521
      %v523 = vpop.f32.mrf.mxu0
      %v524 = vadd.f32 0.0, %v523
      %525 = vmatmul.bf16.gmra.mxu0 %v488
      %v526 = vpop.f32.mrf.mxu0
      %v527 = vadd.f32 0.0, %v526
      %v528 = vpop.f32.mrf.mxu0
      %v529 = vadd.f32 0.0, %v528
      %530 = vmatmul.bf16.gmra.mxu0 %v491
      %v531 = vpop.f32.mrf.mxu0
      %v532 = vadd.f32 0.0, %v531
      %v533 = vpop.f32.mrf.mxu0
      %v534 = vadd.f32 0.0, %v533
      %535 = vmatmul.bf16.gmra.mxu0 %v494
      %v536 = vpop.f32.mrf.mxu0
      %v537 = vadd.f32 0.0, %v536
      %v538 = vpop.f32.mrf.mxu0
      %v539 = vadd.f32 0.0, %v538
      %540 = vmatmul.bf16.gmra.mxu0 %v497
      %v541 = vpop.f32.mrf.mxu0
      %v542 = vadd.f32 0.0, %v541
      %v543 = vpop.f32.mrf.mxu0
      %v544 = vadd.f32 0.0, %v543
      %545 = vmatmul.bf16.gmra.mxu0 %v500
      %v546 = vpop.f32.mrf.mxu0
      %v547 = vadd.f32 0.0, %v546
      %v548 = vpop.f32.mrf.mxu0
      %v549 = vadd.f32 0.0, %v548
      %550 = vmatmul.bf16.gmra.mxu0 %v503
      %v551 = vpop.f32.mrf.mxu0
      %v552 = vadd.f32 0.0, %v551
      %v553 = vpop.f32.mrf.mxu0
      %v554 = vadd.f32 0.0, %v553
      %555 = vmatmul.bf16.gmra.mxu0 %v506
      %v556 = vpop.f32.mrf.mxu0
      %v557 = vadd.f32 0.0, %v556
      %v558 = vpop.f32.mrf.mxu0
      %v559 = vadd.f32 0.0, %v558
      %560 = vdwg.mxu0
      %p561 = scmp.eq.s32.totalorder %s24, 0
      // Predicated region
      $region45: #{bottleneck_forward.6} parent=43 // pred_check
        %p562 = pneg %p561
      $region46: #{bottleneck_forward.6} parent=43 // pred_check_branch
        %564 = sbr.rel (%p562) target = $region48
      $region47: #{bottleneck_forward.6} parent=43 // pred_region
        %vm565 = vcmask 253952
        %566 = vst.msk [vmem:[#allocation2] sm:$0x1] %vm565, 0.0
        %567 = vst.msk [vmem:[#allocation3] sm:$0x1] %vm565, 0.0
      $region48: #{bottleneck_forward.6} parent=43 // pred_fallthru
        _
      %v568 = vld [vmem:[#allocation2] sm:$0x1]
      %vm569 = vcmask 261120
      %v570 = vsel %vm569, %v522, 0.0
      %v571 = vsel %vm569, %v524, 0.0
      %v572 = vadd.f32 %v570, %v571
      %v573 = vsel %vm569, %v527, 0.0
      %v574 = vadd.f32 %v572, %v573
      %v575 = vsel %vm569, %v529, 0.0
      %v576 = vadd.f32 %v574, %v575
      %v577 = vsel %vm569, %v532, 0.0
      %v578 = vadd.f32 %v576, %v577
      %v579 = vsel %vm569, %v534, 0.0
      %v580 = vadd.f32 %v578, %v579
      %v581 = vsel %vm569, %v537, 0.0
      %v582 = vadd.f32 %v580, %v581
      %v583 = vsel %vm569, %v539, 0.0
      %v584 = vadd.f32 %v582, %v583
      %v585 = vsel %vm569, %v542, 0.0
      %v586 = vadd.f32 %v584, %v585
      %v587 = vsel %vm569, %v544, 0.0
      %v588 = vadd.f32 %v586, %v587
      %v589 = vsel %vm569, %v547, 0.0
      %v590 = vadd.f32 %v588, %v589
      %v591 = vsel %vm569, %v549, 0.0
      %v592 = vadd.f32 %v590, %v591
      %v593 = vsel %vm569, %v552, 0.0
      %v594 = vadd.f32 %v592, %v593
      %v595 = vsel %vm569, %v554, 0.0
      %v596 = vadd.f32 %v594, %v595
      %v597 = vsel %vm569, %v557, 0.0
      %v598 = vadd.f32 %v596, %v597
      %v599 = vsel %vm569, %v559, 0.0
      %v600 = vadd.f32 %v598, %v599
      %v601 = vrot.slane %v600, 4
      %v602 = vadd.f32 %v600, %v601
      %v603 = vrot.slane %v602, 2
      %v604 = vadd.f32 %v602, %v603
      %v605 = vrot.slane %v604, 1
      %v606 = vadd.f32 %v604, %v605
      %v607 = vadd.f32 %v568, %v606
      %vm608 = vcmask 253952
      %609 = vst.msk [vmem:[#allocation2] sm:$0x1] %vm608, %v607
      %v610 = vld [vmem:[#allocation3] sm:$0x1]
      %v611 = vmul.f32 %v522, %v522
      %v612 = vmul.f32 %v524, %v524
      %v613 = vmul.f32 %v527, %v527
      %v614 = vmul.f32 %v529, %v529
      %v615 = vmul.f32 %v532, %v532
      %v616 = vmul.f32 %v534, %v534
      %v617 = vmul.f32 %v537, %v537
      %v618 = vmul.f32 %v539, %v539
      %v619 = vmul.f32 %v542, %v542
      %v620 = vmul.f32 %v544, %v544
      %v621 = vmul.f32 %v547, %v547
      %v622 = vmul.f32 %v549, %v549
      %v623 = vmul.f32 %v552, %v552
      %v624 = vmul.f32 %v554, %v554
      %v625 = vmul.f32 %v557, %v557
      %v626 = vmul.f32 %v559, %v559
      %v627 = vsel %vm569, %v611, 0.0
      %v628 = vsel %vm569, %v612, 0.0
      %v629 = vadd.f32 %v627, %v628
      %v630 = vsel %vm569, %v613, 0.0
      %v631 = vadd.f32 %v629, %v630
      %v632 = vsel %vm569, %v614, 0.0
      %v633 = vadd.f32 %v631, %v632
      %v634 = vsel %vm569, %v615, 0.0
      %v635 = vadd.f32 %v633, %v634
      %v636 = vsel %vm569, %v616, 0.0
      %v637 = vadd.f32 %v635, %v636
      %v638 = vsel %vm569, %v617, 0.0
      %v639 = vadd.f32 %v637, %v638
      %v640 = vsel %vm569, %v618, 0.0
      %v641 = vadd.f32 %v639, %v640
      %v642 = vsel %vm569, %v619, 0.0
      %v643 = vadd.f32 %v641, %v642
      %v644 = vsel %vm569, %v620, 0.0
      %v645 = vadd.f32 %v643, %v644
      %v646 = vsel %vm569, %v621, 0.0
      %v647 = vadd.f32 %v645, %v646
      %v648 = vsel %vm569, %v622, 0.0
      %v649 = vadd.f32 %v647, %v648
      %v650 = vsel %vm569, %v623, 0.0
      %v651 = vadd.f32 %v649, %v650
      %v652 = vsel %vm569, %v624, 0.0
      %v653 = vadd.f32 %v651, %v652
      %v654 = vsel %vm569, %v625, 0.0
      %v655 = vadd.f32 %v653, %v654
      %v656 = vsel %vm569, %v626, 0.0
      %v657 = vadd.f32 %v655, %v656
      %v658 = vrot.slane %v657, 4
      %v659 = vadd.f32 %v657, %v658
      %v660 = vrot.slane %v659, 2
      %v661 = vadd.f32 %v659, %v660
      %v662 = vrot.slane %v661, 1
      %v663 = vadd.f32 %v661, %v662
      %v664 = vadd.f32 %v610, %v663
      %665 = vst.msk [vmem:[#allocation3] sm:$0x1] %vm608, %v664
      // Predicated region
      $region49: #{bottleneck_forward.6} parent=43 // pred_check
        %p666 = pneg %p561
      $region50: #{bottleneck_forward.6} parent=43 // pred_check_branch
        %668 = sbr.rel (%p666) target = $region52
      $region51: #{bottleneck_forward.6} parent=43 // pred_region
        %v669 = vld [vmem:[#allocation2] sm:$0x1]
        %v670 = vmul.f32 %v669, 0.0078125
        %v671 = vld [vmem:[#allocation3] sm:$0x1]
        %v672 = vmul.f32 %v671, 0.0078125
        %v673 = vmul.f32 %v670, %v670
        %v674 = vsub.f32 %v672, %v673
        %v675 = vmax.f32 %v674, 0.0
        %v676 = vld [vmem:[%s375] sm:$0x1]
        %v677 = vadd.f32 %v675, 1e-05
        %v678 = vrsqrt.pop %v677
        %v679 = vmul.f32 %v678, %v677
        %v680 = vmul.f32 %v679, %v678
        %v681 = vmul.f32 0.5, %v680
        %v682 = vsub.f32 1.5, %v681
        %v683 = vmul.f32 %v678, %v682
        %vm684 = vweird.f32 %v677
        %vm685 = vweird.f32 %v678
        %vm686 = vmor %vm684, %vm685
        %v687 = vsel %vm686, %v678, %v683
        %v688 = vmul.f32 %v676, %v687
        %689 = vst.msk [vmem:[%s381] sm:$0x1] %vm608, %v688
        %v690 = vld [vmem:[%s378] sm:$0x1]
        %v691 = vmul.f32 %v670, %v688
        %v692 = vsub.f32 %v690, %v691
        %693 = vst.msk [vmem:[%s384] sm:$0x1] %vm608, %v692
      $region52: #{bottleneck_forward.6} parent=43 // pred_fallthru
        _
      %p694 = scmp.lt.s32.totalorder %s23, 1
      %s695 = scalar_select %p694, %s23, 1
      %s696 = scalar_lea.vmem %s6, %s695
      %p697 = scmp.lt.s32.totalorder %s23, 1
      %s698 = scalar_select %p697, %s23, 1
      %s699 = scalar_lea.vmem %s7, %s698
      // Predicated region
      $region53: #{bottleneck_forward.6} parent=43 // pred_check
        %p700 = pneg %p207
      $region54: #{bottleneck_forward.6} parent=43 // pred_check_branch
        %702 = sbr.rel (%p700) target = $region56
      $region55: #{bottleneck_forward.6} parent=43 // pred_region
        _
      $region56: #{bottleneck_forward.6} parent=43 // pred_fallthru
        _
      // Predicated region
      $region57: #{bottleneck_forward.6} parent=43 // pred_check
        %p703 = pneg %p233
      $region58: #{bottleneck_forward.6} parent=43 // pred_check_branch
        %705 = sbr.rel (%p703) target = $region60
      $region59: #{bottleneck_forward.6} parent=43 // pred_region
        _
      $region60: #{bottleneck_forward.6} parent=43 // pred_fallthru
        _
    $region44: #{bottleneck_forward.6} parent=5 // pred_fallthru
      _
    %p706 = scmp.le.s32.totalorder 2, %s14
    // Predicated region
    $region61: #{bottleneck_forward.6} parent=5 // pred_check
      %p707 = pneg %p706
    $region62: #{bottleneck_forward.6} parent=5 // pred_check_branch
      %709 = sbr.rel (%p707) target = $region64
    $region63: #{bottleneck_forward.6} parent=5 // pred_region
      %s710 = ssub.s32 %s14, 2
      // Predicated region
      $region65: #{bottleneck_forward.6} parent=63 // pred_check
        %p711 = pneg %p213
      $region66: #{bottleneck_forward.6} parent=63 // pred_check_branch
        %713 = sbr.rel (%p711) target = $region68
      $region67: #{bottleneck_forward.6} parent=63 // pred_region
        %p714 = scmp.lt.s32.totalorder %s25, 1
        %s715 = scalar_select %p714, %s25, 1
        %s716 = scalar_lea.vmem %s6, %s715
      $region68: #{bottleneck_forward.6} parent=63 // pred_fallthru
        _
      // Predicated region
      $region69: #{bottleneck_forward.6} parent=63 // pred_check
        %p717 = pneg %p239
      $region70: #{bottleneck_forward.6} parent=63 // pred_check_branch
        %719 = sbr.rel (%p717) target = $region72
      $region71: #{bottleneck_forward.6} parent=63 // pred_region
        %p720 = scmp.lt.s32.totalorder %s25, 1
        %s721 = scalar_select %p720, %s25, 1
        %s722 = scalar_lea.vmem %s7, %s721
      $region72: #{bottleneck_forward.6} parent=63 // pred_fallthru
        _
    $region64: #{bottleneck_forward.6} parent=5 // pred_fallthru
      _
  $region6: #{bottleneck_forward.6} parent=0 // loop_footer
    %s18 = sadd.s32 1, %s14
  $region7: #{bottleneck_forward.6} parent=0 // loop_footer_branch
    %13 = sbr.rel target = $region3
  $region8: #{bottleneck_forward.6} parent=0 // loop_exit
    _

// kernel: bottleneck_forward.7
$region0: #{bottleneck_forward.7}
  #allocation0 [shape = 'u32[]', space=smem, size = 0x4, offset = 0x4, fixed_abs, tag = 'smem constant byte address 0x4 - core index']
  #allocation1 [shape = 'u32[72,128]{1,0:T(1,128)}', space=vmem, size = 0x9000, scoped, tag = 'internal scratch']
  %s0 = inlined_call_operand.vmem [shape: bf16[2,128,8], index: 0, kind: input, shape index: {}]
  %s1 = inlined_call_operand.vmem [shape: f32[2,1,8], index: 1, kind: input, shape index: {}]
  %s2 = inlined_call_operand.vmem [shape: f32[2,1,8], index: 2, kind: input, shape index: {}]
  %s3 = inlined_call_operand.vmem [shape: bf16[2,8,32], index: 3, kind: input, shape index: {}]
  %s4 = inlined_call_operand.vmem [shape: f32[2,1,32], index: 4, kind: input, shape index: {}]
  %s5 = inlined_call_operand.vmem [shape: f32[2,1,32], index: 5, kind: input, shape index: {}]
  %s6 = inlined_call_operand.vmem [shape: bf16[2,128,32], index: 6, kind: input, shape index: {}]
  %s7 = inlined_call_operand.vmem [shape: f32[2,128,32], index: 7, kind: output, shape index: {}]
  %s8 = sld [smem:[#allocation0]]
  $region61: #{bottleneck_forward.7} parent=0
    _
  %s10 = ssub.s32 1, %s8
  %s11 = scalar_select 0, %s10, %s8
  loop: start=0, step=1, limit=4
  $region2: #{bottleneck_forward.7} parent=0 // loop_pre_header
    _
  $region3: #{bottleneck_forward.7} parent=0 // loop_header
    %s13 = sphi 0, %s17
    %p14 = scmp.ge.s32.totalorder %s13, 4
    %s20 = sphi 0, %s32
    %s21 = sphi 0, %s28
    %s22 = sphi 0, %s20
    %s23 = sphi 0, %s21
    %s24 = sphi 0, %s22
    %s25 = sphi 0, %s23
    %s37 = sphi 0, %s39
    %s40 = sphi 0, %s37
    %s41 = sphi 0, %s40
    %s57 = sphi 0, %s41
    %s63 = sphi 0, %s65
    %s66 = sphi 0, %s63
    %s67 = sphi 0, %s66
    %s83 = sphi 0, %s67
    %s89 = sphi 0, %s91
    %s92 = sphi 0, %s89
    %s93 = sphi 0, %s92
    %s109 = sphi 0, %s93
    %s115 = sphi 0, %s117
    %s118 = sphi 0, %s115
    %s119 = sphi 0, %s118
    %s135 = sphi 0, %s119
    %s141 = sphi 0, %s143
    %s144 = sphi 0, %s141
    %s145 = sphi 0, %s144
    %s161 = sphi 0, %s145
    %s167 = sphi 0, %s169
    %s170 = sphi 0, %s167
    %s171 = sphi 0, %s170
    %s187 = sphi 0, %s171
    %s195 = sphi 0, %s197
    %s198 = sphi 0, %s195
    %s199 = sphi 0, %s198
    %s215 = sphi 0, %s199
    %s223 = sphi 0, %s225
    %s226 = sphi 0, %s223
    %s227 = sphi 0, %s226
    %s243 = sphi 0, %s227
  $region4: #{bottleneck_forward.7} parent=0 // loop_header_branch
    %16 = sbr.rel (%p14) target = $region8
  $region5: #{bottleneck_forward.7} parent=0 // loop_body
    %s18 = ssub.s32 %s13, 1
    %s19 = ssub.s32 %s13, 2
    %s26 = sadd.s32 1, %s21
    %p27 = scmp.ge.s32.totalorder %s26, 1
    %s28 = scalar_select %p27, 0, %s26
    %s29 = sadd.s32 1, %s20
    %s30 = scalar_select %p27, %s29, %s20
    %p31 = scmp.ge.s32.totalorder %s30, 2
    %s32 = scalar_select %p31, 0, %s30
    %s33 = ssub.s32 %s20, %s32
    %s34 = ssub.s32 %s21, %s28
    %s35 = sor.u32 %s33, %s34
    %p36 = scmp.eq.s32.totalorder %s35, 0
    %s38 = sadd.s32 %s37, 1
    %s39 = scalar_select %p36, %s37, %s38
    %p42 = pneg %p36
    %p43 = scmp.eq.s32.totalorder %s13, 1
    %p44 = por %p42, %p43
    %p45 = scmp.ne.s32.totalorder %s37, %s40
    %p46 = scmp.eq.s32.totalorder %s13, 0
    %p47 = por %p45, %p46
    %p48 = scmp.ne.s32.totalorder %s37, %s40
    %p49 = scmp.eq.s32.totalorder %s18, 1
    %p50 = por %p48, %p49
    %p51 = scmp.ne.s32.totalorder %s40, %s41
    %p52 = scmp.eq.s32.totalorder %s18, 0
    %p53 = por %p51, %p52
    %p54 = scmp.ne.s32.totalorder %s40, %s41
    %p55 = scmp.eq.s32.totalorder %s19, 1
    %p56 = por %p54, %p55
    %p58 = scmp.ne.s32.totalorder %s41, %s57
    %p59 = scmp.eq.s32.totalorder %s19, 0
    %p60 = por %p58, %p59
    %s61 = ssub.s32 %s20, %s32
    %p62 = scmp.eq.s32.totalorder %s61, 0
    %s64 = sadd.s32 %s63, 1
    %s65 = scalar_select %p62, %s63, %s64
    %p68 = pneg %p62
    %p69 = scmp.eq.s32.totalorder %s13, 1
    %p70 = por %p68, %p69
    %p71 = scmp.ne.s32.totalorder %s63, %s66
    %p72 = scmp.eq.s32.totalorder %s13, 0
    %p73 = por %p71, %p72
    %p74 = scmp.ne.s32.totalorder %s63, %s66
    %p75 = scmp.eq.s32.totalorder %s18, 1
    %p76 = por %p74, %p75
    %p77 = scmp.ne.s32.totalorder %s66, %s67
    %p78 = scmp.eq.s32.totalorder %s18, 0
    %p79 = por %p77, %p78
    %p80 = scmp.ne.s32.totalorder %s66, %s67
    %p81 = scmp.eq.s32.totalorder %s19, 1
    %p82 = por %p80, %p81
    %p84 = scmp.ne.s32.totalorder %s67, %s83
    %p85 = scmp.eq.s32.totalorder %s19, 0
    %p86 = por %p84, %p85
    %s87 = ssub.s32 %s20, %s32
    %p88 = scmp.eq.s32.totalorder %s87, 0
    %s90 = sadd.s32 %s89, 1
    %s91 = scalar_select %p88, %s89, %s90
    %p94 = pneg %p88
    %p95 = scmp.eq.s32.totalorder %s13, 1
    %p96 = por %p94, %p95
    %p97 = scmp.ne.s32.totalorder %s89, %s92
    %p98 = scmp.eq.s32.totalorder %s13, 0
    %p99 = por %p97, %p98
    %p100 = scmp.ne.s32.totalorder %s89, %s92
    %p101 = scmp.eq.s32.totalorder %s18, 1
    %p102 = por %p100, %p101
    %p103 = scmp.ne.s32.totalorder %s92, %s93
    %p104 = scmp.eq.s32.totalorder %s18, 0
    %p105 = por %p103, %p104
    %p106 = scmp.ne.s32.totalorder %s92, %s93
    %p107 = scmp.eq.s32.totalorder %s19, 1
    %p108 = por %p106, %p107
    %p110 = scmp.ne.s32.totalorder %s93, %s109
    %p111 = scmp.eq.s32.totalorder %s19, 0
    %p112 = por %p110, %p111
    %s113 = ssub.s32 %s20, %s32
    %p114 = scmp.eq.s32.totalorder %s113, 0
    %s116 = sadd.s32 %s115, 1
    %s117 = scalar_select %p114, %s115, %s116
    %p120 = pneg %p114
    %p121 = scmp.eq.s32.totalorder %s13, 1
    %p122 = por %p120, %p121
    %p123 = scmp.ne.s32.totalorder %s115, %s118
    %p124 = scmp.eq.s32.totalorder %s13, 0
    %p125 = por %p123, %p124
    %p126 = scmp.ne.s32.totalorder %s115, %s118
    %p127 = scmp.eq.s32.totalorder %s18, 1
    %p128 = por %p126, %p127
    %p129 = scmp.ne.s32.totalorder %s118, %s119
    %p130 = scmp.eq.s32.totalorder %s18, 0
    %p131 = por %p129, %p130
    %p132 = scmp.ne.s32.totalorder %s118, %s119
    %p133 = scmp.eq.s32.totalorder %s19, 1
    %p134 = por %p132, %p133
    %p136 = scmp.ne.s32.totalorder %s119, %s135
    %p137 = scmp.eq.s32.totalorder %s19, 0
    %p138 = por %p136, %p137
    %s139 = ssub.s32 %s20, %s32
    %p140 = scmp.eq.s32.totalorder %s139, 0
    %s142 = sadd.s32 %s141, 1
    %s143 = scalar_select %p140, %s141, %s142
    %p146 = pneg %p140
    %p147 = scmp.eq.s32.totalorder %s13, 1
    %p148 = por %p146, %p147
    %p149 = scmp.ne.s32.totalorder %s141, %s144
    %p150 = scmp.eq.s32.totalorder %s13, 0
    %p151 = por %p149, %p150
    %p152 = scmp.ne.s32.totalorder %s141, %s144
    %p153 = scmp.eq.s32.totalorder %s18, 1
    %p154 = por %p152, %p153
    %p155 = scmp.ne.s32.totalorder %s144, %s145
    %p156 = scmp.eq.s32.totalorder %s18, 0
    %p157 = por %p155, %p156
    %p158 = scmp.ne.s32.totalorder %s144, %s145
    %p159 = scmp.eq.s32.totalorder %s19, 1
    %p160 = por %p158, %p159
    %p162 = scmp.ne.s32.totalorder %s145, %s161
    %p163 = scmp.eq.s32.totalorder %s19, 0
    %p164 = por %p162, %p163
    %s165 = ssub.s32 %s20, %s32
    %p166 = scmp.eq.s32.totalorder %s165, 0
    %s168 = sadd.s32 %s167, 1
    %s169 = scalar_select %p166, %s167, %s168
    %p172 = pneg %p166
    %p173 = scmp.eq.s32.totalorder %s13, 1
    %p174 = por %p172, %p173
    %p175 = scmp.ne.s32.totalorder %s167, %s170
    %p176 = scmp.eq.s32.totalorder %s13, 0
    %p177 = por %p175, %p176
    %p178 = scmp.ne.s32.totalorder %s167, %s170
    %p179 = scmp.eq.s32.totalorder %s18, 1
    %p180 = por %p178, %p179
    %p181 = scmp.ne.s32.totalorder %s170, %s171
    %p182 = scmp.eq.s32.totalorder %s18, 0
    %p183 = por %p181, %p182
    %p184 = scmp.ne.s32.totalorder %s170, %s171
    %p185 = scmp.eq.s32.totalorder %s19, 1
    %p186 = por %p184, %p185
    %p188 = scmp.ne.s32.totalorder %s171, %s187
    %p189 = scmp.eq.s32.totalorder %s19, 0
    %p190 = por %p188, %p189
    %s191 = ssub.s32 %s20, %s32
    %s192 = ssub.s32 %s21, %s28
    %s193 = sor.u32 %s191, %s192
    %p194 = scmp.eq.s32.totalorder %s193, 0
    %s196 = sadd.s32 %s195, 1
    %s197 = scalar_select %p194, %s195, %s196
    %p200 = pneg %p194
    %p201 = scmp.eq.s32.totalorder %s13, 1
    %p202 = por %p200, %p201
    %p203 = scmp.ne.s32.totalorder %s195, %s198
    %p204 = scmp.eq.s32.totalorder %s13, 0
    %p205 = por %p203, %p204
    %p206 = scmp.ne.s32.totalorder %s195, %s198
    %p207 = scmp.eq.s32.totalorder %s18, 1
    %p208 = por %p206, %p207
    %p209 = scmp.ne.s32.totalorder %s198, %s199
    %p210 = scmp.eq.s32.totalorder %s18, 0
    %p211 = por %p209, %p210
    %p212 = scmp.ne.s32.totalorder %s198, %s199
    %p213 = scmp.eq.s32.totalorder %s19, 1
    %p214 = por %p212, %p213
    %p216 = scmp.ne.s32.totalorder %s199, %s215
    %p217 = scmp.eq.s32.totalorder %s19, 0
    %p218 = por %p216, %p217
    %s219 = ssub.s32 %s20, %s32
    %s220 = ssub.s32 %s21, %s28
    %s221 = sor.u32 %s219, %s220
    %p222 = scmp.eq.s32.totalorder %s221, 0
    %s224 = sadd.s32 %s223, 1
    %s225 = scalar_select %p222, %s223, %s224
    %p228 = pneg %p222
    %p229 = scmp.eq.s32.totalorder %s13, 1
    %p230 = por %p228, %p229
    %p231 = scmp.ne.s32.totalorder %s223, %s226
    %p232 = scmp.eq.s32.totalorder %s13, 0
    %p233 = por %p231, %p232
    %p234 = scmp.ne.s32.totalorder %s223, %s226
    %p235 = scmp.eq.s32.totalorder %s18, 1
    %p236 = por %p234, %p235
    %p237 = scmp.ne.s32.totalorder %s226, %s227
    %p238 = scmp.eq.s32.totalorder %s18, 0
    %p239 = por %p237, %p238
    %p240 = scmp.ne.s32.totalorder %s226, %s227
    %p241 = scmp.eq.s32.totalorder %s19, 1
    %p242 = por %p240, %p241
    %p244 = scmp.ne.s32.totalorder %s227, %s243
    %p245 = scmp.eq.s32.totalorder %s19, 0
    %p246 = por %p244, %p245
    %p247 = scmp.le.s32.totalorder 1, %s13
    %p248 = scmp.lt.s32.totalorder %s13, 3
    %p249 = pnand %p247, %p248
    %p250 = pneg %p249
    // Predicated region
    $region9: #{bottleneck_forward.7} parent=5 // pred_check
      _
    $region10: #{bottleneck_forward.7} parent=5 // pred_check_branch
      %252 = sbr.rel (%p249) target = $region12
    $region11: #{bottleneck_forward.7} parent=5 // pred_region
      %s253 = ssub.s32 %s13, 1
    $region12: #{bottleneck_forward.7} parent=5 // pred_fallthru
      _
    %p254 = scmp.lt.s32.totalorder %s13, 2
    // Predicated region
    $region13: #{bottleneck_forward.7} parent=5 // pred_check
      %p255 = pneg %p254
    $region14: #{bottleneck_forward.7} parent=5 // pred_check_branch
      %257 = sbr.rel (%p255) target = $region16
    $region15: #{bottleneck_forward.7} parent=5 // pred_region
      // Predicated region
      $region17: #{bottleneck_forward.7} parent=15 // pred_check
        %p258 = pneg %p47
      $region18: #{bottleneck_forward.7} parent=15 // pred_check_branch
        %260 = sbr.rel (%p258) target = $region20
      $region19: #{bottleneck_forward.7} parent=15 // pred_region
        %s261 = smul.u32 16, %s21
        %p262 = scmp.lt.s32.totalorder %s20, 1
        %s263 = scalar_select %p262, %s20, 1
        %p264 = scmp.lt.s32.totalorder %s261, 15
        %s265 = scalar_select %p264, %s261, 15
        %s266 = smul.addr %s263, 16
        %s267 = sadd.s32 %s265, %s266
        %s268 = smul.addr %s267, 4
        %s269 = scalar_lea.vmem %s0, %s268
        %s270 = smul.u32 16, %s21
      $region20: #{bottleneck_forward.7} parent=15 // pred_fallthru
        _
      // Predicated region
      $region21: #{bottleneck_forward.7} parent=15 // pred_check
        %p271 = pneg %p73
      $region22: #{bottleneck_forward.7} parent=15 // pred_check_branch
        %273 = sbr.rel (%p271) target = $region24
      $region23: #{bottleneck_forward.7} parent=15 // pred_region
        %p274 = scmp.lt.s32.totalorder %s20, 1
        %s275 = scalar_select %p274, %s20, 1
        %s276 = scalar_lea.vmem %s1, %s275
      $region24: #{bottleneck_forward.7} parent=15 // pred_fallthru
        _
      // Predicated region
      $region25: #{bottleneck_forward.7} parent=15 // pred_check
        %p277 = pneg %p99
      $region26: #{bottleneck_forward.7} parent=15 // pred_check_branch
        %279 = sbr.rel (%p277) target = $region28
      $region27: #{bottleneck_forward.7} parent=15 // pred_region
        %p280 = scmp.lt.s32.totalorder %s20, 1
        %s281 = scalar_select %p280, %s20, 1
        %s282 = scalar_lea.vmem %s2, %s281
      $region28: #{bottleneck_forward.7} parent=15 // pred_fallthru
        _
      // Predicated region
      $region29: #{bottleneck_forward.7} parent=15 // pred_check
        %p283 = pneg %p125
      $region30: #{bottleneck_forward.7} parent=15 // pred_check_branch
        %285 = sbr.rel (%p283) target = $region32
      $region31: #{bottleneck_forward.7} parent=15 // pred_region
        %p286 = scmp.lt.s32.totalorder %s20, 1
        %s287 = scalar_select %p286, %s20, 1
        %s288 = smul.addr %s287, 4
        %s289 = scalar_lea.vmem %s3, %s288
      $region32: #{bottleneck_forward.7} parent=15 // pred_fallthru
        _
      // Predicated region
      $region33: #{bottleneck_forward.7} parent=15 // pred_check
        %p290 = pneg %p151
      $region34: #{bottleneck_forward.7} parent=15 // pred_check_branch
        %292 = sbr.rel (%p290) target = $region36
      $region35: #{bottleneck_forward.7} parent=15 // pred_region
        %p293 = scmp.lt.s32.totalorder %s20, 1
        %s294 = scalar_select %p293, %s20, 1
        %s295 = scalar_lea.vmem %s4, %s294
      $region36: #{bottleneck_forward.7} parent=15 // pred_fallthru
        _
      // Predicated region
      $region37: #{bottleneck_forward.7} parent=15 // pred_check
        %p296 = pneg %p177
      $region38: #{bottleneck_forward.7} parent=15 // pred_check_branch
        %298 = sbr.rel (%p296) target = $region40
      $region39: #{bottleneck_forward.7} parent=15 // pred_region
        %p299 = scmp.lt.s32.totalorder %s20, 1
        %s300 = scalar_select %p299, %s20, 1
        %s301 = scalar_lea.vmem %s5, %s300
      $region40: #{bottleneck_forward.7} parent=15 // pred_fallthru
        _
      // Predicated region
      $region41: #{bottleneck_forward.7} parent=15 // pred_check
        %p302 = pneg %p205
      $region42: #{bottleneck_forward.7} parent=15 // pred_check_branch
        %304 = sbr.rel (%p302) target = $region44
      $region43: #{bottleneck_forward.7} parent=15 // pred_region
        %s305 = smul.u32 16, %s21
        %p306 = scmp.lt.s32.totalorder %s20, 1
        %s307 = scalar_select %p306, %s20, 1
        %p308 = scmp.lt.s32.totalorder %s305, 15
        %s309 = scalar_select %p308, %s305, 15
        %s310 = smul.addr %s307, 16
        %s311 = sadd.s32 %s309, %s310
        %s312 = smul.addr %s311, 4
        %s313 = scalar_lea.vmem %s6, %s312
        %s314 = smul.u32 16, %s21
      $region44: #{bottleneck_forward.7} parent=15 // pred_fallthru
        _
    $region16: #{bottleneck_forward.7} parent=5 // pred_fallthru
      _
    %p315 = scmp.le.s32.totalorder 1, %s13
    %p316 = scmp.lt.s32.totalorder %s13, 3
    %p317 = pnand %p315, %p316
    %p318 = pneg %p317
    // Predicated region
    $region45: #{bottleneck_forward.7} parent=5 // pred_check
      _
    $region46: #{bottleneck_forward.7} parent=5 // pred_check_branch
      %320 = sbr.rel (%p317) target = $region48
    $region47: #{bottleneck_forward.7} parent=5 // pred_region
      %s321 = ssub.s32 %s13, 1
      %s322 = smul.u32 16, %s23
      %p323 = scmp.lt.s32.totalorder %s22, 1
      %s324 = scalar_select %p323, %s22, 1
      %p325 = scmp.lt.s32.totalorder %s322, 15
      %s326 = scalar_select %p325, %s322, 15
      %s327 = smul.addr %s324, 16
      %s328 = sadd.s32 %s326, %s327
      %s329 = smul.addr %s328, 4
      %s330 = scalar_lea.vmem %s0, %s329
      %p331 = pneg %p53
      %p332 = pneg %p50
      %p333 = scmp.lt.s32.totalorder %s22, 1
      %s334 = scalar_select %p333, %s22, 1
      %s335 = scalar_lea.vmem %s1, %s334
      %p336 = pneg %p79
      %p337 = pneg %p76
      %p338 = scmp.lt.s32.totalorder %s22, 1
      %s339 = scalar_select %p338, %s22, 1
      %s340 = scalar_lea.vmem %s2, %s339
      %p341 = pneg %p105
      %p342 = pneg %p102
      %p343 = scmp.lt.s32.totalorder %s22, 1
      %s344 = scalar_select %p343, %s22, 1
      %s345 = smul.addr %s344, 4
      %s346 = scalar_lea.vmem %s3, %s345
      %p347 = pneg %p131
      %p348 = pneg %p128
      %p349 = scmp.lt.s32.totalorder %s22, 1
      %s350 = scalar_select %p349, %s22, 1
      %s351 = scalar_lea.vmem %s4, %s350
      %p352 = pneg %p157
      %p353 = pneg %p154
      %p354 = scmp.lt.s32.totalorder %s22, 1
      %s355 = scalar_select %p354, %s22, 1
      %s356 = scalar_lea.vmem %s5, %s355
      %p357 = pneg %p183
      %p358 = pneg %p180
      %s359 = smul.u32 16, %s23
      %p360 = scmp.lt.s32.totalorder %s22, 1
      %s361 = scalar_select %p360, %s22, 1
      %p362 = scmp.lt.s32.totalorder %s359, 15
      %s363 = scalar_select %p362, %s359, 15
      %s364 = smul.addr %s361, 16
      %s365 = sadd.s32 %s363, %s364
      %s366 = smul.addr %s365, 4
      %s367 = scalar_lea.vmem %s6, %s366
      %p368 = pneg %p211
      %p369 = pneg %p208
      %p370 = pneg %p239
      %p371 = pneg %p236
      %s372 = smul.u32 16, %s23
      %p373 = scmp.lt.s32.totalorder %s22, 1
      %s374 = scalar_select %p373, %s22, 1
      %p375 = scmp.lt.s32.totalorder %s372, 15
      %s376 = scalar_select %p375, %s372, 15
      %s377 = smul.addr %s374, 16
      %s378 = sadd.s32 %s376, %s377
      %s379 = smul.addr %s378, 8
      %s380 = scalar_lea.vmem %s7, %s379
      %s381 = smul.u32 16, %s23
      %p382 = scmp.lt.s32.totalorder %s22, 1
      %s383 = scalar_select %p382, %s22, 1
      %p384 = scmp.lt.s32.totalorder %s381, 15
      %s385 = scalar_select %p384, %s381, 15
      %s386 = smul.addr %s383, 16
      %s387 = sadd.s32 %s385, %s386
      %s388 = smul.addr %s387, 4
      %s389 = scalar_lea.vmem %s0, %s388
      %s390 = smul.u32 16, %s23
      %p391 = scmp.lt.s32.totalorder %s22, 1
      %s392 = scalar_select %p391, %s22, 1
      %s393 = scalar_lea.vmem %s1, %s392
      %p394 = scmp.lt.s32.totalorder %s22, 1
      %s395 = scalar_select %p394, %s22, 1
      %s396 = scalar_lea.vmem %s2, %s395
      %p397 = scmp.lt.s32.totalorder %s22, 1
      %s398 = scalar_select %p397, %s22, 1
      %s399 = smul.addr %s398, 4
      %s400 = scalar_lea.vmem %s3, %s399
      %p401 = scmp.lt.s32.totalorder %s22, 1
      %s402 = scalar_select %p401, %s22, 1
      %s403 = scalar_lea.vmem %s4, %s402
      %p404 = scmp.lt.s32.totalorder %s22, 1
      %s405 = scalar_select %p404, %s22, 1
      %s406 = scalar_lea.vmem %s5, %s405
      %s407 = smul.u32 16, %s23
      %p408 = scmp.lt.s32.totalorder %s22, 1
      %s409 = scalar_select %p408, %s22, 1
      %p410 = scmp.lt.s32.totalorder %s407, 15
      %s411 = scalar_select %p410, %s407, 15
      %s412 = smul.addr %s409, 16
      %s413 = sadd.s32 %s411, %s412
      %s414 = smul.addr %s413, 4
      %s415 = scalar_lea.vmem %s6, %s414
      %s416 = smul.u32 16, %s23
      %s417 = smul.u32 16, %s23
      %p418 = scmp.lt.s32.totalorder %s22, 1
      %s419 = scalar_select %p418, %s22, 1
      %p420 = scmp.lt.s32.totalorder %s417, 15
      %s421 = scalar_select %p420, %s417, 15
      %s422 = smul.addr %s419, 16
      %s423 = sadd.s32 %s421, %s422
      %s424 = smul.addr %s423, 8
      %s425 = scalar_lea.vmem %s7, %s424
      %s426 = smul.u32 16, %s23
      %v428 = vld [vmem:[%s389] sm:$0xf]
      %v429 = vld [vmem:[%s389 + $0x4] sm:$0xf]
      %v430 = vld [vmem:[%s389 + $0x8] sm:$0xf]
      %v431 = vld [vmem:[%s389 + $0xc] sm:$0xf]
      %v432 = vld [vmem:[%s389 + $0x10] sm:$0xf]
      %v433 = vld [vmem:[%s389 + $0x14] sm:$0xf]
      %v434 = vld [vmem:[%s389 + $0x18] sm:$0xf]
      %v435 = vld [vmem:[%s389 + $0x1c] sm:$0xf]
      %v436 = vld [vmem:[%s389 + $0x20] sm:$0xf]
      %v437 = vld [vmem:[%s389 + $0x24] sm:$0xf]
      %v438 = vld [vmem:[%s389 + $0x28] sm:$0xf]
      %v439 = vld [vmem:[%s389 + $0x2c] sm:$0xf]
      %v440 = vld [vmem:[%s389 + $0x30] sm:$0xf]
      %v441 = vld [vmem:[%s389 + $0x34] sm:$0xf]
      %v442 = vld [vmem:[%s389 + $0x38] sm:$0xf]
      %v443 = vld [vmem:[%s389 + $0x3c] sm:$0xf]
      %v444 = vunpack.c.l.bf16 %v428
      %v445 = vunpack.c.l.bf16 %v429
      %v446 = vunpack.c.l.bf16 %v430
      %v447 = vunpack.c.l.bf16 %v431
      %v448 = vunpack.c.l.bf16 %v432
      %v449 = vunpack.c.l.bf16 %v433
      %v450 = vunpack.c.l.bf16 %v434
      %v451 = vunpack.c.l.bf16 %v435
      %v452 = vunpack.c.l.bf16 %v436
      %v453 = vunpack.c.l.bf16 %v437
      %v454 = vunpack.c.l.bf16 %v438
      %v455 = vunpack.c.l.bf16 %v439
      %v456 = vunpack.c.l.bf16 %v440
      %v457 = vunpack.c.l.bf16 %v441
      %v458 = vunpack.c.l.bf16 %v442
      %v459 = vunpack.c.l.bf16 %v443
      %v460 = vld [vmem:[%s393] sm:$0x1]
      %v462 = vperm.slane %v460, 0
      %v464 = vmul.f32 %v444, %v462
      %v465 = vmul.f32 %v445, %v462
      %v466 = vmul.f32 %v446, %v462
      %v467 = vmul.f32 %v447, %v462
      %v468 = vmul.f32 %v448, %v462
      %v469 = vmul.f32 %v449, %v462
      %v470 = vmul.f32 %v450, %v462
      %v471 = vmul.f32 %v451, %v462
      %v472 = vmul.f32 %v452, %v462
      %v473 = vmul.f32 %v453, %v462
      %v474 = vmul.f32 %v454, %v462
      %v475 = vmul.f32 %v455, %v462
      %v476 = vmul.f32 %v456, %v462
      %v477 = vmul.f32 %v457, %v462
      %v478 = vmul.f32 %v458, %v462
      %v479 = vmul.f32 %v459, %v462
      %v480 = vld [vmem:[%s396] sm:$0x1]
      %v482 = vperm.slane %v480, 0
      %v484 = vadd.f32 %v464, %v482
      %v485 = vadd.f32 %v465, %v482
      %v486 = vadd.f32 %v466, %v482
      %v487 = vadd.f32 %v467, %v482
      %v488 = vadd.f32 %v468, %v482
      %v489 = vadd.f32 %v469, %v482
      %v490 = vadd.f32 %v470, %v482
      %v491 = vadd.f32 %v471, %v482
      %v492 = vadd.f32 %v472, %v482
      %v493 = vadd.f32 %v473, %v482
      %v494 = vadd.f32 %v474, %v482
      %v495 = vadd.f32 %v475, %v482
      %v496 = vadd.f32 %v476, %v482
      %v497 = vadd.f32 %v477, %v482
      %v498 = vadd.f32 %v478, %v482
      %v499 = vadd.f32 %v479, %v482
      %v500 = vmax.f32 %v484, 0.0
      %v501 = vmax.f32 %v485, 0.0
      %v502 = vmax.f32 %v486, 0.0
      %v503 = vmax.f32 %v487, 0.0
      %v504 = vmax.f32 %v488, 0.0
      %v505 = vmax.f32 %v489, 0.0
      %v506 = vmax.f32 %v490, 0.0
      %v507 = vmax.f32 %v491, 0.0
      %v508 = vmax.f32 %v492, 0.0
      %v509 = vmax.f32 %v493, 0.0
      %v510 = vmax.f32 %v494, 0.0
      %v511 = vmax.f32 %v495, 0.0
      %v512 = vmax.f32 %v496, 0.0
      %v513 = vmax.f32 %v497, 0.0
      %v514 = vmax.f32 %v498, 0.0
      %v515 = vmax.f32 %v499, 0.0
      %v516 = vpack.c.bf16 %v501, %v500
      %v517 = vpack.c.bf16 %v503, %v502
      %v518 = vpack.c.bf16 %v505, %v504
      %v519 = vpack.c.bf16 %v507, %v506
      %v520 = vpack.c.bf16 %v509, %v508
      %v521 = vpack.c.bf16 %v511, %v510
      %v522 = vpack.c.bf16 %v513, %v512
      %v523 = vpack.c.bf16 %v515, %v514
      %v524 = vld [vmem:[%s400] sm:$0xf]
      %vm525 = vcmask 64512
      %v527 = vsel %vm525, %v516, 0
      %v530 = vsel %vm525, %v517, 0
      %v533 = vsel %vm525, %v518, 0
      %v536 = vsel %vm525, %v519, 0
      %v539 = vsel %vm525, %v520, 0
      %v542 = vsel %vm525, %v521, 0
      %v545 = vsel %vm525, %v522, 0
      %v548 = vsel %vm525, %v523, 0
      %vm550 = vcmask 1043456
      %v552 = vsel %vm550, %v524, 0
      %554 = vmatpush.bf16.msra.mxu0 0
      %555 = vmatpush.bf16.msra.mxu0 0
      %556 = vmatpush.bf16.msra.mxu0 0
      %557 = vmatpush.bf16.msra.mxu0 0
      %558 = vmatpush.bf16.msra.mxu0 0
      %559 = vmatpush.bf16.msra.mxu0 0
      %560 = vmatpush.bf16.msra.mxu0 0
      %561 = vmatpush.bf16.msra.mxu0 %v552
      %562 = vmatmul.bf16.gmra.mxu0 %v527
      %v563 = vpop.f32.mrf.mxu0
      %v564 = vadd.f32 0.0, %v563
      %v565 = vpop.f32.mrf.mxu0
      %v566 = vadd.f32 0.0, %v565
      %567 = vmatmul.bf16.gmra.mxu0 %v530
      %v568 = vpop.f32.mrf.mxu0
      %v569 = vadd.f32 0.0, %v568
      %v570 = vpop.f32.mrf.mxu0
      %v571 = vadd.f32 0.0, %v570
      %572 = vmatmul.bf16.gmra.mxu0 %v533
      %v573 = vpop.f32.mrf.mxu0
      %v574 = vadd.f32 0.0, %v573
      %v575 = vpop.f32.mrf.mxu0
      %v576 = vadd.f32 0.0, %v575
      %577 = vmatmul.bf16.gmra.mxu0 %v536
      %v578 = vpop.f32.mrf.mxu0
      %v579 = vadd.f32 0.0, %v578
      %v580 = vpop.f32.mrf.mxu0
      %v581 = vadd.f32 0.0, %v580
      %582 = vmatmul.bf16.gmra.mxu0 %v539
      %v583 = vpop.f32.mrf.mxu0
      %v584 = vadd.f32 0.0, %v583
      %v585 = vpop.f32.mrf.mxu0
      %v586 = vadd.f32 0.0, %v585
      %587 = vmatmul.bf16.gmra.mxu0 %v542
      %v588 = vpop.f32.mrf.mxu0
      %v589 = vadd.f32 0.0, %v588
      %v590 = vpop.f32.mrf.mxu0
      %v591 = vadd.f32 0.0, %v590
      %592 = vmatmul.bf16.gmra.mxu0 %v545
      %v593 = vpop.f32.mrf.mxu0
      %v594 = vadd.f32 0.0, %v593
      %v595 = vpop.f32.mrf.mxu0
      %v596 = vadd.f32 0.0, %v595
      %597 = vmatmul.bf16.gmra.mxu0 %v548
      %v598 = vpop.f32.mrf.mxu0
      %v599 = vadd.f32 0.0, %v598
      %v600 = vpop.f32.mrf.mxu0
      %v601 = vadd.f32 0.0, %v600
      %602 = vdwg.mxu0
      %v603 = vld [vmem:[%s403] sm:$0x1]
      %v605 = vperm.slane %v603, 0
      %v607 = vmul.f32 %v564, %v605
      %v608 = vmul.f32 %v566, %v605
      %v609 = vmul.f32 %v569, %v605
      %v610 = vmul.f32 %v571, %v605
      %v611 = vmul.f32 %v574, %v605
      %v612 = vmul.f32 %v576, %v605
      %v613 = vmul.f32 %v579, %v605
      %v614 = vmul.f32 %v581, %v605
      %v615 = vmul.f32 %v584, %v605
      %v616 = vmul.f32 %v586, %v605
      %v617 = vmul.f32 %v589, %v605
      %v618 = vmul.f32 %v591, %v605
      %v619 = vmul.f32 %v594, %v605
      %v620 = vmul.f32 %v596, %v605
      %v621 = vmul.f32 %v599, %v605
      %v622 = vmul.f32 %v601, %v605
      %v623 = vld [vmem:[%s406] sm:$0x1]
      %v625 = vperm.slane %v623, 0
      %v627 = vadd.f32 %v607, %v625
      %v628 = vadd.f32 %v608, %v625
      %v629 = vadd.f32 %v609, %v625
      %v630 = vadd.f32 %v610, %v625
      %v631 = vadd.f32 %v611, %v625
      %v632 = vadd.f32 %v612, %v625
      %v633 = vadd.f32 %v613, %v625
      %v634 = vadd.f32 %v614, %v625
      %v635 = vadd.f32 %v615, %v625
      %v636 = vadd.f32 %v616, %v625
      %v637 = vadd.f32 %v617, %v625
      %v638 = vadd.f32 %v618, %v625
      %v639 = vadd.f32 %v619, %v625
      %v640 = vadd.f32 %v620, %v625
      %v641 = vadd.f32 %v621, %v625
      %v642 = vadd.f32 %v622, %v625
      %v643 = vld [vmem:[%s415] sm:$0xf]
      %v644 = vld [vmem:[%s415 + $0x4] sm:$0xf]
      %v645 = vld [vmem:[%s415 + $0x8] sm:$0xf]
      %v646 = vld [vmem:[%s415 + $0xc] sm:$0xf]
      %v647 = vld [vmem:[%s415 + $0x10] sm:$0xf]
      %v648 = vld [vmem:[%s415 + $0x14] sm:$0xf]
      %v649 = vld [vmem:[%s415 + $0x18] sm:$0xf]
      %v650 = vld [vmem:[%s415 + $0x1c] sm:$0xf]
      %v651 = vld [vmem:[%s415 + $0x20] sm:$0xf]
      %v652 = vld [vmem:[%s415 + $0x24] sm:$0xf]
      %v653 = vld [vmem:[%s415 + $0x28] sm:$0xf]
      %v654 = vld [vmem:[%s415 + $0x2c] sm:$0xf]
      %v655 = vld [vmem:[%s415 + $0x30] sm:$0xf]
      %v656 = vld [vmem:[%s415 + $0x34] sm:$0xf]
      %v657 = vld [vmem:[%s415 + $0x38] sm:$0xf]
      %v658 = vld [vmem:[%s415 + $0x3c] sm:$0xf]
      %v659 = vunpack.c.l.bf16 %v643
      %v660 = vunpack.c.l.bf16 %v644
      %v661 = vunpack.c.l.bf16 %v645
      %v662 = vunpack.c.l.bf16 %v646
      %v663 = vunpack.c.l.bf16 %v647
      %v664 = vunpack.c.l.bf16 %v648
      %v665 = vunpack.c.l.bf16 %v649
      %v666 = vunpack.c.l.bf16 %v650
      %v667 = vunpack.c.l.bf16 %v651
      %v668 = vunpack.c.l.bf16 %v652
      %v669 = vunpack.c.l.bf16 %v653
      %v670 = vunpack.c.l.bf16 %v654
      %v671 = vunpack.c.l.bf16 %v655
      %v672 = vunpack.c.l.bf16 %v656
      %v673 = vunpack.c.l.bf16 %v657
      %v674 = vunpack.c.l.bf16 %v658
      %v675 = vadd.f32 %v627, %v659
      %v676 = vadd.f32 %v628, %v660
      %v677 = vadd.f32 %v629, %v661
      %v678 = vadd.f32 %v630, %v662
      %v679 = vadd.f32 %v631, %v663
      %v680 = vadd.f32 %v632, %v664
      %v681 = vadd.f32 %v633, %v665
      %v682 = vadd.f32 %v634, %v666
      %v683 = vadd.f32 %v635, %v667
      %v684 = vadd.f32 %v636, %v668
      %v685 = vadd.f32 %v637, %v669
      %v686 = vadd.f32 %v638, %v670
      %v687 = vadd.f32 %v639, %v671
      %v688 = vadd.f32 %v640, %v672
      %v689 = vadd.f32 %v641, %v673
      %v690 = vadd.f32 %v642, %v674
      %v691 = vmax.f32 %v675, 0.0
      %v692 = vmax.f32 %v676, 0.0
      %v693 = vmax.f32 %v677, 0.0
      %v694 = vmax.f32 %v678, 0.0
      %v695 = vmax.f32 %v679, 0.0
      %v696 = vmax.f32 %v680, 0.0
      %v697 = vmax.f32 %v681, 0.0
      %v698 = vmax.f32 %v682, 0.0
      %v699 = vmax.f32 %v683, 0.0
      %v700 = vmax.f32 %v684, 0.0
      %v701 = vmax.f32 %v685, 0.0
      %v702 = vmax.f32 %v686, 0.0
      %v703 = vmax.f32 %v687, 0.0
      %v704 = vmax.f32 %v688, 0.0
      %v705 = vmax.f32 %v689, 0.0
      %v706 = vmax.f32 %v690, 0.0
      %vm707 = vcmask 261120
      %708 = vst.msk [vmem:[%s425] sm:$0xff] %vm707, %v691
      %709 = vst.msk [vmem:[%s425 + $0x8] sm:$0xff] %vm707, %v692
      %710 = vst.msk [vmem:[%s425 + $0x10] sm:$0xff] %vm707, %v693
      %711 = vst.msk [vmem:[%s425 + $0x18] sm:$0xff] %vm707, %v694
      %712 = vst.msk [vmem:[%s425 + $0x20] sm:$0xff] %vm707, %v695
      %713 = vst.msk [vmem:[%s425 + $0x28] sm:$0xff] %vm707, %v696
      %714 = vst.msk [vmem:[%s425 + $0x30] sm:$0xff] %vm707, %v697
      %715 = vst.msk [vmem:[%s425 + $0x38] sm:$0xff] %vm707, %v698
      %716 = vst.msk [vmem:[%s425 + $0x40] sm:$0xff] %vm707, %v699
      %717 = vst.msk [vmem:[%s425 + $0x48] sm:$0xff] %vm707, %v700
      %718 = vst.msk [vmem:[%s425 + $0x50] sm:$0xff] %vm707, %v701
      %719 = vst.msk [vmem:[%s425 + $0x58] sm:$0xff] %vm707, %v702
      %720 = vst.msk [vmem:[%s425 + $0x60] sm:$0xff] %vm707, %v703
      %721 = vst.msk [vmem:[%s425 + $0x68] sm:$0xff] %vm707, %v704
      %722 = vst.msk [vmem:[%s425 + $0x70] sm:$0xff] %vm707, %v705
      %723 = vst.msk [vmem:[%s425 + $0x78] sm:$0xff] %vm707, %v706
      %s724 = smul.u32 16, %s23
      %p725 = scmp.lt.s32.totalorder %s22, 1
      %s726 = scalar_select %p725, %s22, 1
      %p727 = scmp.lt.s32.totalorder %s724, 15
      %s728 = scalar_select %p727, %s724, 15
      %s729 = smul.addr %s726, 16
      %s730 = sadd.s32 %s728, %s729
      %s731 = smul.addr %s730, 8
      %s732 = scalar_lea.vmem %s7, %s731
      // Predicated region
      $region49: #{bottleneck_forward.7} parent=47 // pred_check
        %p733 = pneg %p236
      $region50: #{bottleneck_forward.7} parent=47 // pred_check_branch
        %735 = sbr.rel (%p733) target = $region52
      $region51: #{bottleneck_forward.7} parent=47 // pred_region
        %s736 = smul.u32 16, %s23
      $region52: #{bottleneck_forward.7} parent=47 // pred_fallthru
        _
    $region48: #{bottleneck_forward.7} parent=5 // pred_fallthru
      _
    %p737 = scmp.le.s32.totalorder 2, %s13
    // Predicated region
    $region53: #{bottleneck_forward.7} parent=5 // pred_check
      %p738 = pneg %p737
    $region54: #{bottleneck_forward.7} parent=5 // pred_check_branch
      %740 = sbr.rel (%p738) target = $region56
    $region55: #{bottleneck_forward.7} parent=5 // pred_region
      %s741 = ssub.s32 %s13, 2
      // Predicated region
      $region57: #{bottleneck_forward.7} parent=55 // pred_check
        %p742 = pneg %p242
      $region58: #{bottleneck_forward.7} parent=55 // pred_check_branch
        %744 = sbr.rel (%p742) target = $region60
      $region59: #{bottleneck_forward.7} parent=55 // pred_region
        %s745 = smul.u32 16, %s25
        %p746 = scmp.lt.s32.totalorder %s24, 1
        %s747 = scalar_select %p746, %s24, 1
        %p748 = scmp.lt.s32.totalorder %s745, 15
        %s749 = scalar_select %p748, %s745, 15
        %s750 = smul.addr %s747, 16
        %s751 = sadd.s32 %s749, %s750
        %s752 = smul.addr %s751, 8
        %s753 = scalar_lea.vmem %s7, %s752
      $region60: #{bottleneck_forward.7} parent=55 // pred_fallthru
        _
    $region56: #{bottleneck_forward.7} parent=5 // pred_fallthru
      _
  $region6: #{bottleneck_forward.7} parent=0 // loop_footer
    %s17 = sadd.s32 1, %s13
  $region7: #{bottleneck_forward.7} parent=0 // loop_footer_branch
    %12 = sbr.rel target = $region3
  $region8: #{bottleneck_forward.7} parent=0 // loop_exit
    _

// kernel: bottleneck_forward.4
$region0: #{bottleneck_forward.4}
  #allocation0 [shape = 'u32[]', space=smem, size = 0x4, offset = 0x4, fixed_abs, tag = 'smem constant byte address 0x4 - core index']
  #allocation1 [shape = 'u32[72,128]{1,0:T(1,128)}', space=vmem, size = 0x9000, scoped, tag = 'internal scratch']
  #allocation2 [shape = 'f32[1,8]{1,0:T(1,128)}', space=vmem, size = 0x200, scoped, tag = 'scratch operand']
  #allocation3 [shape = 'f32[1,8]{1,0:T(1,128)}', space=vmem, size = 0x200, scoped, tag = 'scratch operand']
  %s0 = inlined_call_operand.vmem [shape: bf16[2,128,32], index: 0, kind: input, shape index: {}]
  %s1 = inlined_call_operand.vmem [shape: bf16[2,32,8], index: 1, kind: input, shape index: {}]
  %s2 = inlined_call_operand.vmem [shape: f32[2,1,8], index: 2, kind: input, shape index: {}]
  %s3 = inlined_call_operand.vmem [shape: f32[2,1,8], index: 3, kind: input, shape index: {}]
  %s4 = inlined_call_operand.vmem [shape: bf16[2,128,8], index: 4, kind: output, shape index: {0}]
  %s5 = inlined_call_operand.vmem [shape: f32[2,1,8], index: 5, kind: output, shape index: {1}]
  %s6 = inlined_call_operand.vmem [shape: f32[2,1,8], index: 6, kind: output, shape index: {2}]
  %7 = xla_tuple %s4, %s5, %s6
  %s8 = sld [smem:[#allocation0]]
  $region73: #{bottleneck_forward.4} parent=0
    _
  %s10 = ssub.s32 1, %s8
  %s11 = scalar_select 0, %s10, %s8
  loop: start=0, step=1, limit=4
  $region2: #{bottleneck_forward.4} parent=0 // loop_pre_header
    _
  $region3: #{bottleneck_forward.4} parent=0 // loop_header
    %s13 = sphi 0, %s17
    %p14 = scmp.ge.s32.totalorder %s13, 4
    %s20 = sphi 0, %s32
    %s21 = sphi 0, %s28
    %s22 = sphi 0, %s20
    %s23 = sphi 0, %s21
    %s24 = sphi 0, %s22
    %s25 = sphi 0, %s23
    %s37 = sphi 0, %s39
    %s40 = sphi 0, %s37
    %s41 = sphi 0, %s40
    %s57 = sphi 0, %s41
    %s63 = sphi 0, %s65
    %s66 = sphi 0, %s63
    %s67 = sphi 0, %s66
    %s83 = sphi 0, %s67
    %s89 = sphi 0, %s91
    %s92 = sphi 0, %s89
    %s93 = sphi 0, %s92
    %s109 = sphi 0, %s93
    %s115 = sphi 0, %s117
    %s118 = sphi 0, %s115
    %s119 = sphi 0, %s118
    %s135 = sphi 0, %s119
    %s143 = sphi 0, %s145
    %s146 = sphi 0, %s143
    %s147 = sphi 0, %s146
    %s163 = sphi 0, %s147
    %s169 = sphi 0, %s171
    %s172 = sphi 0, %s169
    %s173 = sphi 0, %s172
    %s189 = sphi 0, %s173
    %s195 = sphi 0, %s197
    %s198 = sphi 0, %s195
    %s199 = sphi 0, %s198
    %s215 = sphi 0, %s199
  $region4: #{bottleneck_forward.4} parent=0 // loop_header_branch
    %16 = sbr.rel (%p14) target = $region8
  $region5: #{bottleneck_forward.4} parent=0 // loop_body
    %s18 = ssub.s32 %s13, 1
    %s19 = ssub.s32 %s13, 2
    %s26 = sadd.s32 1, %s21
    %p27 = scmp.ge.s32.totalorder %s26, 1
    %s28 = scalar_select %p27, 0, %s26
    %s29 = sadd.s32 1, %s20
    %s30 = scalar_select %p27, %s29, %s20
    %p31 = scmp.ge.s32.totalorder %s30, 2
    %s32 = scalar_select %p31, 0, %s30
    %s33 = ssub.s32 %s20, %s32
    %s34 = ssub.s32 %s21, %s28
    %s35 = sor.u32 %s33, %s34
    %p36 = scmp.eq.s32.totalorder %s35, 0
    %s38 = sadd.s32 %s37, 1
    %s39 = scalar_select %p36, %s37, %s38
    %p42 = pneg %p36
    %p43 = scmp.eq.s32.totalorder %s13, 1
    %p44 = por %p42, %p43
    %p45 = scmp.ne.s32.totalorder %s37, %s40
    %p46 = scmp.eq.s32.totalorder %s13, 0
    %p47 = por %p45, %p46
    %p48 = scmp.ne.s32.totalorder %s37, %s40
    %p49 = scmp.eq.s32.totalorder %s18, 1
    %p50 = por %p48, %p49
    %p51 = scmp.ne.s32.totalorder %s40, %s41
    %p52 = scmp.eq.s32.totalorder %s18, 0
    %p53 = por %p51, %p52
    %p54 = scmp.ne.s32.totalorder %s40, %s41
    %p55 = scmp.eq.s32.totalorder %s19, 1
    %p56 = por %p54, %p55
    %p58 = scmp.ne.s32.totalorder %s41, %s57
    %p59 = scmp.eq.s32.totalorder %s19, 0
    %p60 = por %p58, %p59
    %s61 = ssub.s32 %s20, %s32
    %p62 = scmp.eq.s32.totalorder %s61, 0
    %s64 = sadd.s32 %s63, 1
    %s65 = scalar_select %p62, %s63, %s64
    %p68 = pneg %p62
    %p69 = scmp.eq.s32.totalorder %s13, 1
    %p70 = por %p68, %p69
    %p71 = scmp.ne.s32.totalorder %s63, %s66
    %p72 = scmp.eq.s32.totalorder %s13, 0
    %p73 = por %p71, %p72
    %p74 = scmp.ne.s32.totalorder %s63, %s66
    %p75 = scmp.eq.s32.totalorder %s18, 1
    %p76 = por %p74, %p75
    %p77 = scmp.ne.s32.totalorder %s66, %s67
    %p78 = scmp.eq.s32.totalorder %s18, 0
    %p79 = por %p77, %p78
    %p80 = scmp.ne.s32.totalorder %s66, %s67
    %p81 = scmp.eq.s32.totalorder %s19, 1
    %p82 = por %p80, %p81
    %p84 = scmp.ne.s32.totalorder %s67, %s83
    %p85 = scmp.eq.s32.totalorder %s19, 0
    %p86 = por %p84, %p85
    %s87 = ssub.s32 %s20, %s32
    %p88 = scmp.eq.s32.totalorder %s87, 0
    %s90 = sadd.s32 %s89, 1
    %s91 = scalar_select %p88, %s89, %s90
    %p94 = pneg %p88
    %p95 = scmp.eq.s32.totalorder %s13, 1
    %p96 = por %p94, %p95
    %p97 = scmp.ne.s32.totalorder %s89, %s92
    %p98 = scmp.eq.s32.totalorder %s13, 0
    %p99 = por %p97, %p98
    %p100 = scmp.ne.s32.totalorder %s89, %s92
    %p101 = scmp.eq.s32.totalorder %s18, 1
    %p102 = por %p100, %p101
    %p103 = scmp.ne.s32.totalorder %s92, %s93
    %p104 = scmp.eq.s32.totalorder %s18, 0
    %p105 = por %p103, %p104
    %p106 = scmp.ne.s32.totalorder %s92, %s93
    %p107 = scmp.eq.s32.totalorder %s19, 1
    %p108 = por %p106, %p107
    %p110 = scmp.ne.s32.totalorder %s93, %s109
    %p111 = scmp.eq.s32.totalorder %s19, 0
    %p112 = por %p110, %p111
    %s113 = ssub.s32 %s20, %s32
    %p114 = scmp.eq.s32.totalorder %s113, 0
    %s116 = sadd.s32 %s115, 1
    %s117 = scalar_select %p114, %s115, %s116
    %p120 = pneg %p114
    %p121 = scmp.eq.s32.totalorder %s13, 1
    %p122 = por %p120, %p121
    %p123 = scmp.ne.s32.totalorder %s115, %s118
    %p124 = scmp.eq.s32.totalorder %s13, 0
    %p125 = por %p123, %p124
    %p126 = scmp.ne.s32.totalorder %s115, %s118
    %p127 = scmp.eq.s32.totalorder %s18, 1
    %p128 = por %p126, %p127
    %p129 = scmp.ne.s32.totalorder %s118, %s119
    %p130 = scmp.eq.s32.totalorder %s18, 0
    %p131 = por %p129, %p130
    %p132 = scmp.ne.s32.totalorder %s118, %s119
    %p133 = scmp.eq.s32.totalorder %s19, 1
    %p134 = por %p132, %p133
    %p136 = scmp.ne.s32.totalorder %s119, %s135
    %p137 = scmp.eq.s32.totalorder %s19, 0
    %p138 = por %p136, %p137
    %s139 = ssub.s32 %s20, %s32
    %s140 = ssub.s32 %s21, %s28
    %s141 = sor.u32 %s139, %s140
    %p142 = scmp.eq.s32.totalorder %s141, 0
    %s144 = sadd.s32 %s143, 1
    %s145 = scalar_select %p142, %s143, %s144
    %p148 = pneg %p142
    %p149 = scmp.eq.s32.totalorder %s13, 1
    %p150 = por %p148, %p149
    %p151 = scmp.ne.s32.totalorder %s143, %s146
    %p152 = scmp.eq.s32.totalorder %s13, 0
    %p153 = por %p151, %p152
    %p154 = scmp.ne.s32.totalorder %s143, %s146
    %p155 = scmp.eq.s32.totalorder %s18, 1
    %p156 = por %p154, %p155
    %p157 = scmp.ne.s32.totalorder %s146, %s147
    %p158 = scmp.eq.s32.totalorder %s18, 0
    %p159 = por %p157, %p158
    %p160 = scmp.ne.s32.totalorder %s146, %s147
    %p161 = scmp.eq.s32.totalorder %s19, 1
    %p162 = por %p160, %p161
    %p164 = scmp.ne.s32.totalorder %s147, %s163
    %p165 = scmp.eq.s32.totalorder %s19, 0
    %p166 = por %p164, %p165
    %s167 = ssub.s32 %s20, %s32
    %p168 = scmp.eq.s32.totalorder %s167, 0
    %s170 = sadd.s32 %s169, 1
    %s171 = scalar_select %p168, %s169, %s170
    %p174 = pneg %p168
    %p175 = scmp.eq.s32.totalorder %s13, 1
    %p176 = por %p174, %p175
    %p177 = scmp.ne.s32.totalorder %s169, %s172
    %p178 = scmp.eq.s32.totalorder %s13, 0
    %p179 = por %p177, %p178
    %p180 = scmp.ne.s32.totalorder %s169, %s172
    %p181 = scmp.eq.s32.totalorder %s18, 1
    %p182 = por %p180, %p181
    %p183 = scmp.ne.s32.totalorder %s172, %s173
    %p184 = scmp.eq.s32.totalorder %s18, 0
    %p185 = por %p183, %p184
    %p186 = scmp.ne.s32.totalorder %s172, %s173
    %p187 = scmp.eq.s32.totalorder %s19, 1
    %p188 = por %p186, %p187
    %p190 = scmp.ne.s32.totalorder %s173, %s189
    %p191 = scmp.eq.s32.totalorder %s19, 0
    %p192 = por %p190, %p191
    %s193 = ssub.s32 %s20, %s32
    %p194 = scmp.eq.s32.totalorder %s193, 0
    %s196 = sadd.s32 %s195, 1
    %s197 = scalar_select %p194, %s195, %s196
    %p200 = pneg %p194
    %p201 = scmp.eq.s32.totalorder %s13, 1
    %p202 = por %p200, %p201
    %p203 = scmp.ne.s32.totalorder %s195, %s198
    %p204 = scmp.eq.s32.totalorder %s13, 0
    %p205 = por %p203, %p204
    %p206 = scmp.ne.s32.totalorder %s195, %s198
    %p207 = scmp.eq.s32.totalorder %s18, 1
    %p208 = por %p206, %p207
    %p209 = scmp.ne.s32.totalorder %s198, %s199
    %p210 = scmp.eq.s32.totalorder %s18, 0
    %p211 = por %p209, %p210
    %p212 = scmp.ne.s32.totalorder %s198, %s199
    %p213 = scmp.eq.s32.totalorder %s19, 1
    %p214 = por %p212, %p213
    %p216 = scmp.ne.s32.totalorder %s199, %s215
    %p217 = scmp.eq.s32.totalorder %s19, 0
    %p218 = por %p216, %p217
    %p219 = scmp.le.s32.totalorder 1, %s13
    %p220 = scmp.lt.s32.totalorder %s13, 3
    %p221 = pnand %p219, %p220
    %p222 = pneg %p221
    // Predicated region
    $region9: #{bottleneck_forward.4} parent=5 // pred_check
      _
    $region10: #{bottleneck_forward.4} parent=5 // pred_check_branch
      %224 = sbr.rel (%p221) target = $region12
    $region11: #{bottleneck_forward.4} parent=5 // pred_region
      %s225 = ssub.s32 %s13, 1
    $region12: #{bottleneck_forward.4} parent=5 // pred_fallthru
      _
    %p226 = scmp.lt.s32.totalorder %s13, 2
    // Predicated region
    $region13: #{bottleneck_forward.4} parent=5 // pred_check
      %p227 = pneg %p226
    $region14: #{bottleneck_forward.4} parent=5 // pred_check_branch
      %229 = sbr.rel (%p227) target = $region16
    $region15: #{bottleneck_forward.4} parent=5 // pred_region
      // Predicated region
      $region17: #{bottleneck_forward.4} parent=15 // pred_check
        %p230 = pneg %p47
      $region18: #{bottleneck_forward.4} parent=15 // pred_check_branch
        %232 = sbr.rel (%p230) target = $region20
      $region19: #{bottleneck_forward.4} parent=15 // pred_region
        %s233 = smul.u32 16, %s21
        %p234 = scmp.lt.s32.totalorder %s20, 1
        %s235 = scalar_select %p234, %s20, 1
        %p236 = scmp.lt.s32.totalorder %s233, 15
        %s237 = scalar_select %p236, %s233, 15
        %s238 = smul.addr %s235, 16
        %s239 = sadd.s32 %s237, %s238
        %s240 = smul.addr %s239, 4
        %s241 = scalar_lea.vmem %s0, %s240
        %s242 = smul.u32 16, %s21
      $region20: #{bottleneck_forward.4} parent=15 // pred_fallthru
        _
      // Predicated region
      $region21: #{bottleneck_forward.4} parent=15 // pred_check
        %p243 = pneg %p73
      $region22: #{bottleneck_forward.4} parent=15 // pred_check_branch
        %245 = sbr.rel (%p243) target = $region24
      $region23: #{bottleneck_forward.4} parent=15 // pred_region
        %p246 = scmp.lt.s32.totalorder %s20, 1
        %s247 = scalar_select %p246, %s20, 1
        %s248 = smul.addr %s247, 4
        %s249 = smul.addr %s248, 4
        %s250 = scalar_lea.vmem %s1, %s249
      $region24: #{bottleneck_forward.4} parent=15 // pred_fallthru
        _
      // Predicated region
      $region25: #{bottleneck_forward.4} parent=15 // pred_check
        %p251 = pneg %p99
      $region26: #{bottleneck_forward.4} parent=15 // pred_check_branch
        %253 = sbr.rel (%p251) target = $region28
      $region27: #{bottleneck_forward.4} parent=15 // pred_region
        %p254 = scmp.lt.s32.totalorder %s20, 1
        %s255 = scalar_select %p254, %s20, 1
        %s256 = scalar_lea.vmem %s2, %s255
      $region28: #{bottleneck_forward.4} parent=15 // pred_fallthru
        _
      // Predicated region
      $region29: #{bottleneck_forward.4} parent=15 // pred_check
        %p257 = pneg %p125
      $region30: #{bottleneck_forward.4} parent=15 // pred_check_branch
        %259 = sbr.rel (%p257) target = $region32
      $region31: #{bottleneck_forward.4} parent=15 // pred_region
        %p260 = scmp.lt.s32.totalorder %s20, 1
        %s261 = scalar_select %p260, %s20, 1
        %s262 = scalar_lea.vmem %s3, %s261
      $region32: #{bottleneck_forward.4} parent=15 // pred_fallthru
        _
    $region16: #{bottleneck_forward.4} parent=5 // pred_fallthru
      _
    %p263 = scmp.le.s32.totalorder 1, %s13
    %p264 = scmp.lt.s32.totalorder %s13, 3
    %p265 = pnand %p263, %p264
    %p266 = pneg %p265
    // Predicated region
    $region33: #{bottleneck_forward.4} parent=5 // pred_check
      _
    $region34: #{bottleneck_forward.4} parent=5 // pred_check_branch
      %268 = sbr.rel (%p265) target = $region36
    $region35: #{bottleneck_forward.4} parent=5 // pred_region
      %s269 = ssub.s32 %s13, 1
      %s270 = smul.u32 16, %s23
      %p271 = scmp.lt.s32.totalorder %s22, 1
      %s272 = scalar_select %p271, %s22, 1
      %p273 = scmp.lt.s32.totalorder %s270, 15
      %s274 = scalar_select %p273, %s270, 15
      %s275 = smul.addr %s272, 16
      %s276 = sadd.s32 %s274, %s275
      %s277 = smul.addr %s276, 4
      %s278 = scalar_lea.vmem %s0, %s277
      %p279 = pneg %p53
      %p280 = pneg %p50
      %p281 = scmp.lt.s32.totalorder %s22, 1
      %s282 = scalar_select %p281, %s22, 1
      %s283 = smul.addr %s282, 4
      %s284 = smul.addr %s283, 4
      %s285 = scalar_lea.vmem %s1, %s284
      %p286 = pneg %p79
      %p287 = pneg %p76
      %p288 = scmp.lt.s32.totalorder %s22, 1
      %s289 = scalar_select %p288, %s22, 1
      %s290 = scalar_lea.vmem %s2, %s289
      %p291 = pneg %p105
      %p292 = pneg %p102
      %p293 = scmp.lt.s32.totalorder %s22, 1
      %s294 = scalar_select %p293, %s22, 1
      %s295 = scalar_lea.vmem %s3, %s294
      %p296 = pneg %p131
      %p297 = pneg %p128
      %p298 = pneg %p159
      %p299 = pneg %p156
      %s300 = smul.u32 16, %s23
      %p301 = scmp.lt.s32.totalorder %s22, 1
      %s302 = scalar_select %p301, %s22, 1
      %p303 = scmp.lt.s32.totalorder %s300, 15
      %s304 = scalar_select %p303, %s300, 15
      %s305 = smul.addr %s302, 16
      %s306 = sadd.s32 %s304, %s305
      %s307 = smul.addr %s306, 4
      %s308 = scalar_lea.vmem %s4, %s307
      %p309 = pneg %p185
      %p310 = pneg %p182
      %p311 = scmp.lt.s32.totalorder %s22, 1
      %s312 = scalar_select %p311, %s22, 1
      %s313 = scalar_lea.vmem %s5, %s312
      %p314 = pneg %p211
      %p315 = pneg %p208
      %p316 = scmp.lt.s32.totalorder %s22, 1
      %s317 = scalar_select %p316, %s22, 1
      %s318 = scalar_lea.vmem %s6, %s317
      %s319 = smul.u32 16, %s23
      %p320 = scmp.lt.s32.totalorder %s22, 1
      %s321 = scalar_select %p320, %s22, 1
      %p322 = scmp.lt.s32.totalorder %s319, 15
      %s323 = scalar_select %p322, %s319, 15
      %s324 = smul.addr %s321, 16
      %s325 = sadd.s32 %s323, %s324
      %s326 = smul.addr %s325, 4
      %s327 = scalar_lea.vmem %s0, %s326
      %s328 = smul.u32 16, %s23
      %p329 = scmp.lt.s32.totalorder %s22, 1
      %s330 = scalar_select %p329, %s22, 1
      %s331 = smul.addr %s330, 4
      %s332 = smul.addr %s331, 4
      %s333 = scalar_lea.vmem %s1, %s332
      %p334 = scmp.lt.s32.totalorder %s22, 1
      %s335 = scalar_select %p334, %s22, 1
      %s336 = scalar_lea.vmem %s2, %s335
      %p337 = scmp.lt.s32.totalorder %s22, 1
      %s338 = scalar_select %p337, %s22, 1
      %s339 = scalar_lea.vmem %s3, %s338
      %s340 = smul.u32 16, %s23
      %p341 = scmp.lt.s32.totalorder %s22, 1
      %s342 = scalar_select %p341, %s22, 1
      %p343 = scmp.lt.s32.totalorder %s340, 15
      %s344 = scalar_select %p343, %s340, 15
      %s345 = smul.addr %s342, 16
      %s346 = sadd.s32 %s344, %s345
      %s347 = smul.addr %s346, 4
      %s348 = scalar_lea.vmem %s4, %s347
      %s349 = smul.u32 16, %s23
      %p350 = scmp.lt.s32.totalorder %s22, 1
      %s351 = scalar_select %p350, %s22, 1
      %s352 = scalar_lea.vmem %s5, %s351
      %p353 = scmp.lt.s32.totalorder %s22, 1
      %s354 = scalar_select %p353, %s22, 1
      %s355 = scalar_lea.vmem %s6, %s354
      %v357 = vld [vmem:[%s327] sm:$0xf]
      %v358 = vld [vmem:[%s327 + $0x4] sm:$0xf]
      %v359 = vld [vmem:[%s327 + $0x8] sm:$0xf]
      %v360 = vld [vmem:[%s327 + $0xc] sm:$0xf]
      %v361 = vld [vmem:[%s327 + $0x10] sm:$0xf]
      %v362 = vld [vmem:[%s327 + $0x14] sm:$0xf]
      %v363 = vld [vmem:[%s327 + $0x18] sm:$0xf]
      %v364 = vld [vmem:[%s327 + $0x1c] sm:$0xf]
      %v365 = vld [vmem:[%s327 + $0x20] sm:$0xf]
      %v366 = vld [vmem:[%s327 + $0x24] sm:$0xf]
      %v367 = vld [vmem:[%s327 + $0x28] sm:$0xf]
      %v368 = vld [vmem:[%s327 + $0x2c] sm:$0xf]
      %v369 = vld [vmem:[%s327 + $0x30] sm:$0xf]
      %v370 = vld [vmem:[%s327 + $0x34] sm:$0xf]
      %v371 = vld [vmem:[%s327 + $0x38] sm:$0xf]
      %v372 = vld [vmem:[%s327 + $0x3c] sm:$0xf]
      %v373 = vld [vmem:[%s333] sm:$0xf]
      %v374 = vld [vmem:[%s333 + $0x4] sm:$0xf]
      %v375 = vld [vmem:[%s333 + $0x8] sm:$0xf]
      %v376 = vld [vmem:[%s333 + $0xc] sm:$0xf]
      %v393 = vunpack.c.l.b16 %v357
      %v394 = vunpack.c.l.b16 %v358
      %v395 = vunpack.c.l.b16 %v359
      %v396 = vunpack.c.l.b16 %v360
      %v397 = vunpack.c.l.b16 %v361
      %v398 = vunpack.c.l.b16 %v362
      %v399 = vunpack.c.l.b16 %v363
      %v400 = vunpack.c.l.b16 %v364
      %v401 = vunpack.c.l.b16 %v365
      %v402 = vunpack.c.l.b16 %v366
      %v403 = vunpack.c.l.b16 %v367
      %v404 = vunpack.c.l.b16 %v368
      %v405 = vunpack.c.l.b16 %v369
      %v406 = vunpack.c.l.b16 %v370
      %v407 = vunpack.c.l.b16 %v371
      %v408 = vunpack.c.l.b16 %v372
      %v409 = vpack.c.b16 %v394, %v393
      %v410 = vpack.c.b16 %v396, %v395
      %v411 = vpack.c.b16 %v398, %v397
      %v412 = vpack.c.b16 %v400, %v399
      %v413 = vpack.c.b16 %v402, %v401
      %v414 = vpack.c.b16 %v404, %v403
      %v415 = vpack.c.b16 %v406, %v405
      %v416 = vpack.c.b16 %v408, %v407
      %v421 = vunpack.c.l.b16 %v373
      %v422 = vunpack.c.l.b16 %v374
      %v423 = vunpack.c.l.b16 %v375
      %v424 = vunpack.c.l.b16 %v376
      %v425 = vpack.c.b16 %v422, %v421
      %v426 = vpack.c.b16 %v424, %v423
      %vm429 = vcmask 261120
      %v431 = vsel %vm429, %v409, 0
      %v434 = vsel %vm429, %v410, 0
      %v437 = vsel %vm429, %v411, 0
      %v440 = vsel %vm429, %v412, 0
      %v443 = vsel %vm429, %v413, 0
      %v446 = vsel %vm429, %v414, 0
      %v449 = vsel %vm429, %v415, 0
      %v452 = vsel %vm429, %v416, 0
      %454 = vmatpush.bf16.msra.mxu0 0
      %455 = vmatpush.bf16.msra.mxu0 0
      %456 = vmatpush.bf16.msra.mxu0 0
      %457 = vmatpush.bf16.msra.mxu0 0
      %458 = vmatpush.bf16.msra.mxu0 0
      %459 = vmatpush.bf16.msra.mxu0 0
      %460 = vmatpush.bf16.msra.mxu0 %v426
      %461 = vmatpush.bf16.msra.mxu0 %v425
      %462 = vmatmul.bf16.gmra.mxu0 %v431
      %v463 = vpop.f32.mrf.mxu0
      %v464 = vadd.f32 0.0, %v463
      %v465 = vpop.f32.mrf.mxu0
      %v466 = vadd.f32 0.0, %v465
      %467 = vmatmul.bf16.gmra.mxu0 %v434
      %v468 = vpop.f32.mrf.mxu0
      %v469 = vadd.f32 0.0, %v468
      %v470 = vpop.f32.mrf.mxu0
      %v471 = vadd.f32 0.0, %v470
      %472 = vmatmul.bf16.gmra.mxu0 %v437
      %v473 = vpop.f32.mrf.mxu0
      %v474 = vadd.f32 0.0, %v473
      %v475 = vpop.f32.mrf.mxu0
      %v476 = vadd.f32 0.0, %v475
      %477 = vmatmul.bf16.gmra.mxu0 %v440
      %v478 = vpop.f32.mrf.mxu0
      %v479 = vadd.f32 0.0, %v478
      %v480 = vpop.f32.mrf.mxu0
      %v481 = vadd.f32 0.0, %v480
      %482 = vmatmul.bf16.gmra.mxu0 %v443
      %v483 = vpop.f32.mrf.mxu0
      %v484 = vadd.f32 0.0, %v483
      %v485 = vpop.f32.mrf.mxu0
      %v486 = vadd.f32 0.0, %v485
      %487 = vmatmul.bf16.gmra.mxu0 %v446
      %v488 = vpop.f32.mrf.mxu0
      %v489 = vadd.f32 0.0, %v488
      %v490 = vpop.f32.mrf.mxu0
      %v491 = vadd.f32 0.0, %v490
      %492 = vmatmul.bf16.gmra.mxu0 %v449
      %v493 = vpop.f32.mrf.mxu0
      %v494 = vadd.f32 0.0, %v493
      %v495 = vpop.f32.mrf.mxu0
      %v496 = vadd.f32 0.0, %v495
      %497 = vmatmul.bf16.gmra.mxu0 %v452
      %v498 = vpop.f32.mrf.mxu0
      %v499 = vadd.f32 0.0, %v498
      %v500 = vpop.f32.mrf.mxu0
      %v501 = vadd.f32 0.0, %v500
      %502 = vdwg.mxu0
      %v503 = vpack.c.bf16 %v464, %v464
      %v504 = vpack.c.bf16 %v466, %v466
      %v505 = vpack.c.bf16 %v469, %v469
      %v506 = vpack.c.bf16 %v471, %v471
      %v507 = vpack.c.bf16 %v474, %v474
      %v508 = vpack.c.bf16 %v476, %v476
      %v509 = vpack.c.bf16 %v479, %v479
      %v510 = vpack.c.bf16 %v481, %v481
      %v511 = vpack.c.bf16 %v484, %v484
      %v512 = vpack.c.bf16 %v486, %v486
      %v513 = vpack.c.bf16 %v489, %v489
      %v514 = vpack.c.bf16 %v491, %v491
      %v515 = vpack.c.bf16 %v494, %v494
      %v516 = vpack.c.bf16 %v496, %v496
      %v517 = vpack.c.bf16 %v499, %v499
      %v518 = vpack.c.bf16 %v501, %v501
      %vm519 = vcmask 60416
      %520 = vst.msk [vmem:[%s348] sm:$0xf] %vm519, %v503
      %521 = vst.msk [vmem:[%s348 + $0x4] sm:$0xf] %vm519, %v504
      %522 = vst.msk [vmem:[%s348 + $0x8] sm:$0xf] %vm519, %v505
      %523 = vst.msk [vmem:[%s348 + $0xc] sm:$0xf] %vm519, %v506
      %524 = vst.msk [vmem:[%s348 + $0x10] sm:$0xf] %vm519, %v507
      %525 = vst.msk [vmem:[%s348 + $0x14] sm:$0xf] %vm519, %v508
      %526 = vst.msk [vmem:[%s348 + $0x18] sm:$0xf] %vm519, %v509
      %527 = vst.msk [vmem:[%s348 + $0x1c] sm:$0xf] %vm519, %v510
      %528 = vst.msk [vmem:[%s348 + $0x20] sm:$0xf] %vm519, %v511
      %529 = vst.msk [vmem:[%s348 + $0x24] sm:$0xf] %vm519, %v512
      %530 = vst.msk [vmem:[%s348 + $0x28] sm:$0xf] %vm519, %v513
      %531 = vst.msk [vmem:[%s348 + $0x2c] sm:$0xf] %vm519, %v514
      %532 = vst.msk [vmem:[%s348 + $0x30] sm:$0xf] %vm519, %v515
      %533 = vst.msk [vmem:[%s348 + $0x34] sm:$0xf] %vm519, %v516
      %534 = vst.msk [vmem:[%s348 + $0x38] sm:$0xf] %vm519, %v517
      %535 = vst.msk [vmem:[%s348 + $0x3c] sm:$0xf] %vm519, %v518
      %p536 = scmp.eq.s32.totalorder %s23, 0
      // Predicated region
      $region37: #{bottleneck_forward.4} parent=35 // pred_check
        %p537 = pneg %p536
      $region38: #{bottleneck_forward.4} parent=35 // pred_check_branch
        %539 = sbr.rel (%p537) target = $region40
      $region39: #{bottleneck_forward.4} parent=35 // pred_region
        %vm540 = vcmask 57344
        %541 = vst.msk [vmem:[#allocation2] sm:$0x1] %vm540, 0.0
        %542 = vst.msk [vmem:[#allocation3] sm:$0x1] %vm540, 0.0
      $region40: #{bottleneck_forward.4} parent=35 // pred_fallthru
        _
      %v543 = vld [vmem:[#allocation2] sm:$0x1]
      %vm544 = vcmask 64512
      %v545 = vsel %vm544, %v464, 0.0
      %v546 = vsel %vm544, %v466, 0.0
      %v547 = vadd.f32 %v545, %v546
      %v548 = vsel %vm544, %v469, 0.0
      %v549 = vadd.f32 %v547, %v548
      %v550 = vsel %vm544, %v471, 0.0
      %v551 = vadd.f32 %v549, %v550
      %v552 = vsel %vm544, %v474, 0.0
      %v553 = vadd.f32 %v551, %v552
      %v554 = vsel %vm544, %v476, 0.0
      %v555 = vadd.f32 %v553, %v554
      %v556 = vsel %vm544, %v479, 0.0
      %v557 = vadd.f32 %v555, %v556
      %v558 = vsel %vm544, %v481, 0.0
      %v559 = vadd.f32 %v557, %v558
      %v560 = vsel %vm544, %v484, 0.0
      %v561 = vadd.f32 %v559, %v560
      %v562 = vsel %vm544, %v486, 0.0
      %v563 = vadd.f32 %v561, %v562
      %v564 = vsel %vm544, %v489, 0.0
      %v565 = vadd.f32 %v563, %v564
      %v566 = vsel %vm544, %v491, 0.0
      %v567 = vadd.f32 %v565, %v566
      %v568 = vsel %vm544, %v494, 0.0
      %v569 = vadd.f32 %v567, %v568
      %v570 = vsel %vm544, %v496, 0.0
      %v571 = vadd.f32 %v569, %v570
      %v572 = vsel %vm544, %v499, 0.0
      %v573 = vadd.f32 %v571, %v572
      %v574 = vsel %vm544, %v501, 0.0
      %v575 = vadd.f32 %v573, %v574
      %v576 = vrot.slane %v575, 4
      %v577 = vadd.f32 %v575, %v576
      %v578 = vrot.slane %v577, 2
      %v579 = vadd.f32 %v577, %v578
      %v580 = vrot.slane %v579, 1
      %v581 = vadd.f32 %v579, %v580
      %v582 = vadd.f32 %v543, %v581
      %vm583 = vcmask 57344
      %584 = vst.msk [vmem:[#allocation2] sm:$0x1] %vm583, %v582
      %v585 = vld [vmem:[#allocation3] sm:$0x1]
      %v586 = vmul.f32 %v464, %v464
      %v587 = vmul.f32 %v466, %v466
      %v588 = vmul.f32 %v469, %v469
      %v589 = vmul.f32 %v471, %v471
      %v590 = vmul.f32 %v474, %v474
      %v591 = vmul.f32 %v476, %v476
      %v592 = vmul.f32 %v479, %v479
      %v593 = vmul.f32 %v481, %v481
      %v594 = vmul.f32 %v484, %v484
      %v595 = vmul.f32 %v486, %v486
      %v596 = vmul.f32 %v489, %v489
      %v597 = vmul.f32 %v491, %v491
      %v598 = vmul.f32 %v494, %v494
      %v599 = vmul.f32 %v496, %v496
      %v600 = vmul.f32 %v499, %v499
      %v601 = vmul.f32 %v501, %v501
      %v602 = vsel %vm544, %v586, 0.0
      %v603 = vsel %vm544, %v587, 0.0
      %v604 = vadd.f32 %v602, %v603
      %v605 = vsel %vm544, %v588, 0.0
      %v606 = vadd.f32 %v604, %v605
      %v607 = vsel %vm544, %v589, 0.0
      %v608 = vadd.f32 %v606, %v607
      %v609 = vsel %vm544, %v590, 0.0
      %v610 = vadd.f32 %v608, %v609
      %v611 = vsel %vm544, %v591, 0.0
      %v612 = vadd.f32 %v610, %v611
      %v613 = vsel %vm544, %v592, 0.0
      %v614 = vadd.f32 %v612, %v613
      %v615 = vsel %vm544, %v593, 0.0
      %v616 = vadd.f32 %v614, %v615
      %v617 = vsel %vm544, %v594, 0.0
      %v618 = vadd.f32 %v616, %v617
      %v619 = vsel %vm544, %v595, 0.0
      %v620 = vadd.f32 %v618, %v619
      %v621 = vsel %vm544, %v596, 0.0
      %v622 = vadd.f32 %v620, %v621
      %v623 = vsel %vm544, %v597, 0.0
      %v624 = vadd.f32 %v622, %v623
      %v625 = vsel %vm544, %v598, 0.0
      %v626 = vadd.f32 %v624, %v625
      %v627 = vsel %vm544, %v599, 0.0
      %v628 = vadd.f32 %v626, %v627
      %v629 = vsel %vm544, %v600, 0.0
      %v630 = vadd.f32 %v628, %v629
      %v631 = vsel %vm544, %v601, 0.0
      %v632 = vadd.f32 %v630, %v631
      %v633 = vrot.slane %v632, 4
      %v634 = vadd.f32 %v632, %v633
      %v635 = vrot.slane %v634, 2
      %v636 = vadd.f32 %v634, %v635
      %v637 = vrot.slane %v636, 1
      %v638 = vadd.f32 %v636, %v637
      %v639 = vadd.f32 %v585, %v638
      %640 = vst.msk [vmem:[#allocation3] sm:$0x1] %vm583, %v639
      // Predicated region
      $region41: #{bottleneck_forward.4} parent=35 // pred_check
        %p641 = pneg %p536
      $region42: #{bottleneck_forward.4} parent=35 // pred_check_branch
        %643 = sbr.rel (%p641) target = $region44
      $region43: #{bottleneck_forward.4} parent=35 // pred_region
        %v644 = vld [vmem:[#allocation2] sm:$0x1]
        %v645 = vmul.f32 %v644, 0.0078125
        %v646 = vld [vmem:[#allocation3] sm:$0x1]
        %v647 = vmul.f32 %v646, 0.0078125
        %v648 = vmul.f32 %v645, %v645
        %v649 = vsub.f32 %v647, %v648
        %v650 = vmax.f32 %v649, 0.0
        %v651 = vld [vmem:[%s336] sm:$0x1]
        %v652 = vadd.f32 %v650, 1e-05
        %v653 = vrsqrt.pop %v652
        %v654 = vmul.f32 %v653, %v652
        %v655 = vmul.f32 %v654, %v653
        %v656 = vmul.f32 0.5, %v655
        %v657 = vsub.f32 1.5, %v656
        %v658 = vmul.f32 %v653, %v657
        %vm659 = vweird.f32 %v652
        %vm660 = vweird.f32 %v653
        %vm661 = vmor %vm659, %vm660
        %v662 = vsel %vm661, %v653, %v658
        %v663 = vmul.f32 %v651, %v662
        %664 = vst.msk [vmem:[%s352] sm:$0x1] %vm583, %v663
        %v665 = vld [vmem:[%s339] sm:$0x1]
        %v666 = vmul.f32 %v645, %v663
        %v667 = vsub.f32 %v665, %v666
        %668 = vst.msk [vmem:[%s355] sm:$0x1] %vm583, %v667
      $region44: #{bottleneck_forward.4} parent=35 // pred_fallthru
        _
      %s669 = smul.u32 16, %s23
      %p670 = scmp.lt.s32.totalorder %s22, 1
      %s671 = scalar_select %p670, %s22, 1
      %p672 = scmp.lt.s32.totalorder %s669, 15
      %s673 = scalar_select %p672, %s669, 15
      %s674 = smul.addr %s671, 16
      %s675 = sadd.s32 %s673, %s674
      %s676 = smul.addr %s675, 4
      %s677 = scalar_lea.vmem %s4, %s676
      %p678 = scmp.lt.s32.totalorder %s22, 1
      %s679 = scalar_select %p678, %s22, 1
      %s680 = scalar_lea.vmem %s5, %s679
      %p681 = scmp.lt.s32.totalorder %s22, 1
      %s682 = scalar_select %p681, %s22, 1
      %s683 = scalar_lea.vmem %s6, %s682
      // Predicated region
      $region45: #{bottleneck_forward.4} parent=35 // pred_check
        %p684 = pneg %p156
      $region46: #{bottleneck_forward.4} parent=35 // pred_check_branch
        %686 = sbr.rel (%p684) target = $region48
      $region47: #{bottleneck_forward.4} parent=35 // pred_region
        %s687 = smul.u32 16, %s23
      $region48: #{bottleneck_forward.4} parent=35 // pred_fallthru
        _
      // Predicated region
      $region49: #{bottleneck_forward.4} parent=35 // pred_check
        %p688 = pneg %p182
      $region50: #{bottleneck_forward.4} parent=35 // pred_check_branch
        %690 = sbr.rel (%p688) target = $region52
      $region51: #{bottleneck_forward.4} parent=35 // pred_region
        _
      $region52: #{bottleneck_forward.4} parent=35 // pred_fallthru
        _
      // Predicated region
      $region53: #{bottleneck_forward.4} parent=35 // pred_check
        %p691 = pneg %p208
      $region54: #{bottleneck_forward.4} parent=35 // pred_check_branch
        %693 = sbr.rel (%p691) target = $region56
      $region55: #{bottleneck_forward.4} parent=35 // pred_region
        _
      $region56: #{bottleneck_forward.4} parent=35 // pred_fallthru
        _
    $region36: #{bottleneck_forward.4} parent=5 // pred_fallthru
      _
    %p694 = scmp.le.s32.totalorder 2, %s13
    // Predicated region
    $region57: #{bottleneck_forward.4} parent=5 // pred_check
      %p695 = pneg %p694
    $region58: #{bottleneck_forward.4} parent=5 // pred_check_branch
      %697 = sbr.rel (%p695) target = $region60
    $region59: #{bottleneck_forward.4} parent=5 // pred_region
      %s698 = ssub.s32 %s13, 2
      // Predicated region
      $region61: #{bottleneck_forward.4} parent=59 // pred_check
        %p699 = pneg %p162
      $region62: #{bottleneck_forward.4} parent=59 // pred_check_branch
        %701 = sbr.rel (%p699) target = $region64
      $region63: #{bottleneck_forward.4} parent=59 // pred_region
        %s702 = smul.u32 16, %s25
        %p703 = scmp.lt.s32.totalorder %s24, 1
        %s704 = scalar_select %p703, %s24, 1
        %p705 = scmp.lt.s32.totalorder %s702, 15
        %s706 = scalar_select %p705, %s702, 15
        %s707 = smul.addr %s704, 16
        %s708 = sadd.s32 %s706, %s707
        %s709 = smul.addr %s708, 4
        %s710 = scalar_lea.vmem %s4, %s709
      $region64: #{bottleneck_forward.4} parent=59 // pred_fallthru
        _
      // Predicated region
      $region65: #{bottleneck_forward.4} parent=59 // pred_check
        %p711 = pneg %p188
      $region66: #{bottleneck_forward.4} parent=59 // pred_check_branch
        %713 = sbr.rel (%p711) target = $region68
      $region67: #{bottleneck_forward.4} parent=59 // pred_region
        %p714 = scmp.lt.s32.totalorder %s24, 1
        %s715 = scalar_select %p714, %s24, 1
        %s716 = scalar_lea.vmem %s5, %s715
      $region68: #{bottleneck_forward.4} parent=59 // pred_fallthru
        _
      // Predicated region
      $region69: #{bottleneck_forward.4} parent=59 // pred_check
        %p717 = pneg %p214
      $region70: #{bottleneck_forward.4} parent=59 // pred_check_branch
        %719 = sbr.rel (%p717) target = $region72
      $region71: #{bottleneck_forward.4} parent=59 // pred_region
        %p720 = scmp.lt.s32.totalorder %s24, 1
        %s721 = scalar_select %p720, %s24, 1
        %s722 = scalar_lea.vmem %s6, %s721
      $region72: #{bottleneck_forward.4} parent=59 // pred_fallthru
        _
    $region60: #{bottleneck_forward.4} parent=5 // pred_fallthru
      _
  $region6: #{bottleneck_forward.4} parent=0 // loop_footer
    %s17 = sadd.s32 1, %s13
  $region7: #{bottleneck_forward.4} parent=0 // loop_footer_branch
    %12 = sbr.rel target = $region3
  $region8: #{bottleneck_forward.4} parent=0 // loop_exit
    _

// kernel: bottleneck_forward.5
$region0: #{bottleneck_forward.5}
  #allocation0 [shape = 'u32[]', space=smem, size = 0x4, offset = 0x4, fixed_abs, tag = 'smem constant byte address 0x4 - core index']
  #allocation1 [shape = 'u32[72,128]{1,0:T(1,128)}', space=vmem, size = 0x9000, scoped, tag = 'internal scratch']
  #allocation2 [shape = 'bf16[10,10,8]{2,1,0:T(8,128)(2,1)}', space=vmem, size = 0xa000, scoped, tag = 'scratch operand']
  #allocation3 [shape = 'f32[1,8]{1,0:T(1,128)}', space=vmem, size = 0x200, scoped, tag = 'scratch operand']
  #allocation4 [shape = 'f32[1,8]{1,0:T(1,128)}', space=vmem, size = 0x200, scoped, tag = 'scratch operand']
  %s0 = inlined_call_operand.vmem [shape: bf16[2,2,8,8,8], index: 0, kind: input, shape index: {}]
  %s1 = inlined_call_operand.vmem [shape: f32[2,1,8], index: 1, kind: input, shape index: {}]
  %s2 = inlined_call_operand.vmem [shape: f32[2,1,8], index: 2, kind: input, shape index: {}]
  %s3 = inlined_call_operand.vmem [shape: bf16[2,9,8,8], index: 3, kind: input, shape index: {}]
  %s4 = inlined_call_operand.vmem [shape: f32[2,1,8], index: 4, kind: input, shape index: {}]
  %s5 = inlined_call_operand.vmem [shape: f32[2,1,8], index: 5, kind: input, shape index: {}]
  %s6 = inlined_call_operand.vmem [shape: bf16[2,2,8,8,8], index: 6, kind: output, shape index: {0}]
  %s7 = inlined_call_operand.vmem [shape: f32[2,1,8], index: 7, kind: output, shape index: {1}]
  %s8 = inlined_call_operand.vmem [shape: f32[2,1,8], index: 8, kind: output, shape index: {2}]
  %9 = xla_tuple %s6, %s7, %s8
  %s10 = sld [smem:[#allocation0]]
  $region81: #{bottleneck_forward.5} parent=0
    _
  %s12 = ssub.s32 1, %s10
  %s13 = scalar_select 0, %s12, %s10
  loop: start=0, step=1, limit=6
  $region2: #{bottleneck_forward.5} parent=0 // loop_pre_header
    _
  $region3: #{bottleneck_forward.5} parent=0 // loop_header
    %s15 = sphi 0, %s19
    %p16 = scmp.ge.s32.totalorder %s15, 6
    %s22 = sphi 0, %s34
    %s23 = sphi 0, %s30
    %s24 = sphi 0, %s22
    %s25 = sphi 0, %s23
    %s26 = sphi 0, %s24
    %s27 = sphi 0, %s25
    %s39 = sphi 0, %s41
    %s42 = sphi 0, %s39
    %s43 = sphi 0, %s42
    %s59 = sphi 0, %s43
    %s65 = sphi 0, %s67
    %s68 = sphi 0, %s65
    %s69 = sphi 0, %s68
    %s85 = sphi 0, %s69
    %s91 = sphi 0, %s93
    %s94 = sphi 0, %s91
    %s95 = sphi 0, %s94
    %s111 = sphi 0, %s95
    %s117 = sphi 0, %s119
    %s120 = sphi 0, %s117
    %s121 = sphi 0, %s120
    %s137 = sphi 0, %s121
    %s143 = sphi 0, %s145
    %s146 = sphi 0, %s143
    %s147 = sphi 0, %s146
    %s163 = sphi 0, %s147
    %s169 = sphi 0, %s171
    %s172 = sphi 0, %s169
    %s173 = sphi 0, %s172
    %s189 = sphi 0, %s173
    %s197 = sphi 0, %s199
    %s200 = sphi 0, %s197
    %s201 = sphi 0, %s200
    %s217 = sphi 0, %s201
    %s223 = sphi 0, %s225
    %s226 = sphi 0, %s223
    %s227 = sphi 0, %s226
    %s243 = sphi 0, %s227
    %s249 = sphi 0, %s251
    %s252 = sphi 0, %s249
    %s253 = sphi 0, %s252
    %s269 = sphi 0, %s253
  $region4: #{bottleneck_forward.5} parent=0 // loop_header_branch
    %18 = sbr.rel (%p16) target = $region8
  $region5: #{bottleneck_forward.5} parent=0 // loop_body
    %s20 = ssub.s32 %s15, 1
    %s21 = ssub.s32 %s15, 2
    %s28 = sadd.s32 1, %s23
    %p29 = scmp.ge.s32.totalorder %s28, 2
    %s30 = scalar_select %p29, 0, %s28
    %s31 = sadd.s32 1, %s22
    %s32 = scalar_select %p29, %s31, %s22
    %p33 = scmp.ge.s32.totalorder %s32, 2
    %s34 = scalar_select %p33, 0, %s32
    %s35 = ssub.s32 %s22, %s34
    %s36 = ssub.s32 %s23, %s30
    %s37 = sor.u32 %s35, %s36
    %p38 = scmp.eq.s32.totalorder %s37, 0
    %s40 = sadd.s32 %s39, 1
    %s41 = scalar_select %p38, %s39, %s40
    %p44 = pneg %p38
    %p45 = scmp.eq.s32.totalorder %s15, 3
    %p46 = por %p44, %p45
    %p47 = scmp.ne.s32.totalorder %s39, %s42
    %p48 = scmp.eq.s32.totalorder %s15, 0
    %p49 = por %p47, %p48
    %p50 = scmp.ne.s32.totalorder %s39, %s42
    %p51 = scmp.eq.s32.totalorder %s20, 3
    %p52 = por %p50, %p51
    %p53 = scmp.ne.s32.totalorder %s42, %s43
    %p54 = scmp.eq.s32.totalorder %s20, 0
    %p55 = por %p53, %p54
    %p56 = scmp.ne.s32.totalorder %s42, %s43
    %p57 = scmp.eq.s32.totalorder %s21, 3
    %p58 = por %p56, %p57
    %p60 = scmp.ne.s32.totalorder %s43, %s59
    %p61 = scmp.eq.s32.totalorder %s21, 0
    %p62 = por %p60, %p61
    %s63 = ssub.s32 %s22, %s34
    %p64 = scmp.eq.s32.totalorder %s63, 0
    %s66 = sadd.s32 %s65, 1
    %s67 = scalar_select %p64, %s65, %s66
    %p70 = pneg %p64
    %p71 = scmp.eq.s32.totalorder %s15, 3
    %p72 = por %p70, %p71
    %p73 = scmp.ne.s32.totalorder %s65, %s68
    %p74 = scmp.eq.s32.totalorder %s15, 0
    %p75 = por %p73, %p74
    %p76 = scmp.ne.s32.totalorder %s65, %s68
    %p77 = scmp.eq.s32.totalorder %s20, 3
    %p78 = por %p76, %p77
    %p79 = scmp.ne.s32.totalorder %s68, %s69
    %p80 = scmp.eq.s32.totalorder %s20, 0
    %p81 = por %p79, %p80
    %p82 = scmp.ne.s32.totalorder %s68, %s69
    %p83 = scmp.eq.s32.totalorder %s21, 3
    %p84 = por %p82, %p83
    %p86 = scmp.ne.s32.totalorder %s69, %s85
    %p87 = scmp.eq.s32.totalorder %s21, 0
    %p88 = por %p86, %p87
    %s89 = ssub.s32 %s22, %s34
    %p90 = scmp.eq.s32.totalorder %s89, 0
    %s92 = sadd.s32 %s91, 1
    %s93 = scalar_select %p90, %s91, %s92
    %p96 = pneg %p90
    %p97 = scmp.eq.s32.totalorder %s15, 3
    %p98 = por %p96, %p97
    %p99 = scmp.ne.s32.totalorder %s91, %s94
    %p100 = scmp.eq.s32.totalorder %s15, 0
    %p101 = por %p99, %p100
    %p102 = scmp.ne.s32.totalorder %s91, %s94
    %p103 = scmp.eq.s32.totalorder %s20, 3
    %p104 = por %p102, %p103
    %p105 = scmp.ne.s32.totalorder %s94, %s95
    %p106 = scmp.eq.s32.totalorder %s20, 0
    %p107 = por %p105, %p106
    %p108 = scmp.ne.s32.totalorder %s94, %s95
    %p109 = scmp.eq.s32.totalorder %s21, 3
    %p110 = por %p108, %p109
    %p112 = scmp.ne.s32.totalorder %s95, %s111
    %p113 = scmp.eq.s32.totalorder %s21, 0
    %p114 = por %p112, %p113
    %s115 = ssub.s32 %s22, %s34
    %p116 = scmp.eq.s32.totalorder %s115, 0
    %s118 = sadd.s32 %s117, 1
    %s119 = scalar_select %p116, %s117, %s118
    %p122 = pneg %p116
    %p123 = scmp.eq.s32.totalorder %s15, 3
    %p124 = por %p122, %p123
    %p125 = scmp.ne.s32.totalorder %s117, %s120
    %p126 = scmp.eq.s32.totalorder %s15, 0
    %p127 = por %p125, %p126
    %p128 = scmp.ne.s32.totalorder %s117, %s120
    %p129 = scmp.eq.s32.totalorder %s20, 3
    %p130 = por %p128, %p129
    %p131 = scmp.ne.s32.totalorder %s120, %s121
    %p132 = scmp.eq.s32.totalorder %s20, 0
    %p133 = por %p131, %p132
    %p134 = scmp.ne.s32.totalorder %s120, %s121
    %p135 = scmp.eq.s32.totalorder %s21, 3
    %p136 = por %p134, %p135
    %p138 = scmp.ne.s32.totalorder %s121, %s137
    %p139 = scmp.eq.s32.totalorder %s21, 0
    %p140 = por %p138, %p139
    %s141 = ssub.s32 %s22, %s34
    %p142 = scmp.eq.s32.totalorder %s141, 0
    %s144 = sadd.s32 %s143, 1
    %s145 = scalar_select %p142, %s143, %s144
    %p148 = pneg %p142
    %p149 = scmp.eq.s32.totalorder %s15, 3
    %p150 = por %p148, %p149
    %p151 = scmp.ne.s32.totalorder %s143, %s146
    %p152 = scmp.eq.s32.totalorder %s15, 0
    %p153 = por %p151, %p152
    %p154 = scmp.ne.s32.totalorder %s143, %s146
    %p155 = scmp.eq.s32.totalorder %s20, 3
    %p156 = por %p154, %p155
    %p157 = scmp.ne.s32.totalorder %s146, %s147
    %p158 = scmp.eq.s32.totalorder %s20, 0
    %p159 = por %p157, %p158
    %p160 = scmp.ne.s32.totalorder %s146, %s147
    %p161 = scmp.eq.s32.totalorder %s21, 3
    %p162 = por %p160, %p161
    %p164 = scmp.ne.s32.totalorder %s147, %s163
    %p165 = scmp.eq.s32.totalorder %s21, 0
    %p166 = por %p164, %p165
    %s167 = ssub.s32 %s22, %s34
    %p168 = scmp.eq.s32.totalorder %s167, 0
    %s170 = sadd.s32 %s169, 1
    %s171 = scalar_select %p168, %s169, %s170
    %p174 = pneg %p168
    %p175 = scmp.eq.s32.totalorder %s15, 3
    %p176 = por %p174, %p175
    %p177 = scmp.ne.s32.totalorder %s169, %s172
    %p178 = scmp.eq.s32.totalorder %s15, 0
    %p179 = por %p177, %p178
    %p180 = scmp.ne.s32.totalorder %s169, %s172
    %p181 = scmp.eq.s32.totalorder %s20, 3
    %p182 = por %p180, %p181
    %p183 = scmp.ne.s32.totalorder %s172, %s173
    %p184 = scmp.eq.s32.totalorder %s20, 0
    %p185 = por %p183, %p184
    %p186 = scmp.ne.s32.totalorder %s172, %s173
    %p187 = scmp.eq.s32.totalorder %s21, 3
    %p188 = por %p186, %p187
    %p190 = scmp.ne.s32.totalorder %s173, %s189
    %p191 = scmp.eq.s32.totalorder %s21, 0
    %p192 = por %p190, %p191
    %s193 = ssub.s32 %s22, %s34
    %s194 = ssub.s32 %s23, %s30
    %s195 = sor.u32 %s193, %s194
    %p196 = scmp.eq.s32.totalorder %s195, 0
    %s198 = sadd.s32 %s197, 1
    %s199 = scalar_select %p196, %s197, %s198
    %p202 = pneg %p196
    %p203 = scmp.eq.s32.totalorder %s15, 3
    %p204 = por %p202, %p203
    %p205 = scmp.ne.s32.totalorder %s197, %s200
    %p206 = scmp.eq.s32.totalorder %s15, 0
    %p207 = por %p205, %p206
    %p208 = scmp.ne.s32.totalorder %s197, %s200
    %p209 = scmp.eq.s32.totalorder %s20, 3
    %p210 = por %p208, %p209
    %p211 = scmp.ne.s32.totalorder %s200, %s201
    %p212 = scmp.eq.s32.totalorder %s20, 0
    %p213 = por %p211, %p212
    %p214 = scmp.ne.s32.totalorder %s200, %s201
    %p215 = scmp.eq.s32.totalorder %s21, 3
    %p216 = por %p214, %p215
    %p218 = scmp.ne.s32.totalorder %s201, %s217
    %p219 = scmp.eq.s32.totalorder %s21, 0
    %p220 = por %p218, %p219
    %s221 = ssub.s32 %s22, %s34
    %p222 = scmp.eq.s32.totalorder %s221, 0
    %s224 = sadd.s32 %s223, 1
    %s225 = scalar_select %p222, %s223, %s224
    %p228 = pneg %p222
    %p229 = scmp.eq.s32.totalorder %s15, 3
    %p230 = por %p228, %p229
    %p231 = scmp.ne.s32.totalorder %s223, %s226
    %p232 = scmp.eq.s32.totalorder %s15, 0
    %p233 = por %p231, %p232
    %p234 = scmp.ne.s32.totalorder %s223, %s226
    %p235 = scmp.eq.s32.totalorder %s20, 3
    %p236 = por %p234, %p235
    %p237 = scmp.ne.s32.totalorder %s226, %s227
    %p238 = scmp.eq.s32.totalorder %s20, 0
    %p239 = por %p237, %p238
    %p240 = scmp.ne.s32.totalorder %s226, %s227
    %p241 = scmp.eq.s32.totalorder %s21, 3
    %p242 = por %p240, %p241
    %p244 = scmp.ne.s32.totalorder %s227, %s243
    %p245 = scmp.eq.s32.totalorder %s21, 0
    %p246 = por %p244, %p245
    %s247 = ssub.s32 %s22, %s34
    %p248 = scmp.eq.s32.totalorder %s247, 0
    %s250 = sadd.s32 %s249, 1
    %s251 = scalar_select %p248, %s249, %s250
    %p254 = pneg %p248
    %p255 = scmp.eq.s32.totalorder %s15, 3
    %p256 = por %p254, %p255
    %p257 = scmp.ne.s32.totalorder %s249, %s252
    %p258 = scmp.eq.s32.totalorder %s15, 0
    %p259 = por %p257, %p258
    %p260 = scmp.ne.s32.totalorder %s249, %s252
    %p261 = scmp.eq.s32.totalorder %s20, 3
    %p262 = por %p260, %p261
    %p263 = scmp.ne.s32.totalorder %s252, %s253
    %p264 = scmp.eq.s32.totalorder %s20, 0
    %p265 = por %p263, %p264
    %p266 = scmp.ne.s32.totalorder %s252, %s253
    %p267 = scmp.eq.s32.totalorder %s21, 3
    %p268 = por %p266, %p267
    %p270 = scmp.ne.s32.totalorder %s253, %s269
    %p271 = scmp.eq.s32.totalorder %s21, 0
    %p272 = por %p270, %p271
    %p273 = scmp.le.s32.totalorder 1, %s15
    %p274 = scmp.lt.s32.totalorder %s15, 5
    %p275 = pnand %p273, %p274
    %p276 = pneg %p275
    // Predicated region
    $region9: #{bottleneck_forward.5} parent=5 // pred_check
      _
    $region10: #{bottleneck_forward.5} parent=5 // pred_check_branch
      %278 = sbr.rel (%p275) target = $region12
    $region11: #{bottleneck_forward.5} parent=5 // pred_region
      %s279 = ssub.s32 %s15, 1
    $region12: #{bottleneck_forward.5} parent=5 // pred_fallthru
      _
    %p280 = scmp.lt.s32.totalorder %s15, 4
    // Predicated region
    $region13: #{bottleneck_forward.5} parent=5 // pred_check
      %p281 = pneg %p280
    $region14: #{bottleneck_forward.5} parent=5 // pred_check_branch
      %283 = sbr.rel (%p281) target = $region16
    $region15: #{bottleneck_forward.5} parent=5 // pred_region
      // Predicated region
      $region17: #{bottleneck_forward.5} parent=15 // pred_check
        %p284 = pneg %p49
      $region18: #{bottleneck_forward.5} parent=15 // pred_check_branch
        %286 = sbr.rel (%p284) target = $region20
      $region19: #{bottleneck_forward.5} parent=15 // pred_region
        %p287 = scmp.lt.s32.totalorder %s22, 1
        %s288 = scalar_select %p287, %s22, 1
        %p289 = scmp.lt.s32.totalorder %s23, 1
        %s290 = scalar_select %p289, %s23, 1
        %s291 = smul.addr %s290, 8
        %s292 = smul.addr %s288, 16
        %s293 = sadd.s32 %s291, %s292
        %s294 = smul.addr %s293, 4
        %s295 = scalar_lea.vmem %s0, %s294
      $region20: #{bottleneck_forward.5} parent=15 // pred_fallthru
        _
      // Predicated region
      $region21: #{bottleneck_forward.5} parent=15 // pred_check
        %p296 = pneg %p75
      $region22: #{bottleneck_forward.5} parent=15 // pred_check_branch
        %298 = sbr.rel (%p296) target = $region24
      $region23: #{bottleneck_forward.5} parent=15 // pred_region
        %p299 = scmp.lt.s32.totalorder %s22, 1
        %s300 = scalar_select %p299, %s22, 1
        %s301 = scalar_lea.vmem %s1, %s300
      $region24: #{bottleneck_forward.5} parent=15 // pred_fallthru
        _
      // Predicated region
      $region25: #{bottleneck_forward.5} parent=15 // pred_check
        %p302 = pneg %p101
      $region26: #{bottleneck_forward.5} parent=15 // pred_check_branch
        %304 = sbr.rel (%p302) target = $region28
      $region27: #{bottleneck_forward.5} parent=15 // pred_region
        %p305 = scmp.lt.s32.totalorder %s22, 1
        %s306 = scalar_select %p305, %s22, 1
        %s307 = scalar_lea.vmem %s2, %s306
      $region28: #{bottleneck_forward.5} parent=15 // pred_fallthru
        _
      // Predicated region
      $region29: #{bottleneck_forward.5} parent=15 // pred_check
        %p308 = pneg %p127
      $region30: #{bottleneck_forward.5} parent=15 // pred_check_branch
        %310 = sbr.rel (%p308) target = $region32
      $region31: #{bottleneck_forward.5} parent=15 // pred_region
        %p311 = scmp.lt.s32.totalorder %s22, 1
        %s312 = scalar_select %p311, %s22, 1
        %s313 = smul.addr %s312, 9
        %s314 = smul.addr %s313, 4
        %s315 = scalar_lea.vmem %s3, %s314
      $region32: #{bottleneck_forward.5} parent=15 // pred_fallthru
        _
      // Predicated region
      $region33: #{bottleneck_forward.5} parent=15 // pred_check
        %p316 = pneg %p153
      $region34: #{bottleneck_forward.5} parent=15 // pred_check_branch
        %318 = sbr.rel (%p316) target = $region36
      $region35: #{bottleneck_forward.5} parent=15 // pred_region
        %p319 = scmp.lt.s32.totalorder %s22, 1
        %s320 = scalar_select %p319, %s22, 1
        %s321 = scalar_lea.vmem %s4, %s320
      $region36: #{bottleneck_forward.5} parent=15 // pred_fallthru
        _
      // Predicated region
      $region37: #{bottleneck_forward.5} parent=15 // pred_check
        %p322 = pneg %p179
      $region38: #{bottleneck_forward.5} parent=15 // pred_check_branch
        %324 = sbr.rel (%p322) target = $region40
      $region39: #{bottleneck_forward.5} parent=15 // pred_region
        %p325 = scmp.lt.s32.totalorder %s22, 1
        %s326 = scalar_select %p325, %s22, 1
        %s327 = scalar_lea.vmem %s5, %s326
      $region40: #{bottleneck_forward.5} parent=15 // pred_fallthru
        _
    $region16: #{bottleneck_forward.5} parent=5 // pred_fallthru
      _
    %p328 = scmp.le.s32.totalorder 1, %s15
    %p329 = scmp.lt.s32.totalorder %s15, 5
    %p330 = pnand %p328, %p329
    %p331 = pneg %p330
    // Predicated region
    $region41: #{bottleneck_forward.5} parent=5 // pred_check
      _
    $region42: #{bottleneck_forward.5} parent=5 // pred_check_branch
      %333 = sbr.rel (%p330) target = $region44
    $region43: #{bottleneck_forward.5} parent=5 // pred_region
      %s334 = ssub.s32 %s15, 1
      %p335 = scmp.lt.s32.totalorder %s24, 1
      %s336 = scalar_select %p335, %s24, 1
      %p337 = scmp.lt.s32.totalorder %s25, 1
      %s338 = scalar_select %p337, %s25, 1
      %s339 = smul.addr %s338, 8
      %s340 = smul.addr %s336, 16
      %s341 = sadd.s32 %s339, %s340
      %s342 = smul.addr %s341, 4
      %s343 = scalar_lea.vmem %s0, %s342
      %p344 = pneg %p55
      %p345 = pneg %p52
      %p346 = scmp.lt.s32.totalorder %s24, 1
      %s347 = scalar_select %p346, %s24, 1
      %s348 = scalar_lea.vmem %s1, %s347
      %p349 = pneg %p81
      %p350 = pneg %p78
      %p351 = scmp.lt.s32.totalorder %s24, 1
      %s352 = scalar_select %p351, %s24, 1
      %s353 = scalar_lea.vmem %s2, %s352
      %p354 = pneg %p107
      %p355 = pneg %p104
      %p356 = scmp.lt.s32.totalorder %s24, 1
      %s357 = scalar_select %p356, %s24, 1
      %s358 = smul.addr %s357, 9
      %s359 = smul.addr %s358, 4
      %s360 = scalar_lea.vmem %s3, %s359
      %p361 = pneg %p133
      %p362 = pneg %p130
      %p363 = scmp.lt.s32.totalorder %s24, 1
      %s364 = scalar_select %p363, %s24, 1
      %s365 = scalar_lea.vmem %s4, %s364
      %p366 = pneg %p159
      %p367 = pneg %p156
      %p368 = scmp.lt.s32.totalorder %s24, 1
      %s369 = scalar_select %p368, %s24, 1
      %s370 = scalar_lea.vmem %s5, %s369
      %p371 = pneg %p185
      %p372 = pneg %p182
      %p373 = pneg %p213
      %p374 = pneg %p210
      %p375 = scmp.lt.s32.totalorder %s24, 1
      %s376 = scalar_select %p375, %s24, 1
      %p377 = scmp.lt.s32.totalorder %s25, 1
      %s378 = scalar_select %p377, %s25, 1
      %s379 = smul.addr %s378, 8
      %s380 = smul.addr %s376, 16
      %s381 = sadd.s32 %s379, %s380
      %s382 = smul.addr %s381, 4
      %s383 = scalar_lea.vmem %s6, %s382
      %p384 = pneg %p239
      %p385 = pneg %p236
      %p386 = scmp.lt.s32.totalorder %s24, 1
      %s387 = scalar_select %p386, %s24, 1
      %s388 = scalar_lea.vmem %s7, %s387
      %p389 = pneg %p265
      %p390 = pneg %p262
      %p391 = scmp.lt.s32.totalorder %s24, 1
      %s392 = scalar_select %p391, %s24, 1
      %s393 = scalar_lea.vmem %s8, %s392
      %p394 = scmp.lt.s32.totalorder %s24, 1
      %s395 = scalar_select %p394, %s24, 1
      %p396 = scmp.lt.s32.totalorder %s25, 1
      %s397 = scalar_select %p396, %s25, 1
      %s398 = smul.addr %s397, 8
      %s399 = smul.addr %s395, 16
      %s400 = sadd.s32 %s398, %s399
      %s401 = smul.addr %s400, 4
      %s402 = scalar_lea.vmem %s0, %s401
      %p403 = scmp.lt.s32.totalorder %s24, 1
      %s404 = scalar_select %p403, %s24, 1
      %s405 = scalar_lea.vmem %s1, %s404
      %p406 = scmp.lt.s32.totalorder %s24, 1
      %s407 = scalar_select %p406, %s24, 1
      %s408 = scalar_lea.vmem %s2, %s407
      %p409 = scmp.lt.s32.totalorder %s24, 1
      %s410 = scalar_select %p409, %s24, 1
      %s411 = smul.addr %s410, 9
      %s412 = smul.addr %s411, 4
      %s413 = scalar_lea.vmem %s3, %s412
      %p414 = scmp.lt.s32.totalorder %s24, 1
      %s415 = scalar_select %p414, %s24, 1
      %s416 = scalar_lea.vmem %s4, %s415
      %p417 = scmp.lt.s32.totalorder %s24, 1
      %s418 = scalar_select %p417, %s24, 1
      %s419 = scalar_lea.vmem %s5, %s418
      %p420 = scmp.lt.s32.totalorder %s24, 1
      %s421 = scalar_select %p420, %s24, 1
      %p422 = scmp.lt.s32.totalorder %s25, 1
      %s423 = scalar_select %p422, %s25, 1
      %s424 = smul.addr %s423, 8
      %s425 = smul.addr %s421, 16
      %s426 = sadd.s32 %s424, %s425
      %s427 = smul.addr %s426, 4
      %s428 = scalar_lea.vmem %s6, %s427
      %p429 = scmp.lt.s32.totalorder %s24, 1
      %s430 = scalar_select %p429, %s24, 1
      %s431 = scalar_lea.vmem %s7, %s430
      %p432 = scmp.lt.s32.totalorder %s24, 1
      %s433 = scalar_select %p432, %s24, 1
      %s434 = scalar_lea.vmem %s8, %s433
      %p436 = scmp.eq.s32.totalorder %s25, 0
      // Predicated region
      $region45: #{bottleneck_forward.5} parent=43 // pred_check
        %p437 = pneg %p436
      $region46: #{bottleneck_forward.5} parent=43 // pred_check_branch
        %439 = sbr.rel (%p437) target = $region48
      $region47: #{bottleneck_forward.5} parent=43 // pred_region
        %vm440 = vcmask 60416
        %441 = vst.msk [vmem:[#allocation2] sm:$0xf] %vm440, 0
        %vm442 = vcmask 57344
        %443 = vst.msk [vmem:[#allocation2 + $0x4] sm:$0x1] %vm442, 0
        %444 = vst.msk [vmem:[#allocation2 + $0x8] sm:$0xf] %vm440, 0
        %445 = vst.msk [vmem:[#allocation2 + $0xc] sm:$0x1] %vm442, 0
        %446 = vst.msk [vmem:[#allocation2 + $0x10] sm:$0xf] %vm440, 0
        %447 = vst.msk [vmem:[#allocation2 + $0x14] sm:$0x1] %vm442, 0
        %448 = vst.msk [vmem:[#allocation2 + $0x18] sm:$0xf] %vm440, 0
        %449 = vst.msk [vmem:[#allocation2 + $0x1c] sm:$0x1] %vm442, 0
        %450 = vst.msk [vmem:[#allocation2 + $0x20] sm:$0xf] %vm440, 0
        %451 = vst.msk [vmem:[#allocation2 + $0x24] sm:$0x1] %vm442, 0
        %452 = vst.msk [vmem:[#allocation2 + $0x28] sm:$0xf] %vm440, 0
        %453 = vst.msk [vmem:[#allocation2 + $0x2c] sm:$0x1] %vm442, 0
        %454 = vst.msk [vmem:[#allocation2 + $0x30] sm:$0xf] %vm440, 0
        %455 = vst.msk [vmem:[#allocation2 + $0x34] sm:$0x1] %vm442, 0
        %456 = vst.msk [vmem:[#allocation2 + $0x38] sm:$0xf] %vm440, 0
        %457 = vst.msk [vmem:[#allocation2 + $0x3c] sm:$0x1] %vm442, 0
        %458 = vst.msk [vmem:[#allocation2 + $0x40] sm:$0xf] %vm440, 0
        %459 = vst.msk [vmem:[#allocation2 + $0x44] sm:$0x1] %vm442, 0
        %460 = vst.msk [vmem:[#allocation2 + $0x48] sm:$0xf] %vm440, 0
        %461 = vst.msk [vmem:[#allocation2 + $0x4c] sm:$0x1] %vm442, 0
        %462 = vst.msk [vmem:[#allocation3] sm:$0x1] %vm442, 0.0
        %463 = vst.msk [vmem:[#allocation4] sm:$0x1] %vm442, 0.0
      $region48: #{bottleneck_forward.5} parent=43 // pred_fallthru
        _
      %v464 = vld [vmem:[%s402] sm:$0xf]
      %v465 = vld [vmem:[%s402 + $0x4] sm:$0xf]
      %v466 = vld [vmem:[%s402 + $0x8] sm:$0xf]
      %v467 = vld [vmem:[%s402 + $0xc] sm:$0xf]
      %v468 = vld [vmem:[%s402 + $0x10] sm:$0xf]
      %v469 = vld [vmem:[%s402 + $0x14] sm:$0xf]
      %v470 = vld [vmem:[%s402 + $0x18] sm:$0xf]
      %v471 = vld [vmem:[%s402 + $0x1c] sm:$0xf]
      %v472 = vunpack.c.l.bf16 %v464
      %v473 = vunpack.c.l.bf16 %v465
      %v474 = vunpack.c.l.bf16 %v466
      %v475 = vunpack.c.l.bf16 %v467
      %v476 = vunpack.c.l.bf16 %v468
      %v477 = vunpack.c.l.bf16 %v469
      %v478 = vunpack.c.l.bf16 %v470
      %v479 = vunpack.c.l.bf16 %v471
      %v480 = vld [vmem:[%s405] sm:$0x1]
      %v482 = vperm.slane %v480, 0
      %v484 = vmul.f32 %v472, %v482
      %v485 = vmul.f32 %v473, %v482
      %v486 = vmul.f32 %v474, %v482
      %v487 = vmul.f32 %v475, %v482
      %v488 = vmul.f32 %v476, %v482
      %v489 = vmul.f32 %v477, %v482
      %v490 = vmul.f32 %v478, %v482
      %v491 = vmul.f32 %v479, %v482
      %v492 = vld [vmem:[%s408] sm:$0x1]
      %v494 = vperm.slane %v492, 0
      %v496 = vadd.f32 %v484, %v494
      %v497 = vadd.f32 %v485, %v494
      %v498 = vadd.f32 %v486, %v494
      %v499 = vadd.f32 %v487, %v494
      %v500 = vadd.f32 %v488, %v494
      %v501 = vadd.f32 %v489, %v494
      %v502 = vadd.f32 %v490, %v494
      %v503 = vadd.f32 %v491, %v494
      %v504 = vmax.f32 %v496, 0.0
      %v505 = vmax.f32 %v497, 0.0
      %v506 = vmax.f32 %v498, 0.0
      %v507 = vmax.f32 %v499, 0.0
      %v508 = vmax.f32 %v500, 0.0
      %v509 = vmax.f32 %v501, 0.0
      %v510 = vmax.f32 %v502, 0.0
      %v511 = vmax.f32 %v503, 0.0
      %v512 = vpack.c.bf16 %v504, %v504
      %v513 = vpack.c.bf16 %v505, %v505
      %v514 = vpack.c.bf16 %v506, %v506
      %v515 = vpack.c.bf16 %v507, %v507
      %v516 = vpack.c.bf16 %v508, %v508
      %v517 = vpack.c.bf16 %v509, %v509
      %v518 = vpack.c.bf16 %v510, %v510
      %v519 = vpack.c.bf16 %v511, %v511
      %v521 = vshrl.u32 %v512, 16
      %v523 = vrot.slane %v521, 7
      %v524 = vshll.u32 %v512, 16
      %v526 = vor.u32 %v523, %v524
      %v527 = vrot.slane %v523, 4
      %v529 = vshrl.u32 %v513, 16
      %v531 = vrot.slane %v529, 7
      %v532 = vshll.u32 %v513, 16
      %v534 = vor.u32 %v531, %v532
      %v535 = vrot.slane %v531, 4
      %v537 = vshrl.u32 %v514, 16
      %v539 = vrot.slane %v537, 7
      %v540 = vshll.u32 %v514, 16
      %v542 = vor.u32 %v539, %v540
      %v543 = vrot.slane %v539, 4
      %v545 = vshrl.u32 %v515, 16
      %v547 = vrot.slane %v545, 7
      %v548 = vshll.u32 %v515, 16
      %v550 = vor.u32 %v547, %v548
      %v551 = vrot.slane %v547, 4
      %v553 = vshrl.u32 %v516, 16
      %v555 = vrot.slane %v553, 7
      %v556 = vshll.u32 %v516, 16
      %v558 = vor.u32 %v555, %v556
      %v559 = vrot.slane %v555, 4
      %v561 = vshrl.u32 %v517, 16
      %v563 = vrot.slane %v561, 7
      %v564 = vshll.u32 %v517, 16
      %v566 = vor.u32 %v563, %v564
      %v567 = vrot.slane %v563, 4
      %v569 = vshrl.u32 %v518, 16
      %v571 = vrot.slane %v569, 7
      %v572 = vshll.u32 %v518, 16
      %v574 = vor.u32 %v571, %v572
      %v575 = vrot.slane %v571, 4
      %v577 = vshrl.u32 %v519, 16
      %v579 = vrot.slane %v577, 7
      %v580 = vshll.u32 %v519, 16
      %v582 = vor.u32 %v579, %v580
      %v583 = vrot.slane %v579, 4
      %s600 = scalar_lea.vmem [#allocation2], 8
      %vm601 = vcmask 60416
      %vm602 = vsmask.f32 7938
      %vm603 = vmand %vm601, %vm602
      %v604 = vld [vmem:[%s600] sm:$0xf]
      %v605 = vsel %vm603, %v526, %v604
      %606 = vst [vmem:[%s600] sm:$0xf] %v605
      %vm607 = vcmask 57344
      %vm608 = vsmask.f32 256
      %vm609 = vmand %vm607, %vm608
      %v610 = vld [vmem:[%s600 + $0x4] sm:$0x1]
      %v611 = vsel %vm609, %v527, %v610
      %612 = vst [vmem:[%s600 + $0x4] sm:$0x1] %v611
      %v613 = vld [vmem:[%s600 + $0x8] sm:$0xf]
      %v614 = vsel %vm603, %v534, %v613
      %615 = vst [vmem:[%s600 + $0x8] sm:$0xf] %v614
      %v616 = vld [vmem:[%s600 + $0xc] sm:$0x1]
      %v617 = vsel %vm609, %v535, %v616
      %618 = vst [vmem:[%s600 + $0xc] sm:$0x1] %v617
      %v619 = vld [vmem:[%s600 + $0x10] sm:$0xf]
      %v620 = vsel %vm603, %v542, %v619
      %621 = vst [vmem:[%s600 + $0x10] sm:$0xf] %v620
      %v622 = vld [vmem:[%s600 + $0x14] sm:$0x1]
      %v623 = vsel %vm609, %v543, %v622
      %624 = vst [vmem:[%s600 + $0x14] sm:$0x1] %v623
      %v625 = vld [vmem:[%s600 + $0x18] sm:$0xf]
      %v626 = vsel %vm603, %v550, %v625
      %627 = vst [vmem:[%s600 + $0x18] sm:$0xf] %v626
      %v628 = vld [vmem:[%s600 + $0x1c] sm:$0x1]
      %v629 = vsel %vm609, %v551, %v628
      %630 = vst [vmem:[%s600 + $0x1c] sm:$0x1] %v629
      %v631 = vld [vmem:[%s600 + $0x20] sm:$0xf]
      %v632 = vsel %vm603, %v558, %v631
      %633 = vst [vmem:[%s600 + $0x20] sm:$0xf] %v632
      %v634 = vld [vmem:[%s600 + $0x24] sm:$0x1]
      %v635 = vsel %vm609, %v559, %v634
      %636 = vst [vmem:[%s600 + $0x24] sm:$0x1] %v635
      %v637 = vld [vmem:[%s600 + $0x28] sm:$0xf]
      %v638 = vsel %vm603, %v566, %v637
      %639 = vst [vmem:[%s600 + $0x28] sm:$0xf] %v638
      %v640 = vld [vmem:[%s600 + $0x2c] sm:$0x1]
      %v641 = vsel %vm609, %v567, %v640
      %642 = vst [vmem:[%s600 + $0x2c] sm:$0x1] %v641
      %v643 = vld [vmem:[%s600 + $0x30] sm:$0xf]
      %v644 = vsel %vm603, %v574, %v643
      %645 = vst [vmem:[%s600 + $0x30] sm:$0xf] %v644
      %v646 = vld [vmem:[%s600 + $0x34] sm:$0x1]
      %v647 = vsel %vm609, %v575, %v646
      %648 = vst [vmem:[%s600 + $0x34] sm:$0x1] %v647
      %v649 = vld [vmem:[%s600 + $0x38] sm:$0xf]
      %v650 = vsel %vm603, %v582, %v649
      %651 = vst [vmem:[%s600 + $0x38] sm:$0xf] %v650
      %v652 = vld [vmem:[%s600 + $0x3c] sm:$0x1]
      %v653 = vsel %vm609, %v583, %v652
      %654 = vst [vmem:[%s600 + $0x3c] sm:$0x1] %v653
      %v655 = vld [vmem:[#allocation2] sm:$0xf]
      %v656 = vld [vmem:[#allocation2 + $0x8] sm:$0xf]
      %v657 = vld [vmem:[#allocation2 + $0x10] sm:$0xf]
      %v658 = vld [vmem:[#allocation2 + $0x18] sm:$0xf]
      %v659 = vld [vmem:[#allocation2 + $0x20] sm:$0xf]
      %v660 = vld [vmem:[#allocation2 + $0x28] sm:$0xf]
      %v661 = vld [vmem:[#allocation2 + $0x30] sm:$0xf]
      %v662 = vld [vmem:[#allocation2 + $0x38] sm:$0xf]
      %v663 = vld [vmem:[%s413] sm:$0xf]
      %v664 = vld [vmem:[#allocation2 + $0x4] sm:$0x1]
      %v665 = vld [vmem:[#allocation2 + $0xc] sm:$0x1]
      %v666 = vld [vmem:[#allocation2 + $0x14] sm:$0x1]
      %v667 = vld [vmem:[#allocation2 + $0x1c] sm:$0x1]
      %v668 = vld [vmem:[#allocation2 + $0x24] sm:$0x1]
      %v669 = vld [vmem:[#allocation2 + $0x2c] sm:$0x1]
      %v670 = vld [vmem:[#allocation2 + $0x34] sm:$0x1]
      %v671 = vld [vmem:[#allocation2 + $0x3c] sm:$0x1]
      %vm672 = vsmask.f32 3328
      %vm673 = vsmask.f32 7440
      %vm674 = vmor %vm672, %vm673
      %v676 = vshrl.u32 %v655, 16
      %v678 = vrot.slane %v676, 4
      %v679 = vshll.u32 %v655, 16
      %v681 = vrot.slane %v679, 5
      %v682 = vor.u32 %v678, %v681
      %v683 = vrot.slane %v682, 4
      %v685 = vshll.u32 %v664, 16
      %v687 = vrot.slane %v685, 5
      %v688 = vsel %vm674, %v683, %v687
      %v690 = vshrl.u32 %v656, 16
      %v692 = vrot.slane %v690, 4
      %v693 = vshll.u32 %v656, 16
      %v695 = vrot.slane %v693, 5
      %v696 = vor.u32 %v692, %v695
      %v697 = vrot.slane %v696, 4
      %v699 = vshll.u32 %v665, 16
      %v701 = vrot.slane %v699, 5
      %v702 = vsel %vm674, %v697, %v701
      %v704 = vshrl.u32 %v657, 16
      %v706 = vrot.slane %v704, 4
      %v707 = vshll.u32 %v657, 16
      %v709 = vrot.slane %v707, 5
      %v710 = vor.u32 %v706, %v709
      %v711 = vrot.slane %v710, 4
      %v713 = vshll.u32 %v666, 16
      %v715 = vrot.slane %v713, 5
      %v716 = vsel %vm674, %v711, %v715
      %v718 = vshrl.u32 %v658, 16
      %v720 = vrot.slane %v718, 4
      %v721 = vshll.u32 %v658, 16
      %v723 = vrot.slane %v721, 5
      %v724 = vor.u32 %v720, %v723
      %v725 = vrot.slane %v724, 4
      %v727 = vshll.u32 %v667, 16
      %v729 = vrot.slane %v727, 5
      %v730 = vsel %vm674, %v725, %v729
      %v732 = vshrl.u32 %v659, 16
      %v734 = vrot.slane %v732, 4
      %v735 = vshll.u32 %v659, 16
      %v737 = vrot.slane %v735, 5
      %v738 = vor.u32 %v734, %v737
      %v739 = vrot.slane %v738, 4
      %v741 = vshll.u32 %v668, 16
      %v743 = vrot.slane %v741, 5
      %v744 = vsel %vm674, %v739, %v743
      %v746 = vshrl.u32 %v660, 16
      %v748 = vrot.slane %v746, 4
      %v749 = vshll.u32 %v660, 16
      %v751 = vrot.slane %v749, 5
      %v752 = vor.u32 %v748, %v751
      %v753 = vrot.slane %v752, 4
      %v755 = vshll.u32 %v669, 16
      %v757 = vrot.slane %v755, 5
      %v758 = vsel %vm674, %v753, %v757
      %v760 = vshrl.u32 %v661, 16
      %v762 = vrot.slane %v760, 4
      %v763 = vshll.u32 %v661, 16
      %v765 = vrot.slane %v763, 5
      %v766 = vor.u32 %v762, %v765
      %v767 = vrot.slane %v766, 4
      %v769 = vshll.u32 %v670, 16
      %v771 = vrot.slane %v769, 5
      %v772 = vsel %vm674, %v767, %v771
      %v774 = vshrl.u32 %v662, 16
      %v776 = vrot.slane %v774, 4
      %v777 = vshll.u32 %v662, 16
      %v779 = vrot.slane %v777, 5
      %v780 = vor.u32 %v776, %v779
      %v781 = vrot.slane %v780, 4
      %v783 = vshll.u32 %v671, 16
      %v785 = vrot.slane %v783, 5
      %v786 = vsel %vm674, %v781, %v785
      %s787 = scalar_lea.vmem %s413, 4
      %v788 = vld [vmem:[%s787] sm:$0xf]
      %v789 = vunpack.c.l.b16 %v688
      %v790 = vunpack.c.l.b16 %v702
      %v791 = vunpack.c.l.b16 %v716
      %v792 = vunpack.c.l.b16 %v730
      %v793 = vunpack.c.l.b16 %v744
      %v794 = vunpack.c.l.b16 %v758
      %v795 = vunpack.c.l.b16 %v772
      %v796 = vunpack.c.l.b16 %v786
      %v797 = vpack.c.b16 %v790, %v789
      %v798 = vpack.c.b16 %v792, %v791
      %v799 = vpack.c.b16 %v794, %v793
      %v800 = vpack.c.b16 %v796, %v795
      %vm801 = vcmask 64512
      %v803 = vsel %vm801, %v797, 0
      %v806 = vsel %vm801, %v798, 0
      %v809 = vsel %vm801, %v799, 0
      %v812 = vsel %vm801, %v800, 0
      %vm814 = vcmask 1043456
      %v816 = vsel %vm814, %v788, 0
      %818 = vmatpush.bf16.msra.mxu0 0
      %819 = vmatpush.bf16.msra.mxu0 0
      %820 = vmatpush.bf16.msra.mxu0 0
      %821 = vmatpush.bf16.msra.mxu0 0
      %822 = vmatpush.bf16.msra.mxu0 0
      %823 = vmatpush.bf16.msra.mxu0 0
      %824 = vmatpush.bf16.msra.mxu0 0
      %825 = vmatpush.bf16.msra.mxu0 %v816
      %826 = vmatmul.bf16.gmra.mxu0 %v803
      %v827 = vpop.f32.mrf.mxu0
      %v828 = vadd.f32 0.0, %v827
      %v829 = vpop.f32.mrf.mxu0
      %v830 = vadd.f32 0.0, %v829
      %831 = vmatmul.bf16.gmra.mxu0 %v806
      %v832 = vpop.f32.mrf.mxu0
      %v833 = vadd.f32 0.0, %v832
      %v834 = vpop.f32.mrf.mxu0
      %v835 = vadd.f32 0.0, %v834
      %836 = vmatmul.bf16.gmra.mxu0 %v809
      %v837 = vpop.f32.mrf.mxu0
      %v838 = vadd.f32 0.0, %v837
      %v839 = vpop.f32.mrf.mxu0
      %v840 = vadd.f32 0.0, %v839
      %841 = vmatmul.bf16.gmra.mxu0 %v812
      %v842 = vpop.f32.mrf.mxu0
      %v843 = vadd.f32 0.0, %v842
      %v844 = vpop.f32.mrf.mxu0
      %v845 = vadd.f32 0.0, %v844
      %846 = vdwg.mxu0
      %v855 = vunpack.c.l.b16 %v655
      %v856 = vunpack.c.l.b16 %v656
      %v857 = vunpack.c.l.b16 %v657
      %v858 = vunpack.c.l.b16 %v658
      %v859 = vunpack.c.l.b16 %v659
      %v860 = vunpack.c.l.b16 %v660
      %v861 = vunpack.c.l.b16 %v661
      %v862 = vunpack.c.l.b16 %v662
      %v863 = vpack.c.b16 %v856, %v855
      %v864 = vpack.c.b16 %v858, %v857
      %v865 = vpack.c.b16 %v860, %v859
      %v866 = vpack.c.b16 %v862, %v861
      %v868 = vsel %vm801, %v863, 0
      %v871 = vsel %vm801, %v864, 0
      %v874 = vsel %vm801, %v865, 0
      %v877 = vsel %vm801, %v866, 0
      %v880 = vsel %vm814, %v663, 0
      %882 = vmatpush.bf16.msra.mxu0 0
      %883 = vmatpush.bf16.msra.mxu0 0
      %884 = vmatpush.bf16.msra.mxu0 0
      %885 = vmatpush.bf16.msra.mxu0 0
      %886 = vmatpush.bf16.msra.mxu0 0
      %887 = vmatpush.bf16.msra.mxu0 0
      %888 = vmatpush.bf16.msra.mxu0 0
      %889 = vmatpush.bf16.msra.mxu0 %v880
      %890 = vmatmul.bf16.gmra.mxu0 %v868
      %v891 = vpop.f32.mrf.mxu0
      %v892 = vadd.f32 %v828, %v891
      %v893 = vpop.f32.mrf.mxu0
      %v894 = vadd.f32 %v830, %v893
      %895 = vmatmul.bf16.gmra.mxu0 %v871
      %v896 = vpop.f32.mrf.mxu0
      %v897 = vadd.f32 %v833, %v896
      %v898 = vpop.f32.mrf.mxu0
      %v899 = vadd.f32 %v835, %v898
      %900 = vmatmul.bf16.gmra.mxu0 %v874
      %v901 = vpop.f32.mrf.mxu0
      %v902 = vadd.f32 %v838, %v901
      %v903 = vpop.f32.mrf.mxu0
      %v904 = vadd.f32 %v840, %v903
      %905 = vmatmul.bf16.gmra.mxu0 %v877
      %v906 = vpop.f32.mrf.mxu0
      %v907 = vadd.f32 %v843, %v906
      %v908 = vpop.f32.mrf.mxu0
      %v909 = vadd.f32 %v845, %v908
      %910 = vdwg.mxu0
      %v911 = vld [vmem:[#allocation2] sm:$0xe]
      %v912 = vld [vmem:[#allocation2 + $0x8] sm:$0xe]
      %v913 = vld [vmem:[#allocation2 + $0x10] sm:$0xe]
      %v914 = vld [vmem:[#allocation2 + $0x18] sm:$0xe]
      %v915 = vld [vmem:[#allocation2 + $0x20] sm:$0xe]
      %v916 = vld [vmem:[#allocation2 + $0x28] sm:$0xe]
      %v917 = vld [vmem:[#allocation2 + $0x30] sm:$0xe]
      %v918 = vld [vmem:[#allocation2 + $0x38] sm:$0xe]
      %vm935 = vcmask 1042432
      %vm936 = vcmask 1046532
      %vm937 = vmor %vm935, %vm936
      %v938 = vrot.slane %v911, 5
      %v939 = vrot.slane %v938, 4
      %v940 = vrot.slane %v664, 5
      %v941 = vsel %vm937, %v939, %v940
      %v942 = vrot.slane %v912, 5
      %v943 = vrot.slane %v942, 4
      %v944 = vrot.slane %v665, 5
      %v945 = vsel %vm937, %v943, %v944
      %v946 = vrot.slane %v913, 5
      %v947 = vrot.slane %v946, 4
      %v948 = vrot.slane %v666, 5
      %v949 = vsel %vm937, %v947, %v948
      %v950 = vrot.slane %v914, 5
      %v951 = vrot.slane %v950, 4
      %v952 = vrot.slane %v667, 5
      %v953 = vsel %vm937, %v951, %v952
      %v954 = vrot.slane %v915, 5
      %v955 = vrot.slane %v954, 4
      %v956 = vrot.slane %v668, 5
      %v957 = vsel %vm937, %v955, %v956
      %v958 = vrot.slane %v916, 5
      %v959 = vrot.slane %v958, 4
      %v960 = vrot.slane %v669, 5
      %v961 = vsel %vm937, %v959, %v960
      %v962 = vrot.slane %v917, 5
      %v963 = vrot.slane %v962, 4
      %v964 = vrot.slane %v670, 5
      %v965 = vsel %vm937, %v963, %v964
      %v966 = vrot.slane %v918, 5
      %v967 = vrot.slane %v966, 4
      %v968 = vrot.slane %v671, 5
      %v969 = vsel %vm937, %v967, %v968
      %s970 = scalar_lea.vmem %s413, 8
      %v971 = vld [vmem:[%s970] sm:$0xf]
      %v972 = vunpack.c.l.b16 %v941
      %v973 = vunpack.c.l.b16 %v945
      %v974 = vunpack.c.l.b16 %v949
      %v975 = vunpack.c.l.b16 %v953
      %v976 = vunpack.c.l.b16 %v957
      %v977 = vunpack.c.l.b16 %v961
      %v978 = vunpack.c.l.b16 %v965
      %v979 = vunpack.c.l.b16 %v969
      %v980 = vpack.c.b16 %v973, %v972
      %v981 = vpack.c.b16 %v975, %v974
      %v982 = vpack.c.b16 %v977, %v976
      %v983 = vpack.c.b16 %v979, %v978
      %v985 = vsel %vm801, %v980, 0
      %v988 = vsel %vm801, %v981, 0
      %v991 = vsel %vm801, %v982, 0
      %v994 = vsel %vm801, %v983, 0
      %v997 = vsel %vm814, %v971, 0
      %999 = vmatpush.bf16.msra.mxu0 0
      %1000 = vmatpush.bf16.msra.mxu0 0
      %1001 = vmatpush.bf16.msra.mxu0 0
      %1002 = vmatpush.bf16.msra.mxu0 0
      %1003 = vmatpush.bf16.msra.mxu0 0
      %1004 = vmatpush.bf16.msra.mxu0 0
      %1005 = vmatpush.bf16.msra.mxu0 0
      %1006 = vmatpush.bf16.msra.mxu0 %v997
      %1007 = vmatmul.bf16.gmra.mxu0 %v985
      %v1008 = vpop.f32.mrf.mxu0
      %v1009 = vadd.f32 0.0, %v1008
      %v1010 = vpop.f32.mrf.mxu0
      %v1011 = vadd.f32 0.0, %v1010
      %1012 = vmatmul.bf16.gmra.mxu0 %v988
      %v1013 = vpop.f32.mrf.mxu0
      %v1014 = vadd.f32 0.0, %v1013
      %v1015 = vpop.f32.mrf.mxu0
      %v1016 = vadd.f32 0.0, %v1015
      %1017 = vmatmul.bf16.gmra.mxu0 %v991
      %v1018 = vpop.f32.mrf.mxu0
      %v1019 = vadd.f32 0.0, %v1018
      %v1020 = vpop.f32.mrf.mxu0
      %v1021 = vadd.f32 0.0, %v1020
      %1022 = vmatmul.bf16.gmra.mxu0 %v994
      %v1023 = vpop.f32.mrf.mxu0
      %v1024 = vadd.f32 0.0, %v1023
      %v1025 = vpop.f32.mrf.mxu0
      %v1026 = vadd.f32 0.0, %v1025
      %1027 = vdwg.mxu0
      %v1028 = vadd.f32 %v892, %v1009
      %v1029 = vadd.f32 %v894, %v1011
      %v1030 = vadd.f32 %v897, %v1014
      %v1031 = vadd.f32 %v899, %v1016
      %v1032 = vadd.f32 %v902, %v1019
      %v1033 = vadd.f32 %v904, %v1021
      %v1034 = vadd.f32 %v907, %v1024
      %v1035 = vadd.f32 %v909, %v1026
      %v1036 = vld [vmem:[%s600] sm:$0xf]
      %v1037 = vld [vmem:[%s600 + $0x8] sm:$0xf]
      %v1038 = vld [vmem:[%s600 + $0x10] sm:$0xf]
      %v1039 = vld [vmem:[%s600 + $0x18] sm:$0xf]
      %v1040 = vld [vmem:[%s600 + $0x20] sm:$0xf]
      %v1041 = vld [vmem:[%s600 + $0x28] sm:$0xf]
      %v1042 = vld [vmem:[%s600 + $0x30] sm:$0xf]
      %v1043 = vld [vmem:[%s600 + $0x38] sm:$0xf]
      %s1044 = scalar_lea.vmem %s413, 12
      %v1045 = vld [vmem:[%s1044] sm:$0xf]
      %v1054 = vunpack.c.l.b16 %v1036
      %v1055 = vunpack.c.l.b16 %v1037
      %v1056 = vunpack.c.l.b16 %v1038
      %v1057 = vunpack.c.l.b16 %v1039
      %v1058 = vunpack.c.l.b16 %v1040
      %v1059 = vunpack.c.l.b16 %v1041
      %v1060 = vunpack.c.l.b16 %v1042
      %v1061 = vunpack.c.l.b16 %v1043
      %v1062 = vpack.c.b16 %v1055, %v1054
      %v1063 = vpack.c.b16 %v1057, %v1056
      %v1064 = vpack.c.b16 %v1059, %v1058
      %v1065 = vpack.c.b16 %v1061, %v1060
      %v1067 = vsel %vm801, %v1062, 0
      %v1070 = vsel %vm801, %v1063, 0
      %v1073 = vsel %vm801, %v1064, 0
      %v1076 = vsel %vm801, %v1065, 0
      %v1079 = vsel %vm814, %v1045, 0
      %1081 = vmatpush.bf16.msra.mxu0 0
      %1082 = vmatpush.bf16.msra.mxu0 0
      %1083 = vmatpush.bf16.msra.mxu0 0
      %1084 = vmatpush.bf16.msra.mxu0 0
      %1085 = vmatpush.bf16.msra.mxu0 0
      %1086 = vmatpush.bf16.msra.mxu0 0
      %1087 = vmatpush.bf16.msra.mxu0 0
      %1088 = vmatpush.bf16.msra.mxu0 %v1079
      %1089 = vmatmul.bf16.gmra.mxu0 %v1067
      %v1090 = vpop.f32.mrf.mxu0
      %v1091 = vadd.f32 0.0, %v1090
      %v1092 = vpop.f32.mrf.mxu0
      %v1093 = vadd.f32 0.0, %v1092
      %1094 = vmatmul.bf16.gmra.mxu0 %v1070
      %v1095 = vpop.f32.mrf.mxu0
      %v1096 = vadd.f32 0.0, %v1095
      %v1097 = vpop.f32.mrf.mxu0
      %v1098 = vadd.f32 0.0, %v1097
      %1099 = vmatmul.bf16.gmra.mxu0 %v1073
      %v1100 = vpop.f32.mrf.mxu0
      %v1101 = vadd.f32 0.0, %v1100
      %v1102 = vpop.f32.mrf.mxu0
      %v1103 = vadd.f32 0.0, %v1102
      %1104 = vmatmul.bf16.gmra.mxu0 %v1076
      %v1105 = vpop.f32.mrf.mxu0
      %v1106 = vadd.f32 0.0, %v1105
      %v1107 = vpop.f32.mrf.mxu0
      %v1108 = vadd.f32 0.0, %v1107
      %1109 = vdwg.mxu0
      %v1110 = vadd.f32 %v1028, %v1091
      %v1111 = vadd.f32 %v1029, %v1093
      %v1112 = vadd.f32 %v1030, %v1096
      %v1113 = vadd.f32 %v1031, %v1098
      %v1114 = vadd.f32 %v1032, %v1101
      %v1115 = vadd.f32 %v1033, %v1103
      %v1116 = vadd.f32 %v1034, %v1106
      %v1117 = vadd.f32 %v1035, %v1108
      %v1118 = vld [vmem:[%s600] sm:$0xf]
      %v1119 = vld [vmem:[%s600 + $0x4] sm:$0x1]
      %v1120 = vld [vmem:[%s600 + $0x8] sm:$0xf]
      %v1121 = vld [vmem:[%s600 + $0xc] sm:$0x1]
      %v1122 = vld [vmem:[%s600 + $0x10] sm:$0xf]
      %v1123 = vld [vmem:[%s600 + $0x14] sm:$0x1]
      %v1124 = vld [vmem:[%s600 + $0x18] sm:$0xf]
      %v1125 = vld [vmem:[%s600 + $0x1c] sm:$0x1]
      %v1126 = vld [vmem:[%s600 + $0x20] sm:$0xf]
      %v1127 = vld [vmem:[%s600 + $0x24] sm:$0x1]
      %v1128 = vld [vmem:[%s600 + $0x28] sm:$0xf]
      %v1129 = vld [vmem:[%s600 + $0x2c] sm:$0x1]
      %v1130 = vld [vmem:[%s600 + $0x30] sm:$0xf]
      %v1131 = vld [vmem:[%s600 + $0x34] sm:$0x1]
      %v1132 = vld [vmem:[%s600 + $0x38] sm:$0xf]
      %v1133 = vld [vmem:[%s600 + $0x3c] sm:$0x1]
      %v1135 = vshrl.u32 %v1118, 16
      %v1137 = vrot.slane %v1135, 4
      %v1138 = vshll.u32 %v1118, 16
      %v1140 = vrot.slane %v1138, 5
      %v1141 = vor.u32 %v1137, %v1140
      %v1142 = vrot.slane %v1141, 4
      %v1144 = vshll.u32 %v1119, 16
      %v1146 = vrot.slane %v1144, 5
      %v1147 = vsel %vm674, %v1142, %v1146
      %v1149 = vshrl.u32 %v1120, 16
      %v1151 = vrot.slane %v1149, 4
      %v1152 = vshll.u32 %v1120, 16
      %v1154 = vrot.slane %v1152, 5
      %v1155 = vor.u32 %v1151, %v1154
      %v1156 = vrot.slane %v1155, 4
      %v1158 = vshll.u32 %v1121, 16
      %v1160 = vrot.slane %v1158, 5
      %v1161 = vsel %vm674, %v1156, %v1160
      %v1163 = vshrl.u32 %v1122, 16
      %v1165 = vrot.slane %v1163, 4
      %v1166 = vshll.u32 %v1122, 16
      %v1168 = vrot.slane %v1166, 5
      %v1169 = vor.u32 %v1165, %v1168
      %v1170 = vrot.slane %v1169, 4
      %v1172 = vshll.u32 %v1123, 16
      %v1174 = vrot.slane %v1172, 5
      %v1175 = vsel %vm674, %v1170, %v1174
      %v1177 = vshrl.u32 %v1124, 16
      %v1179 = vrot.slane %v1177, 4
      %v1180 = vshll.u32 %v1124, 16
      %v1182 = vrot.slane %v1180, 5
      %v1183 = vor.u32 %v1179, %v1182
      %v1184 = vrot.slane %v1183, 4
      %v1186 = vshll.u32 %v1125, 16
      %v1188 = vrot.slane %v1186, 5
      %v1189 = vsel %vm674, %v1184, %v1188
      %v1191 = vshrl.u32 %v1126, 16
      %v1193 = vrot.slane %v1191, 4
      %v1194 = vshll.u32 %v1126, 16
      %v1196 = vrot.slane %v1194, 5
      %v1197 = vor.u32 %v1193, %v1196
      %v1198 = vrot.slane %v1197, 4
      %v1200 = vshll.u32 %v1127, 16
      %v1202 = vrot.slane %v1200, 5
      %v1203 = vsel %vm674, %v1198, %v1202
      %v1205 = vshrl.u32 %v1128, 16
      %v1207 = vrot.slane %v1205, 4
      %v1208 = vshll.u32 %v1128, 16
      %v1210 = vrot.slane %v1208, 5
      %v1211 = vor.u32 %v1207, %v1210
      %v1212 = vrot.slane %v1211, 4
      %v1214 = vshll.u32 %v1129, 16
      %v1216 = vrot.slane %v1214, 5
      %v1217 = vsel %vm674, %v1212, %v1216
      %v1219 = vshrl.u32 %v1130, 16
      %v1221 = vrot.slane %v1219, 4
      %v1222 = vshll.u32 %v1130, 16
      %v1224 = vrot.slane %v1222, 5
      %v1225 = vor.u32 %v1221, %v1224
      %v1226 = vrot.slane %v1225, 4
      %v1228 = vshll.u32 %v1131, 16
      %v1230 = vrot.slane %v1228, 5
      %v1231 = vsel %vm674, %v1226, %v1230
      %v1233 = vshrl.u32 %v1132, 16
      %v1235 = vrot.slane %v1233, 4
      %v1236 = vshll.u32 %v1132, 16
      %v1238 = vrot.slane %v1236, 5
      %v1239 = vor.u32 %v1235, %v1238
      %v1240 = vrot.slane %v1239, 4
      %v1242 = vshll.u32 %v1133, 16
      %v1244 = vrot.slane %v1242, 5
      %v1245 = vsel %vm674, %v1240, %v1244
      %s1246 = scalar_lea.vmem %s413, 16
      %v1247 = vld [vmem:[%s1246] sm:$0xf]
      %v1248 = vunpack.c.l.b16 %v1147
      %v1249 = vunpack.c.l.b16 %v1161
      %v1250 = vunpack.c.l.b16 %v1175
      %v1251 = vunpack.c.l.b16 %v1189
      %v1252 = vunpack.c.l.b16 %v1203
      %v1253 = vunpack.c.l.b16 %v1217
      %v1254 = vunpack.c.l.b16 %v1231
      %v1255 = vunpack.c.l.b16 %v1245
      %v1256 = vpack.c.b16 %v1249, %v1248
      %v1257 = vpack.c.b16 %v1251, %v1250
      %v1258 = vpack.c.b16 %v1253, %v1252
      %v1259 = vpack.c.b16 %v1255, %v1254
      %v1261 = vsel %vm801, %v1256, 0
      %v1264 = vsel %vm801, %v1257, 0
      %v1267 = vsel %vm801, %v1258, 0
      %v1270 = vsel %vm801, %v1259, 0
      %v1273 = vsel %vm814, %v1247, 0
      %1275 = vmatpush.bf16.msra.mxu0 0
      %1276 = vmatpush.bf16.msra.mxu0 0
      %1277 = vmatpush.bf16.msra.mxu0 0
      %1278 = vmatpush.bf16.msra.mxu0 0
      %1279 = vmatpush.bf16.msra.mxu0 0
      %1280 = vmatpush.bf16.msra.mxu0 0
      %1281 = vmatpush.bf16.msra.mxu0 0
      %1282 = vmatpush.bf16.msra.mxu0 %v1273
      %1283 = vmatmul.bf16.gmra.mxu0 %v1261
      %v1284 = vpop.f32.mrf.mxu0
      %v1285 = vadd.f32 0.0, %v1284
      %v1286 = vpop.f32.mrf.mxu0
      %v1287 = vadd.f32 0.0, %v1286
      %1288 = vmatmul.bf16.gmra.mxu0 %v1264
      %v1289 = vpop.f32.mrf.mxu0
      %v1290 = vadd.f32 0.0, %v1289
      %v1291 = vpop.f32.mrf.mxu0
      %v1292 = vadd.f32 0.0, %v1291
      %1293 = vmatmul.bf16.gmra.mxu0 %v1267
      %v1294 = vpop.f32.mrf.mxu0
      %v1295 = vadd.f32 0.0, %v1294
      %v1296 = vpop.f32.mrf.mxu0
      %v1297 = vadd.f32 0.0, %v1296
      %1298 = vmatmul.bf16.gmra.mxu0 %v1270
      %v1299 = vpop.f32.mrf.mxu0
      %v1300 = vadd.f32 0.0, %v1299
      %v1301 = vpop.f32.mrf.mxu0
      %v1302 = vadd.f32 0.0, %v1301
      %1303 = vdwg.mxu0
      %v1304 = vadd.f32 %v1110, %v1285
      %v1305 = vadd.f32 %v1111, %v1287
      %v1306 = vadd.f32 %v1112, %v1290
      %v1307 = vadd.f32 %v1113, %v1292
      %v1308 = vadd.f32 %v1114, %v1295
      %v1309 = vadd.f32 %v1115, %v1297
      %v1310 = vadd.f32 %v1116, %v1300
      %v1311 = vadd.f32 %v1117, %v1302
      %v1312 = vld [vmem:[%s600] sm:$0xe]
      %v1313 = vld [vmem:[%s600 + $0x8] sm:$0xe]
      %v1314 = vld [vmem:[%s600 + $0x10] sm:$0xe]
      %v1315 = vld [vmem:[%s600 + $0x18] sm:$0xe]
      %v1316 = vld [vmem:[%s600 + $0x20] sm:$0xe]
      %v1317 = vld [vmem:[%s600 + $0x28] sm:$0xe]
      %v1318 = vld [vmem:[%s600 + $0x30] sm:$0xe]
      %v1319 = vld [vmem:[%s600 + $0x38] sm:$0xe]
      %v1336 = vrot.slane %v1312, 5
      %v1337 = vrot.slane %v1336, 4
      %v1338 = vrot.slane %v1119, 5
      %v1339 = vsel %vm937, %v1337, %v1338
      %v1340 = vrot.slane %v1313, 5
      %v1341 = vrot.slane %v1340, 4
      %v1342 = vrot.slane %v1121, 5
      %v1343 = vsel %vm937, %v1341, %v1342
      %v1344 = vrot.slane %v1314, 5
      %v1345 = vrot.slane %v1344, 4
      %v1346 = vrot.slane %v1123, 5
      %v1347 = vsel %vm937, %v1345, %v1346
      %v1348 = vrot.slane %v1315, 5
      %v1349 = vrot.slane %v1348, 4
      %v1350 = vrot.slane %v1125, 5
      %v1351 = vsel %vm937, %v1349, %v1350
      %v1352 = vrot.slane %v1316, 5
      %v1353 = vrot.slane %v1352, 4
      %v1354 = vrot.slane %v1127, 5
      %v1355 = vsel %vm937, %v1353, %v1354
      %v1356 = vrot.slane %v1317, 5
      %v1357 = vrot.slane %v1356, 4
      %v1358 = vrot.slane %v1129, 5
      %v1359 = vsel %vm937, %v1357, %v1358
      %v1360 = vrot.slane %v1318, 5
      %v1361 = vrot.slane %v1360, 4
      %v1362 = vrot.slane %v1131, 5
      %v1363 = vsel %vm937, %v1361, %v1362
      %v1364 = vrot.slane %v1319, 5
      %v1365 = vrot.slane %v1364, 4
      %v1366 = vrot.slane %v1133, 5
      %v1367 = vsel %vm937, %v1365, %v1366
      %s1368 = scalar_lea.vmem %s413, 20
      %v1369 = vld [vmem:[%s1368] sm:$0xf]
      %v1370 = vunpack.c.l.b16 %v1339
      %v1371 = vunpack.c.l.b16 %v1343
      %v1372 = vunpack.c.l.b16 %v1347
      %v1373 = vunpack.c.l.b16 %v1351
      %v1374 = vunpack.c.l.b16 %v1355
      %v1375 = vunpack.c.l.b16 %v1359
      %v1376 = vunpack.c.l.b16 %v1363
      %v1377 = vunpack.c.l.b16 %v1367
      %v1378 = vpack.c.b16 %v1371, %v1370
      %v1379 = vpack.c.b16 %v1373, %v1372
      %v1380 = vpack.c.b16 %v1375, %v1374
      %v1381 = vpack.c.b16 %v1377, %v1376
      %v1383 = vsel %vm801, %v1378, 0
      %v1386 = vsel %vm801, %v1379, 0
      %v1389 = vsel %vm801, %v1380, 0
      %v1392 = vsel %vm801, %v1381, 0
      %v1395 = vsel %vm814, %v1369, 0
      %1397 = vmatpush.bf16.msra.mxu0 0
      %1398 = vmatpush.bf16.msra.mxu0 0
      %1399 = vmatpush.bf16.msra.mxu0 0
      %1400 = vmatpush.bf16.msra.mxu0 0
      %1401 = vmatpush.bf16.msra.mxu0 0
      %1402 = vmatpush.bf16.msra.mxu0 0
      %1403 = vmatpush.bf16.msra.mxu0 0
      %1404 = vmatpush.bf16.msra.mxu0 %v1395
      %1405 = vmatmul.bf16.gmra.mxu0 %v1383
      %v1406 = vpop.f32.mrf.mxu0
      %v1407 = vadd.f32 0.0, %v1406
      %v1408 = vpop.f32.mrf.mxu0
      %v1409 = vadd.f32 0.0, %v1408
      %1410 = vmatmul.bf16.gmra.mxu0 %v1386
      %v1411 = vpop.f32.mrf.mxu0
      %v1412 = vadd.f32 0.0, %v1411
      %v1413 = vpop.f32.mrf.mxu0
      %v1414 = vadd.f32 0.0, %v1413
      %1415 = vmatmul.bf16.gmra.mxu0 %v1389
      %v1416 = vpop.f32.mrf.mxu0
      %v1417 = vadd.f32 0.0, %v1416
      %v1418 = vpop.f32.mrf.mxu0
      %v1419 = vadd.f32 0.0, %v1418
      %1420 = vmatmul.bf16.gmra.mxu0 %v1392
      %v1421 = vpop.f32.mrf.mxu0
      %v1422 = vadd.f32 0.0, %v1421
      %v1423 = vpop.f32.mrf.mxu0
      %v1424 = vadd.f32 0.0, %v1423
      %1425 = vdwg.mxu0
      %v1426 = vadd.f32 %v1304, %v1407
      %v1427 = vadd.f32 %v1305, %v1409
      %v1428 = vadd.f32 %v1306, %v1412
      %v1429 = vadd.f32 %v1307, %v1414
      %v1430 = vadd.f32 %v1308, %v1417
      %v1431 = vadd.f32 %v1309, %v1419
      %v1432 = vadd.f32 %v1310, %v1422
      %v1433 = vadd.f32 %v1311, %v1424
      %s1434 = scalar_lea.vmem [#allocation2], 16
      %v1435 = vld [vmem:[%s1434] sm:$0xf]
      %v1436 = vld [vmem:[%s1434 + $0x8] sm:$0xf]
      %v1437 = vld [vmem:[%s1434 + $0x10] sm:$0xf]
      %v1438 = vld [vmem:[%s1434 + $0x18] sm:$0xf]
      %v1439 = vld [vmem:[%s1434 + $0x20] sm:$0xf]
      %v1440 = vld [vmem:[%s1434 + $0x28] sm:$0xf]
      %v1441 = vld [vmem:[%s1434 + $0x30] sm:$0xf]
      %v1442 = vld [vmem:[%s1434 + $0x38] sm:$0xf]
      %s1443 = scalar_lea.vmem %s413, 24
      %v1444 = vld [vmem:[%s1443] sm:$0xf]
      %v1453 = vunpack.c.l.b16 %v1435
      %v1454 = vunpack.c.l.b16 %v1436
      %v1455 = vunpack.c.l.b16 %v1437
      %v1456 = vunpack.c.l.b16 %v1438
      %v1457 = vunpack.c.l.b16 %v1439
      %v1458 = vunpack.c.l.b16 %v1440
      %v1459 = vunpack.c.l.b16 %v1441
      %v1460 = vunpack.c.l.b16 %v1442
      %v1461 = vpack.c.b16 %v1454, %v1453
      %v1462 = vpack.c.b16 %v1456, %v1455
      %v1463 = vpack.c.b16 %v1458, %v1457
      %v1464 = vpack.c.b16 %v1460, %v1459
      %v1466 = vsel %vm801, %v1461, 0
      %v1469 = vsel %vm801, %v1462, 0
      %v1472 = vsel %vm801, %v1463, 0
      %v1475 = vsel %vm801, %v1464, 0
      %v1478 = vsel %vm814, %v1444, 0
      %1480 = vmatpush.bf16.msra.mxu0 0
      %1481 = vmatpush.bf16.msra.mxu0 0
      %1482 = vmatpush.bf16.msra.mxu0 0
      %1483 = vmatpush.bf16.msra.mxu0 0
      %1484 = vmatpush.bf16.msra.mxu0 0
      %1485 = vmatpush.bf16.msra.mxu0 0
      %1486 = vmatpush.bf16.msra.mxu0 0
      %1487 = vmatpush.bf16.msra.mxu0 %v1478
      %1488 = vmatmul.bf16.gmra.mxu0 %v1466
      %v1489 = vpop.f32.mrf.mxu0
      %v1490 = vadd.f32 0.0, %v1489
      %v1491 = vpop.f32.mrf.mxu0
      %v1492 = vadd.f32 0.0, %v1491
      %1493 = vmatmul.bf16.gmra.mxu0 %v1469
      %v1494 = vpop.f32.mrf.mxu0
      %v1495 = vadd.f32 0.0, %v1494
      %v1496 = vpop.f32.mrf.mxu0
      %v1497 = vadd.f32 0.0, %v1496
      %1498 = vmatmul.bf16.gmra.mxu0 %v1472
      %v1499 = vpop.f32.mrf.mxu0
      %v1500 = vadd.f32 0.0, %v1499
      %v1501 = vpop.f32.mrf.mxu0
      %v1502 = vadd.f32 0.0, %v1501
      %1503 = vmatmul.bf16.gmra.mxu0 %v1475
      %v1504 = vpop.f32.mrf.mxu0
      %v1505 = vadd.f32 0.0, %v1504
      %v1506 = vpop.f32.mrf.mxu0
      %v1507 = vadd.f32 0.0, %v1506
      %1508 = vdwg.mxu0
      %v1509 = vadd.f32 %v1426, %v1490
      %v1510 = vadd.f32 %v1427, %v1492
      %v1511 = vadd.f32 %v1428, %v1495
      %v1512 = vadd.f32 %v1429, %v1497
      %v1513 = vadd.f32 %v1430, %v1500
      %v1514 = vadd.f32 %v1431, %v1502
      %v1515 = vadd.f32 %v1432, %v1505
      %v1516 = vadd.f32 %v1433, %v1507
      %v1517 = vld [vmem:[%s1434] sm:$0xf]
      %v1518 = vld [vmem:[%s1434 + $0x4] sm:$0x1]
      %v1519 = vld [vmem:[%s1434 + $0x8] sm:$0xf]
      %v1520 = vld [vmem:[%s1434 + $0xc] sm:$0x1]
      %v1521 = vld [vmem:[%s1434 + $0x10] sm:$0xf]
      %v1522 = vld [vmem:[%s1434 + $0x14] sm:$0x1]
      %v1523 = vld [vmem:[%s1434 + $0x18] sm:$0xf]
      %v1524 = vld [vmem:[%s1434 + $0x1c] sm:$0x1]
      %v1525 = vld [vmem:[%s1434 + $0x20] sm:$0xf]
      %v1526 = vld [vmem:[%s1434 + $0x24] sm:$0x1]
      %v1527 = vld [vmem:[%s1434 + $0x28] sm:$0xf]
      %v1528 = vld [vmem:[%s1434 + $0x2c] sm:$0x1]
      %v1529 = vld [vmem:[%s1434 + $0x30] sm:$0xf]
      %v1530 = vld [vmem:[%s1434 + $0x34] sm:$0x1]
      %v1531 = vld [vmem:[%s1434 + $0x38] sm:$0xf]
      %v1532 = vld [vmem:[%s1434 + $0x3c] sm:$0x1]
      %v1534 = vshrl.u32 %v1517, 16
      %v1536 = vrot.slane %v1534, 4
      %v1537 = vshll.u32 %v1517, 16
      %v1539 = vrot.slane %v1537, 5
      %v1540 = vor.u32 %v1536, %v1539
      %v1541 = vrot.slane %v1540, 4
      %v1543 = vshll.u32 %v1518, 16
      %v1545 = vrot.slane %v1543, 5
      %v1546 = vsel %vm674, %v1541, %v1545
      %v1548 = vshrl.u32 %v1519, 16
      %v1550 = vrot.slane %v1548, 4
      %v1551 = vshll.u32 %v1519, 16
      %v1553 = vrot.slane %v1551, 5
      %v1554 = vor.u32 %v1550, %v1553
      %v1555 = vrot.slane %v1554, 4
      %v1557 = vshll.u32 %v1520, 16
      %v1559 = vrot.slane %v1557, 5
      %v1560 = vsel %vm674, %v1555, %v1559
      %v1562 = vshrl.u32 %v1521, 16
      %v1564 = vrot.slane %v1562, 4
      %v1565 = vshll.u32 %v1521, 16
      %v1567 = vrot.slane %v1565, 5
      %v1568 = vor.u32 %v1564, %v1567
      %v1569 = vrot.slane %v1568, 4
      %v1571 = vshll.u32 %v1522, 16
      %v1573 = vrot.slane %v1571, 5
      %v1574 = vsel %vm674, %v1569, %v1573
      %v1576 = vshrl.u32 %v1523, 16
      %v1578 = vrot.slane %v1576, 4
      %v1579 = vshll.u32 %v1523, 16
      %v1581 = vrot.slane %v1579, 5
      %v1582 = vor.u32 %v1578, %v1581
      %v1583 = vrot.slane %v1582, 4
      %v1585 = vshll.u32 %v1524, 16
      %v1587 = vrot.slane %v1585, 5
      %v1588 = vsel %vm674, %v1583, %v1587
      %v1590 = vshrl.u32 %v1525, 16
      %v1592 = vrot.slane %v1590, 4
      %v1593 = vshll.u32 %v1525, 16
      %v1595 = vrot.slane %v1593, 5
      %v1596 = vor.u32 %v1592, %v1595
      %v1597 = vrot.slane %v1596, 4
      %v1599 = vshll.u32 %v1526, 16
      %v1601 = vrot.slane %v1599, 5
      %v1602 = vsel %vm674, %v1597, %v1601
      %v1604 = vshrl.u32 %v1527, 16
      %v1606 = vrot.slane %v1604, 4
      %v1607 = vshll.u32 %v1527, 16
      %v1609 = vrot.slane %v1607, 5
      %v1610 = vor.u32 %v1606, %v1609
      %v1611 = vrot.slane %v1610, 4
      %v1613 = vshll.u32 %v1528, 16
      %v1615 = vrot.slane %v1613, 5
      %v1616 = vsel %vm674, %v1611, %v1615
      %v1618 = vshrl.u32 %v1529, 16
      %v1620 = vrot.slane %v1618, 4
      %v1621 = vshll.u32 %v1529, 16
      %v1623 = vrot.slane %v1621, 5
      %v1624 = vor.u32 %v1620, %v1623
      %v1625 = vrot.slane %v1624, 4
      %v1627 = vshll.u32 %v1530, 16
      %v1629 = vrot.slane %v1627, 5
      %v1630 = vsel %vm674, %v1625, %v1629
      %v1632 = vshrl.u32 %v1531, 16
      %v1634 = vrot.slane %v1632, 4
      %v1635 = vshll.u32 %v1531, 16
      %v1637 = vrot.slane %v1635, 5
      %v1638 = vor.u32 %v1634, %v1637
      %v1639 = vrot.slane %v1638, 4
      %v1641 = vshll.u32 %v1532, 16
      %v1643 = vrot.slane %v1641, 5
      %v1644 = vsel %vm674, %v1639, %v1643
      %s1645 = scalar_lea.vmem %s413, 28
      %v1646 = vld [vmem:[%s1645] sm:$0xf]
      %v1647 = vunpack.c.l.b16 %v1546
      %v1648 = vunpack.c.l.b16 %v1560
      %v1649 = vunpack.c.l.b16 %v1574
      %v1650 = vunpack.c.l.b16 %v1588
      %v1651 = vunpack.c.l.b16 %v1602
      %v1652 = vunpack.c.l.b16 %v1616
      %v1653 = vunpack.c.l.b16 %v1630
      %v1654 = vunpack.c.l.b16 %v1644
      %v1655 = vpack.c.b16 %v1648, %v1647
      %v1656 = vpack.c.b16 %v1650, %v1649
      %v1657 = vpack.c.b16 %v1652, %v1651
      %v1658 = vpack.c.b16 %v1654, %v1653
      %v1660 = vsel %vm801, %v1655, 0
      %v1663 = vsel %vm801, %v1656, 0
      %v1666 = vsel %vm801, %v1657, 0
      %v1669 = vsel %vm801, %v1658, 0
      %v1672 = vsel %vm814, %v1646, 0
      %1674 = vmatpush.bf16.msra.mxu0 0
      %1675 = vmatpush.bf16.msra.mxu0 0
      %1676 = vmatpush.bf16.msra.mxu0 0
      %1677 = vmatpush.bf16.msra.mxu0 0
      %1678 = vmatpush.bf16.msra.mxu0 0
      %1679 = vmatpush.bf16.msra.mxu0 0
      %1680 = vmatpush.bf16.msra.mxu0 0
      %1681 = vmatpush.bf16.msra.mxu0 %v1672
      %1682 = vmatmul.bf16.gmra.mxu0 %v1660
      %v1683 = vpop.f32.mrf.mxu0
      %v1684 = vadd.f32 0.0, %v1683
      %v1685 = vpop.f32.mrf.mxu0
      %v1686 = vadd.f32 0.0, %v1685
      %1687 = vmatmul.bf16.gmra.mxu0 %v1663
      %v1688 = vpop.f32.mrf.mxu0
      %v1689 = vadd.f32 0.0, %v1688
      %v1690 = vpop.f32.mrf.mxu0
      %v1691 = vadd.f32 0.0, %v1690
      %1692 = vmatmul.bf16.gmra.mxu0 %v1666
      %v1693 = vpop.f32.mrf.mxu0
      %v1694 = vadd.f32 0.0, %v1693
      %v1695 = vpop.f32.mrf.mxu0
      %v1696 = vadd.f32 0.0, %v1695
      %1697 = vmatmul.bf16.gmra.mxu0 %v1669
      %v1698 = vpop.f32.mrf.mxu0
      %v1699 = vadd.f32 0.0, %v1698
      %v1700 = vpop.f32.mrf.mxu0
      %v1701 = vadd.f32 0.0, %v1700
      %1702 = vdwg.mxu0
      %v1703 = vadd.f32 %v1509, %v1684
      %v1704 = vadd.f32 %v1510, %v1686
      %v1705 = vadd.f32 %v1511, %v1689
      %v1706 = vadd.f32 %v1512, %v1691
      %v1707 = vadd.f32 %v1513, %v1694
      %v1708 = vadd.f32 %v1514, %v1696
      %v1709 = vadd.f32 %v1515, %v1699
      %v1710 = vadd.f32 %v1516, %v1701
      %v1711 = vld [vmem:[%s1434] sm:$0xe]
      %v1712 = vld [vmem:[%s1434 + $0x8] sm:$0xe]
      %v1713 = vld [vmem:[%s1434 + $0x10] sm:$0xe]
      %v1714 = vld [vmem:[%s1434 + $0x18] sm:$0xe]
      %v1715 = vld [vmem:[%s1434 + $0x20] sm:$0xe]
      %v1716 = vld [vmem:[%s1434 + $0x28] sm:$0xe]
      %v1717 = vld [vmem:[%s1434 + $0x30] sm:$0xe]
      %v1718 = vld [vmem:[%s1434 + $0x38] sm:$0xe]
      %v1735 = vrot.slane %v1711, 5
      %v1736 = vrot.slane %v1735, 4
      %v1737 = vrot.slane %v1518, 5
      %v1738 = vsel %vm937, %v1736, %v1737
      %v1739 = vrot.slane %v1712, 5
      %v1740 = vrot.slane %v1739, 4
      %v1741 = vrot.slane %v1520, 5
      %v1742 = vsel %vm937, %v1740, %v1741
      %v1743 = vrot.slane %v1713, 5
      %v1744 = vrot.slane %v1743, 4
      %v1745 = vrot.slane %v1522, 5
      %v1746 = vsel %vm937, %v1744, %v1745
      %v1747 = vrot.slane %v1714, 5
      %v1748 = vrot.slane %v1747, 4
      %v1749 = vrot.slane %v1524, 5
      %v1750 = vsel %vm937, %v1748, %v1749
      %v1751 = vrot.slane %v1715, 5
      %v1752 = vrot.slane %v1751, 4
      %v1753 = vrot.slane %v1526, 5
      %v1754 = vsel %vm937, %v1752, %v1753
      %v1755 = vrot.slane %v1716, 5
      %v1756 = vrot.slane %v1755, 4
      %v1757 = vrot.slane %v1528, 5
      %v1758 = vsel %vm937, %v1756, %v1757
      %v1759 = vrot.slane %v1717, 5
      %v1760 = vrot.slane %v1759, 4
      %v1761 = vrot.slane %v1530, 5
      %v1762 = vsel %vm937, %v1760, %v1761
      %v1763 = vrot.slane %v1718, 5
      %v1764 = vrot.slane %v1763, 4
      %v1765 = vrot.slane %v1532, 5
      %v1766 = vsel %vm937, %v1764, %v1765
      %s1767 = scalar_lea.vmem %s413, 32
      %v1768 = vld [vmem:[%s1767] sm:$0xf]
      %v1769 = vunpack.c.l.b16 %v1738
      %v1770 = vunpack.c.l.b16 %v1742
      %v1771 = vunpack.c.l.b16 %v1746
      %v1772 = vunpack.c.l.b16 %v1750
      %v1773 = vunpack.c.l.b16 %v1754
      %v1774 = vunpack.c.l.b16 %v1758
      %v1775 = vunpack.c.l.b16 %v1762
      %v1776 = vunpack.c.l.b16 %v1766
      %v1777 = vpack.c.b16 %v1770, %v1769
      %v1778 = vpack.c.b16 %v1772, %v1771
      %v1779 = vpack.c.b16 %v1774, %v1773
      %v1780 = vpack.c.b16 %v1776, %v1775
      %v1782 = vsel %vm801, %v1777, 0
      %v1785 = vsel %vm801, %v1778, 0
      %v1788 = vsel %vm801, %v1779, 0
      %v1791 = vsel %vm801, %v1780, 0
      %v1794 = vsel %vm814, %v1768, 0
      %1796 = vmatpush.bf16.msra.mxu0 0
      %1797 = vmatpush.bf16.msra.mxu0 0
      %1798 = vmatpush.bf16.msra.mxu0 0
      %1799 = vmatpush.bf16.msra.mxu0 0
      %1800 = vmatpush.bf16.msra.mxu0 0
      %1801 = vmatpush.bf16.msra.mxu0 0
      %1802 = vmatpush.bf16.msra.mxu0 0
      %1803 = vmatpush.bf16.msra.mxu0 %v1794
      %1804 = vmatmul.bf16.gmra.mxu0 %v1782
      %v1805 = vpop.f32.mrf.mxu0
      %v1806 = vadd.f32 0.0, %v1805
      %v1807 = vpop.f32.mrf.mxu0
      %v1808 = vadd.f32 0.0, %v1807
      %1809 = vmatmul.bf16.gmra.mxu0 %v1785
      %v1810 = vpop.f32.mrf.mxu0
      %v1811 = vadd.f32 0.0, %v1810
      %v1812 = vpop.f32.mrf.mxu0
      %v1813 = vadd.f32 0.0, %v1812
      %1814 = vmatmul.bf16.gmra.mxu0 %v1788
      %v1815 = vpop.f32.mrf.mxu0
      %v1816 = vadd.f32 0.0, %v1815
      %v1817 = vpop.f32.mrf.mxu0
      %v1818 = vadd.f32 0.0, %v1817
      %1819 = vmatmul.bf16.gmra.mxu0 %v1791
      %v1820 = vpop.f32.mrf.mxu0
      %v1821 = vadd.f32 0.0, %v1820
      %v1822 = vpop.f32.mrf.mxu0
      %v1823 = vadd.f32 0.0, %v1822
      %1824 = vdwg.mxu0
      %v1825 = vadd.f32 %v1703, %v1806
      %v1826 = vadd.f32 %v1704, %v1808
      %v1827 = vadd.f32 %v1705, %v1811
      %v1828 = vadd.f32 %v1706, %v1813
      %v1829 = vadd.f32 %v1707, %v1816
      %v1830 = vadd.f32 %v1708, %v1818
      %v1831 = vadd.f32 %v1709, %v1821
      %v1832 = vadd.f32 %v1710, %v1823
      %v1833 = vpack.c.bf16 %v1825, %v1825
      %v1834 = vpack.c.bf16 %v1826, %v1826
      %v1835 = vpack.c.bf16 %v1827, %v1827
      %v1836 = vpack.c.bf16 %v1828, %v1828
      %v1837 = vpack.c.bf16 %v1829, %v1829
      %v1838 = vpack.c.bf16 %v1830, %v1830
      %v1839 = vpack.c.bf16 %v1831, %v1831
      %v1840 = vpack.c.bf16 %v1832, %v1832
      %vm1841 = vcmask 60416
      %1842 = vst.msk [vmem:[%s428] sm:$0xf] %vm1841, %v1833
      %1843 = vst.msk [vmem:[%s428 + $0x4] sm:$0xf] %vm1841, %v1834
      %1844 = vst.msk [vmem:[%s428 + $0x8] sm:$0xf] %vm1841, %v1835
      %1845 = vst.msk [vmem:[%s428 + $0xc] sm:$0xf] %vm1841, %v1836
      %1846 = vst.msk [vmem:[%s428 + $0x10] sm:$0xf] %vm1841, %v1837
      %1847 = vst.msk [vmem:[%s428 + $0x14] sm:$0xf] %vm1841, %v1838
      %1848 = vst.msk [vmem:[%s428 + $0x18] sm:$0xf] %vm1841, %v1839
      %1849 = vst.msk [vmem:[%s428 + $0x1c] sm:$0xf] %vm1841, %v1840
      %v1850 = vld [vmem:[#allocation3] sm:$0x1]
      %v1851 = vsel %vm801, %v1825, 0.0
      %v1852 = vsel %vm801, %v1826, 0.0
      %v1853 = vadd.f32 %v1851, %v1852
      %v1854 = vsel %vm801, %v1827, 0.0
      %v1855 = vadd.f32 %v1853, %v1854
      %v1856 = vsel %vm801, %v1828, 0.0
      %v1857 = vadd.f32 %v1855, %v1856
      %v1858 = vsel %vm801, %v1829, 0.0
      %v1859 = vadd.f32 %v1857, %v1858
      %v1860 = vsel %vm801, %v1830, 0.0
      %v1861 = vadd.f32 %v1859, %v1860
      %v1862 = vsel %vm801, %v1831, 0.0
      %v1863 = vadd.f32 %v1861, %v1862
      %v1864 = vsel %vm801, %v1832, 0.0
      %v1865 = vadd.f32 %v1863, %v1864
      %v1866 = vrot.slane %v1865, 4
      %v1867 = vadd.f32 %v1865, %v1866
      %v1868 = vrot.slane %v1867, 2
      %v1869 = vadd.f32 %v1867, %v1868
      %v1870 = vrot.slane %v1869, 1
      %v1871 = vadd.f32 %v1869, %v1870
      %v1872 = vadd.f32 %v1850, %v1871
      %vm1873 = vcmask 57344
      %1874 = vst.msk [vmem:[#allocation3] sm:$0x1] %vm1873, %v1872
      %v1875 = vld [vmem:[#allocation4] sm:$0x1]
      %v1876 = vmul.f32 %v1825, %v1825
      %v1877 = vmul.f32 %v1826, %v1826
      %v1878 = vmul.f32 %v1827, %v1827
      %v1879 = vmul.f32 %v1828, %v1828
      %v1880 = vmul.f32 %v1829, %v1829
      %v1881 = vmul.f32 %v1830, %v1830
      %v1882 = vmul.f32 %v1831, %v1831
      %v1883 = vmul.f32 %v1832, %v1832
      %v1884 = vsel %vm801, %v1876, 0.0
      %v1885 = vsel %vm801, %v1877, 0.0
      %v1886 = vadd.f32 %v1884, %v1885
      %v1887 = vsel %vm801, %v1878, 0.0
      %v1888 = vadd.f32 %v1886, %v1887
      %v1889 = vsel %vm801, %v1879, 0.0
      %v1890 = vadd.f32 %v1888, %v1889
      %v1891 = vsel %vm801, %v1880, 0.0
      %v1892 = vadd.f32 %v1890, %v1891
      %v1893 = vsel %vm801, %v1881, 0.0
      %v1894 = vadd.f32 %v1892, %v1893
      %v1895 = vsel %vm801, %v1882, 0.0
      %v1896 = vadd.f32 %v1894, %v1895
      %v1897 = vsel %vm801, %v1883, 0.0
      %v1898 = vadd.f32 %v1896, %v1897
      %v1899 = vrot.slane %v1898, 4
      %v1900 = vadd.f32 %v1898, %v1899
      %v1901 = vrot.slane %v1900, 2
      %v1902 = vadd.f32 %v1900, %v1901
      %v1903 = vrot.slane %v1902, 1
      %v1904 = vadd.f32 %v1902, %v1903
      %v1905 = vadd.f32 %v1875, %v1904
      %1906 = vst.msk [vmem:[#allocation4] sm:$0x1] %vm1873, %v1905
      %p1907 = scmp.eq.s32.totalorder %s25, 1
      // Predicated region
      $region49: #{bottleneck_forward.5} parent=43 // pred_check
        %p1908 = pneg %p1907
      $region50: #{bottleneck_forward.5} parent=43 // pred_check_branch
        %1910 = sbr.rel (%p1908) target = $region52
      $region51: #{bottleneck_forward.5} parent=43 // pred_region
        %v1911 = vld [vmem:[#allocation3] sm:$0x1]
        %v1912 = vmul.f32 %v1911, 0.0078125
        %v1913 = vld [vmem:[#allocation4] sm:$0x1]
        %v1914 = vmul.f32 %v1913, 0.0078125
        %v1915 = vmul.f32 %v1912, %v1912
        %v1916 = vsub.f32 %v1914, %v1915
        %v1917 = vmax.f32 %v1916, 0.0
        %v1918 = vld [vmem:[%s416] sm:$0x1]
        %v1919 = vadd.f32 %v1917, 1e-05
        %v1920 = vrsqrt.pop %v1919
        %v1921 = vmul.f32 %v1920, %v1919
        %v1922 = vmul.f32 %v1921, %v1920
        %v1923 = vmul.f32 0.5, %v1922
        %v1924 = vsub.f32 1.5, %v1923
        %v1925 = vmul.f32 %v1920, %v1924
        %vm1926 = vweird.f32 %v1919
        %vm1927 = vweird.f32 %v1920
        %vm1928 = vmor %vm1926, %vm1927
        %v1929 = vsel %vm1928, %v1920, %v1925
        %v1930 = vmul.f32 %v1918, %v1929
        %1931 = vst.msk [vmem:[%s431] sm:$0x1] %vm1873, %v1930
        %v1932 = vld [vmem:[%s419] sm:$0x1]
        %v1933 = vmul.f32 %v1912, %v1930
        %v1934 = vsub.f32 %v1932, %v1933
        %1935 = vst.msk [vmem:[%s434] sm:$0x1] %vm1873, %v1934
      $region52: #{bottleneck_forward.5} parent=43 // pred_fallthru
        _
      %p1936 = scmp.lt.s32.totalorder %s24, 1
      %s1937 = scalar_select %p1936, %s24, 1
      %p1938 = scmp.lt.s32.totalorder %s25, 1
      %s1939 = scalar_select %p1938, %s25, 1
      %s1940 = smul.addr %s1939, 8
      %s1941 = smul.addr %s1937, 16
      %s1942 = sadd.s32 %s1940, %s1941
      %s1943 = smul.addr %s1942, 4
      %s1944 = scalar_lea.vmem %s6, %s1943
      %p1945 = scmp.lt.s32.totalorder %s24, 1
      %s1946 = scalar_select %p1945, %s24, 1
      %s1947 = scalar_lea.vmem %s7, %s1946
      %p1948 = scmp.lt.s32.totalorder %s24, 1
      %s1949 = scalar_select %p1948, %s24, 1
      %s1950 = scalar_lea.vmem %s8, %s1949
      // Predicated region
      $region53: #{bottleneck_forward.5} parent=43 // pred_check
        %p1951 = pneg %p210
      $region54: #{bottleneck_forward.5} parent=43 // pred_check_branch
        %1953 = sbr.rel (%p1951) target = $region56
      $region55: #{bottleneck_forward.5} parent=43 // pred_region
        _
      $region56: #{bottleneck_forward.5} parent=43 // pred_fallthru
        _
      // Predicated region
      $region57: #{bottleneck_forward.5} parent=43 // pred_check
        %p1954 = pneg %p236
      $region58: #{bottleneck_forward.5} parent=43 // pred_check_branch
        %1956 = sbr.rel (%p1954) target = $region60
      $region59: #{bottleneck_forward.5} parent=43 // pred_region
        _
      $region60: #{bottleneck_forward.5} parent=43 // pred_fallthru
        _
      // Predicated region
      $region61: #{bottleneck_forward.5} parent=43 // pred_check
        %p1957 = pneg %p262
      $region62: #{bottleneck_forward.5} parent=43 // pred_check_branch
        %1959 = sbr.rel (%p1957) target = $region64
      $region63: #{bottleneck_forward.5} parent=43 // pred_region
        _
      $region64: #{bottleneck_forward.5} parent=43 // pred_fallthru
        _
    $region44: #{bottleneck_forward.5} parent=5 // pred_fallthru
      _
    %p1960 = scmp.le.s32.totalorder 2, %s15
    // Predicated region
    $region65: #{bottleneck_forward.5} parent=5 // pred_check
      %p1961 = pneg %p1960
    $region66: #{bottleneck_forward.5} parent=5 // pred_check_branch
      %1963 = sbr.rel (%p1961) target = $region68
    $region67: #{bottleneck_forward.5} parent=5 // pred_region
      %s1964 = ssub.s32 %s15, 2
      // Predicated region
      $region69: #{bottleneck_forward.5} parent=67 // pred_check
        %p1965 = pneg %p216
      $region70: #{bottleneck_forward.5} parent=67 // pred_check_branch
        %1967 = sbr.rel (%p1965) target = $region72
      $region71: #{bottleneck_forward.5} parent=67 // pred_region
        %p1968 = scmp.lt.s32.totalorder %s26, 1
        %s1969 = scalar_select %p1968, %s26, 1
        %p1970 = scmp.lt.s32.totalorder %s27, 1
        %s1971 = scalar_select %p1970, %s27, 1
        %s1972 = smul.addr %s1971, 8
        %s1973 = smul.addr %s1969, 16
        %s1974 = sadd.s32 %s1972, %s1973
        %s1975 = smul.addr %s1974, 4
        %s1976 = scalar_lea.vmem %s6, %s1975
      $region72: #{bottleneck_forward.5} parent=67 // pred_fallthru
        _
      // Predicated region
      $region73: #{bottleneck_forward.5} parent=67 // pred_check
        %p1977 = pneg %p242
      $region74: #{bottleneck_forward.5} parent=67 // pred_check_branch
        %1979 = sbr.rel (%p1977) target = $region76
      $region75: #{bottleneck_forward.5} parent=67 // pred_region
        %p1980 = scmp.lt.s32.totalorder %s26, 1
        %s1981 = scalar_select %p1980, %s26, 1
        %s1982 = scalar_lea.vmem %s7, %s1981
      $region76: #{bottleneck_forward.5} parent=67 // pred_fallthru
        _
      // Predicated region
      $region77: #{bottleneck_forward.5} parent=67 // pred_check
        %p1983 = pneg %p268
      $region78: #{bottleneck_forward.5} parent=67 // pred_check_branch
        %1985 = sbr.rel (%p1983) target = $region80
      $region79: #{bottleneck_forward.5} parent=67 // pred_region
        %p1986 = scmp.lt.s32.totalorder %s26, 1
        %s1987 = scalar_select %p1986, %s26, 1
        %s1988 = scalar_lea.vmem %s8, %s1987
      $region80: #{bottleneck_forward.5} parent=67 // pred_fallthru
        _
    $region68: #{bottleneck_forward.5} parent=5 // pred_fallthru
      _
  $region6: #{bottleneck_forward.5} parent=0 // loop_footer
    %s19 = sadd.s32 1, %s15
  $region7: #{bottleneck_forward.5} parent=0 // loop_footer_branch
    %14 = sbr.rel target = $region3
  $region8: #{bottleneck_forward.5} parent=0 // loop_exit
    _

</llo_original>
